<compile_context>
chip_gen: v7x
topology: tpu7x:2x2x1
jax: 0.10.0
libtpu: 0.0.40
codegen_flags: <defaults>
</compile_context>

<pallas_src>
import jax
import jax.numpy as jnp
from jax.experimental import pallas as pl
from jax.experimental.pallas import tpu as pltpu

C1P = 8    # conv1 out-channels padded 6 -> 8 (lane interleave factor)
C2P = 16   # conv2 out-channels (already 16)


# ------------------------------------------------------------------
# Fused forward kernel: one image per grid step.
# ------------------------------------------------------------------
def _lenet_kernel(x_ref,
                  m1_ref, b1_ref, sh1_ref, sw1_ref,
                  m2_ref, b2_ref, sh2_ref, sw2_ref,
                  wf1_ref, bf1_ref, wf2_ref, bf2_ref, wf3_ref, bf3_ref,
                  o_ref):
    f32 = jnp.float32

    # ---- conv1 (5x5, 1->6) + bias + ReLU:  [32,32] -> [28, 28*C1P] ----
    acc1 = jnp.zeros((28, 28 * C1P), f32)
    for i in range(5):
        acc1 = acc1 + jnp.dot(x_ref[0, i:i + 28, :], m1_ref[i],
                              preferred_element_type=f32)
    y1 = jnp.maximum(acc1 + b1_ref[...], 0.0)

    # ---- maxpool 2x2 via 0/1 selection matmuls: [28,224] -> [14,112] ----
    r1 = jnp.maximum(jnp.dot(sh1_ref[0], y1, preferred_element_type=f32),
                     jnp.dot(sh1_ref[1], y1, preferred_element_type=f32))
    p1 = jnp.maximum(jnp.dot(r1, sw1_ref[0], preferred_element_type=f32),
                     jnp.dot(r1, sw1_ref[1], preferred_element_type=f32))

    # ---- conv2 (5x5, 6->16) + bias + ReLU:  [14,112] -> [10, 10*C2P] ----
    acc2 = jnp.zeros((10, 10 * C2P), f32)
    for i in range(5):
        acc2 = acc2 + jnp.dot(p1[i:i + 10, :], m2_ref[i],
                              preferred_element_type=f32)
    y2 = jnp.maximum(acc2 + b2_ref[...], 0.0)

    # ---- maxpool 2x2: [10,160] -> [5,80] ----
    r2 = jnp.maximum(jnp.dot(sh2_ref[0], y2, preferred_element_type=f32),
                     jnp.dot(sh2_ref[1], y2, preferred_element_type=f32))
    p2 = jnp.maximum(jnp.dot(r2, sw2_ref[0], preferred_element_type=f32),
                     jnp.dot(r2, sw2_ref[1], preferred_element_type=f32))

    # ---- fc1 (400->120): CHW flatten is folded into the row-permuted weight ----
    accf = bf1_ref[...]
    for r in range(5):
        accf = accf + jnp.dot(p2[r:r + 1, :], wf1_ref[r],
                              preferred_element_type=f32)
    h = jnp.maximum(accf, 0.0)

    # ---- fc2 (120->60) + fc3 (60->10), ReLU on both (matches the module) ----
    h = jnp.maximum(jnp.dot(h, wf2_ref[...], preferred_element_type=f32) + bf2_ref[...], 0.0)
    h = jnp.maximum(jnp.dot(h, wf3_ref[...], preferred_element_type=f32) + bf3_ref[...], 0.0)

    o_ref[0] = h


# ------------------------------------------------------------------
# One-time weight repacking (outside the hot path).
# ------------------------------------------------------------------
def _conv_band(w, w_in, cin_pad, cout_pad):
    """w: [kh,kw,cin,cout] -> [kh, w_in*cin_pad, w_out*cout_pad] banded matrices so that
       conv_out[y, x*cout_pad+co] = sum_i  in2d[y+i, :] @ band[i],
       where in2d has the interleaved layout [H, W*cin_pad] (lane = w*cin_pad + ci)."""
    kh, kw, cin, cout = w.shape
    w_out = w_in - kw + 1
    wp = jnp.zeros((kh, kw, cin_pad, cout_pad), jnp.float32).at[:, :, :cin, :cout].set(w)
    wcol = jnp.arange(w_in)[:, None]
    xout = jnp.arange(w_out)[None, :]
    j = wcol - xout                                    # [w_in, w_out]
    valid = (j >= 0) & (j < kw)
    g = wp[:, jnp.clip(j, 0, kw - 1), :, :]            # [kh, w_in, w_out, cin_pad, cout_pad]
    g = jnp.where(valid[None, :, :, None, None], g, 0.0)
    g = jnp.transpose(g, (0, 1, 3, 2, 4))              # [kh, w_in, cin_pad, w_out, cout_pad]
    return g.reshape(kh, w_in * cin_pad, w_out * cout_pad)


def _pool_selectors(h_out, w_out, c):
    """Constant 0/1 matrices implementing 2x2 stride-2 max pooling as matmuls."""
    f32 = jnp.float32
    eh = jnp.eye(2 * h_out, dtype=f32)
    sh = jnp.stack([eh[0::2], eh[1::2]])               # [2, h_out, 2*h_out]  (row select)
    ew = jnp.eye(2 * w_out, dtype=f32)
    ic = jnp.eye(c, dtype=f32)
    sw = jnp.stack([jnp.kron(ew[:, 0::2], ic),         # [2, 2*w_out*c, w_out*c] (col-group select)
                    jnp.kron(ew[:, 1::2], ic)])
    return sh, sw


def prepare_kernel_weights(params):
    kp = {}
    kp["m1"] = _conv_band(params["w1"], 32, 1, C1P)                         # [5, 32, 224]
    kp["b1"] = jnp.tile(jnp.pad(params["b1"], (0, C1P - 6)), 28)[None, :]   # [1, 224]
    kp["sh1"], kp["sw1"] = _pool_selectors(14, 14, C1P)                     # [2,14,28], [2,224,112]
    kp["m2"] = _conv_band(params["w2"], 14, C1P, C2P)                       # [5, 112, 160]
    kp["b2"] = jnp.tile(params["b2"], 10)[None, :]                          # [1, 160]
    kp["sh2"], kp["sw2"] = _pool_selectors(5, 5, C2P)                       # [2,5,10], [2,160,80]
    # fold PyTorch CHW flatten order (c*25 + y*5 + x) into fc1's rows -> kernel's (y, x, c) order
    kp["wf1"] = params["wf1"].reshape(16, 5, 5, 120).transpose(1, 2, 0, 3).reshape(5, 5 * C2P, 120)
    kp["bf1"] = params["bf1"][None, :]
    kp["wf2"] = params["wf2"]
    kp["bf2"] = params["bf2"][None, :]
    kp["wf3"] = params["wf3"]
    kp["bf3"] = params["bf3"][None, :]
    return kp


# ------------------------------------------------------------------
# Forward: one fused pallas_call, grid over batch ("parallel").
# ------------------------------------------------------------------
def net_forward(kparams, x_nchw):
    B = x_nchw.shape[0]
    x = x_nchw.reshape(B, 32, 32)   # single input channel -> drop it (free, row-major)

    w_order = ["m1", "b1", "sh1", "sw1", "m2", "b2", "sh2", "sw2",
               "wf1", "bf1", "wf2", "bf2", "wf3", "bf3"]
    w_args = [kparams[k] for k in w_order]

    def full_spec(a):
        return pl.BlockSpec(a.shape, lambda b, nd=a.ndim: (0,) * nd)

    out = pl.pallas_call(
        _lenet_kernel,
        out_shape=jax.ShapeDtypeStruct((B, 1, 10), jnp.float32),
        grid=(B,),
        in_specs=[pl.BlockSpec((1, 32, 32), lambda b: (b, 0, 0))]
                 + [full_spec(a) for a in w_args],
        out_specs=pl.BlockSpec((1, 1, 10), lambda b: (b, 0, 0)),
        compiler_params=pltpu.CompilerParams(
            dimension_semantics=("parallel",)),   # both TCs on v7x; per-step VMEM ~2 MB
    )(x, *w_args)
    return out.reshape(B, 10)


# ------------------------------------------------------------------
# Params (PyTorch-default-style uniform init) + independent pure-JAX reference.
# ------------------------------------------------------------------
def init_params(key):
    ks = jax.random.split(key, 10)

    def u(k, shape, fan_in):
        bound = 1.0 / float(fan_in) ** 0.5
        return jax.random.uniform(k, shape, jnp.float32, -bound, bound)

    p = {}
    p["w1"] = u(ks[0], (5, 5, 1, 6), 25)
    p["b1"] = u(ks[1], (6,), 25)
    p["w2"] = u(ks[2], (5, 5, 6, 16), 150)
    p["b2"] = u(ks[3], (16,), 150)
    p["wf1"] = u(ks[4], (400, 120), 400)   # rows in PyTorch CHW-flatten order
    p["bf1"] = u(ks[5], (120,), 400)
    p["wf2"] = u(ks[6], (120, 60), 120)
    p["bf2"] = u(ks[7], (60,), 120)
    p["wf3"] = u(ks[8], (60, 10), 60)
    p["bf3"] = u(ks[9], (10,), 60)
    return p


def reference_forward(params, x_nchw):
    B = x_nchw.shape[0]
    x = jnp.transpose(x_nchw, (0, 2, 3, 1))  # NHWC

    def conv_valid(x, w, b):
        kh, kw, ci, co = w.shape
        Bb, H, W, _ = x.shape
        Ho, Wo = H - kh + 1, W - kw + 1
        cols = [x[:, i:i + Ho, j:j + Wo, :] for i in range(kh) for j in range(kw)]
        p = jnp.concatenate(cols, axis=-1).reshape(Bb * Ho * Wo, kh * kw * ci)
        return (p @ w.reshape(kh * kw * ci, co) + b).reshape(Bb, Ho, Wo, co)

    def pool2(x):
        Bb, H, W, C = x.shape
        return x.reshape(Bb, H // 2, 2, W // 2, 2, C).max(axis=(2, 4))

    y = pool2(jnp.maximum(conv_valid(x, params["w1"], params["b1"]), 0.0))
    y = pool2(jnp.maximum(conv_valid(y, params["w2"], params["b2"]), 0.0))
    flat = jnp.transpose(y, (0, 3, 1, 2)).reshape(B, 400)
    h = jnp.maximum(flat @ params["wf1"] + params["bf1"], 0.0)
    h = jnp.maximum(h @ params["wf2"] + params["bf2"], 0.0)
    return jnp.maximum(h @ params["wf3"] + params["bf3"], 0.0)


if __name__ == "__main__":
    key = jax.random.PRNGKey(0)
    pkey, xkey = jax.random.split(key)
    params = init_params(pkey)
    kparams = prepare_kernel_weights(params)   # one-time repack

    # Input implied by the module: 1 input channel, flatten 16*5*5 -> 32x32 spatial.
    x = jax.random.normal(xkey, (2, 1, 32, 32), dtype=jnp.float32)

    out = jax.jit(net_forward)(kparams, x)
    out = jax.block_until_ready(out)

    assert out.shape == (2, 10)
    assert bool(jnp.all(jnp.isfinite(out)))
    assert bool(jnp.all(out >= 0.0))           # final ReLU, as in the module

    # Cross-check vs. an independent pure-JAX/XLA path of the same math. Tolerance is loose
    # because the two paths decompose the f32 dots differently (TPU bf16-pass rounding differs).
    ref = reference_forward(params, x)
    assert bool(jnp.allclose(out, ref, atol=1e-1, rtol=1e-1))

    print("KERNEL_OK")
</pallas_src>

<mosaic_0001>
module attributes {stable_mosaic.version = 11 : i64} {
  func.func @_lenet_kernel(%arg0: i32, %arg1: memref<1x32x32xf32, #tpu.memory_space<vmem>>, %arg2: memref<5x32x224xf32, #tpu.memory_space<vmem>>, %arg3: memref<1x224xf32, #tpu.memory_space<vmem>>, %arg4: memref<2x14x28xf32, #tpu.memory_space<vmem>>, %arg5: memref<2x224x112xf32, #tpu.memory_space<vmem>>, %arg6: memref<5x112x160xf32, #tpu.memory_space<vmem>>, %arg7: memref<1x160xf32, #tpu.memory_space<vmem>>, %arg8: memref<2x5x10xf32, #tpu.memory_space<vmem>>, %arg9: memref<2x160x80xf32, #tpu.memory_space<vmem>>, %arg10: memref<5x80x120xf32, #tpu.memory_space<vmem>>, %arg11: memref<1x120xf32, #tpu.memory_space<vmem>>, %arg12: memref<120x60xf32, #tpu.memory_space<vmem>>, %arg13: memref<1x60xf32, #tpu.memory_space<vmem>>, %arg14: memref<60x10xf32, #tpu.memory_space<vmem>>, %arg15: memref<1x10xf32, #tpu.memory_space<vmem>>, %arg16: memref<1x1x10xf32, #tpu.memory_space<vmem>>) attributes {dimension_semantics = [#tpu.dimension_semantics<parallel>], iteration_bounds = array<i64: 2>, scalar_prefetch = 0 : i64, scratch_operands = 0 : i64, tpu.core_type = #tpu.core_type<tc>, window_params = [{transform_indices = @transform_0, window_bounds = array<i64: 1, 32, 32>}, {pipeline_mode = #tpu.pipeline_mode<synchronous>, transform_indices = @transform_1, window_bounds = array<i64: 5, 32, 224>}, {pipeline_mode = #tpu.pipeline_mode<synchronous>, transform_indices = @transform_2, window_bounds = array<i64: 1, 224>}, {pipeline_mode = #tpu.pipeline_mode<synchronous>, transform_indices = @transform_3, window_bounds = array<i64: 2, 14, 28>}, {pipeline_mode = #tpu.pipeline_mode<synchronous>, transform_indices = @transform_4, window_bounds = array<i64: 2, 224, 112>}, {pipeline_mode = #tpu.pipeline_mode<synchronous>, transform_indices = @transform_5, window_bounds = array<i64: 5, 112, 160>}, {pipeline_mode = #tpu.pipeline_mode<synchronous>, transform_indices = @transform_6, window_bounds = array<i64: 1, 160>}, {pipeline_mode = #tpu.pipeline_mode<synchronous>, transform_indices = @transform_7, window_bounds = array<i64: 2, 5, 10>}, {pipeline_mode = #tpu.pipeline_mode<synchronous>, transform_indices = @transform_8, window_bounds = array<i64: 2, 160, 80>}, {pipeline_mode = #tpu.pipeline_mode<synchronous>, transform_indices = @transform_9, window_bounds = array<i64: 5, 80, 120>}, {pipeline_mode = #tpu.pipeline_mode<synchronous>, transform_indices = @transform_10, window_bounds = array<i64: 1, 120>}, {pipeline_mode = #tpu.pipeline_mode<synchronous>, transform_indices = @transform_11, window_bounds = array<i64: 120, 60>}, {pipeline_mode = #tpu.pipeline_mode<synchronous>, transform_indices = @transform_12, window_bounds = array<i64: 1, 60>}, {pipeline_mode = #tpu.pipeline_mode<synchronous>, transform_indices = @transform_13, window_bounds = array<i64: 60, 10>}, {pipeline_mode = #tpu.pipeline_mode<synchronous>, transform_indices = @transform_14, window_bounds = array<i64: 1, 10>}, {transform_indices = @transform_15, window_bounds = array<i64: 1, 1, 10>}]} {
    %cst = arith.constant 0.000000e+00 : f32
    %0 = vector.broadcast %cst : f32 to vector<28x224xf32>
    %c0 = arith.constant 0 : index
    %c0_0 = arith.constant 0 : index
    %c0_1 = arith.constant 0 : index
    %1 = vector.load %arg1[%c0, %c0_0, %c0_1] : memref<1x32x32xf32, #tpu.memory_space<vmem>>, vector<1x28x32xf32>
    %2 = vector.shape_cast %1 : vector<1x28x32xf32> to vector<28x32xf32>
    %c0_2 = arith.constant 0 : index
    %c0_3 = arith.constant 0 : index
    %c0_4 = arith.constant 0 : index
    %3 = vector.load %arg2[%c0_2, %c0_3, %c0_4] : memref<5x32x224xf32, #tpu.memory_space<vmem>>, vector<1x32x224xf32>
    %4 = vector.shape_cast %3 : vector<1x32x224xf32> to vector<32x224xf32>
    %cst_5 = arith.constant dense<0.000000e+00> : vector<28x224xf32>
    %5 = tpu.matmul %2, %4, %cst_5 {dimension_numbers = #tpu.dot_dimension_numbers<[1], [0], [0], [1], [0, 0, 1, 1], [], []>} : vector<28x32xf32>, vector<32x224xf32>, vector<28x224xf32> -> vector<28x224xf32>
    %6 = arith.addf %0, %5 : vector<28x224xf32>
    %c0_6 = arith.constant 0 : index
    %c1 = arith.constant 1 : index
    %c0_7 = arith.constant 0 : index
    %7 = vector.load %arg1[%c0_6, %c1, %c0_7] : memref<1x32x32xf32, #tpu.memory_space<vmem>>, vector<1x28x32xf32>
    %8 = vector.shape_cast %7 : vector<1x28x32xf32> to vector<28x32xf32>
    %c1_8 = arith.constant 1 : index
    %c0_9 = arith.constant 0 : index
    %c0_10 = arith.constant 0 : index
    %9 = vector.load %arg2[%c1_8, %c0_9, %c0_10] : memref<5x32x224xf32, #tpu.memory_space<vmem>>, vector<1x32x224xf32>
    %10 = vector.shape_cast %9 : vector<1x32x224xf32> to vector<32x224xf32>
    %cst_11 = arith.constant dense<0.000000e+00> : vector<28x224xf32>
    %11 = tpu.matmul %8, %10, %cst_11 {dimension_numbers = #tpu.dot_dimension_numbers<[1], [0], [0], [1], [0, 0, 1, 1], [], []>} : vector<28x32xf32>, vector<32x224xf32>, vector<28x224xf32> -> vector<28x224xf32>
    %12 = arith.addf %6, %11 : vector<28x224xf32>
    %c0_12 = arith.constant 0 : index
    %c2 = arith.constant 2 : index
    %c0_13 = arith.constant 0 : index
    %13 = vector.load %arg1[%c0_12, %c2, %c0_13] : memref<1x32x32xf32, #tpu.memory_space<vmem>>, vector<1x28x32xf32>
    %14 = vector.shape_cast %13 : vector<1x28x32xf32> to vector<28x32xf32>
    %c2_14 = arith.constant 2 : index
    %c0_15 = arith.constant 0 : index
    %c0_16 = arith.constant 0 : index
    %15 = vector.load %arg2[%c2_14, %c0_15, %c0_16] : memref<5x32x224xf32, #tpu.memory_space<vmem>>, vector<1x32x224xf32>
    %16 = vector.shape_cast %15 : vector<1x32x224xf32> to vector<32x224xf32>
    %cst_17 = arith.constant dense<0.000000e+00> : vector<28x224xf32>
    %17 = tpu.matmul %14, %16, %cst_17 {dimension_numbers = #tpu.dot_dimension_numbers<[1], [0], [0], [1], [0, 0, 1, 1], [], []>} : vector<28x32xf32>, vector<32x224xf32>, vector<28x224xf32> -> vector<28x224xf32>
    %18 = arith.addf %12, %17 : vector<28x224xf32>
    %c0_18 = arith.constant 0 : index
    %c3 = arith.constant 3 : index
    %c0_19 = arith.constant 0 : index
    %19 = vector.load %arg1[%c0_18, %c3, %c0_19] : memref<1x32x32xf32, #tpu.memory_space<vmem>>, vector<1x28x32xf32>
    %20 = vector.shape_cast %19 : vector<1x28x32xf32> to vector<28x32xf32>
    %c3_20 = arith.constant 3 : index
    %c0_21 = arith.constant 0 : index
    %c0_22 = arith.constant 0 : index
    %21 = vector.load %arg2[%c3_20, %c0_21, %c0_22] : memref<5x32x224xf32, #tpu.memory_space<vmem>>, vector<1x32x224xf32>
    %22 = vector.shape_cast %21 : vector<1x32x224xf32> to vector<32x224xf32>
    %cst_23 = arith.constant dense<0.000000e+00> : vector<28x224xf32>
    %23 = tpu.matmul %20, %22, %cst_23 {dimension_numbers = #tpu.dot_dimension_numbers<[1], [0], [0], [1], [0, 0, 1, 1], [], []>} : vector<28x32xf32>, vector<32x224xf32>, vector<28x224xf32> -> vector<28x224xf32>
    %24 = arith.addf %18, %23 : vector<28x224xf32>
    %c0_24 = arith.constant 0 : index
    %c4 = arith.constant 4 : index
    %c0_25 = arith.constant 0 : index
    %25 = vector.load %arg1[%c0_24, %c4, %c0_25] : memref<1x32x32xf32, #tpu.memory_space<vmem>>, vector<1x28x32xf32>
    %26 = vector.shape_cast %25 : vector<1x28x32xf32> to vector<28x32xf32>
    %c4_26 = arith.constant 4 : index
    %c0_27 = arith.constant 0 : index
    %c0_28 = arith.constant 0 : index
    %27 = vector.load %arg2[%c4_26, %c0_27, %c0_28] : memref<5x32x224xf32, #tpu.memory_space<vmem>>, vector<1x32x224xf32>
    %28 = vector.shape_cast %27 : vector<1x32x224xf32> to vector<32x224xf32>
    %cst_29 = arith.constant dense<0.000000e+00> : vector<28x224xf32>
    %29 = tpu.matmul %26, %28, %cst_29 {dimension_numbers = #tpu.dot_dimension_numbers<[1], [0], [0], [1], [0, 0, 1, 1], [], []>} : vector<28x32xf32>, vector<32x224xf32>, vector<28x224xf32> -> vector<28x224xf32>
    %30 = arith.addf %24, %29 : vector<28x224xf32>
    %c0_30 = arith.constant 0 : index
    %c0_31 = arith.constant 0 : index
    %31 = vector.load %arg3[%c0_30, %c0_31] : memref<1x224xf32, #tpu.memory_space<vmem>>, vector<1x224xf32>
    %32 = vector.broadcast %31 : vector<1x224xf32> to vector<28x224xf32>
    %33 = arith.addf %30, %32 : vector<28x224xf32>
    %cst_32 = arith.constant 0.000000e+00 : f32
    %34 = vector.broadcast %cst_32 : f32 to vector<28x224xf32>
    %35 = arith.maximumf %33, %34 : vector<28x224xf32>
    %c0_33 = arith.constant 0 : index
    %c0_34 = arith.constant 0 : index
    %c0_35 = arith.constant 0 : index
    %36 = vector.load %arg4[%c0_33, %c0_34, %c0_35] : memref<2x14x28xf32, #tpu.memory_space<vmem>>, vector<1x14x28xf32>
    %37 = vector.shape_cast %36 : vector<1x14x28xf32> to vector<14x28xf32>
    %cst_36 = arith.constant dense<0.000000e+00> : vector<14x224xf32>
    %38 = tpu.matmul %37, %35, %cst_36 {dimension_numbers = #tpu.dot_dimension_numbers<[1], [0], [0], [1], [0, 0, 1, 1], [], []>} : vector<14x28xf32>, vector<28x224xf32>, vector<14x224xf32> -> vector<14x224xf32>
    %c1_37 = arith.constant 1 : index
    %c0_38 = arith.constant 0 : index
    %c0_39 = arith.constant 0 : index
    %39 = vector.load %arg4[%c1_37, %c0_38, %c0_39] : memref<2x14x28xf32, #tpu.memory_space<vmem>>, vector<1x14x28xf32>
    %40 = vector.shape_cast %39 : vector<1x14x28xf32> to vector<14x28xf32>
    %cst_40 = arith.constant dense<0.000000e+00> : vector<14x224xf32>
    %41 = tpu.matmul %40, %35, %cst_40 {dimension_numbers = #tpu.dot_dimension_numbers<[1], [0], [0], [1], [0, 0, 1, 1], [], []>} : vector<14x28xf32>, vector<28x224xf32>, vector<14x224xf32> -> vector<14x224xf32>
    %42 = arith.maximumf %38, %41 : vector<14x224xf32>
    %c0_41 = arith.constant 0 : index
    %c0_42 = arith.constant 0 : index
    %c0_43 = arith.constant 0 : index
    %43 = vector.load %arg5[%c0_41, %c0_42, %c0_43] : memref<2x224x112xf32, #tpu.memory_space<vmem>>, vector<1x224x112xf32>
    %44 = vector.shape_cast %43 : vector<1x224x112xf32> to vector<224x112xf32>
    %cst_44 = arith.constant dense<0.000000e+00> : vector<14x112xf32>
    %45 = tpu.matmul %42, %44, %cst_44 {dimension_numbers = #tpu.dot_dimension_numbers<[1], [0], [0], [1], [0, 0, 1, 1], [], []>} : vector<14x224xf32>, vector<224x112xf32>, vector<14x112xf32> -> vector<14x112xf32>
    %c1_45 = arith.constant 1 : index
    %c0_46 = arith.constant 0 : index
    %c0_47 = arith.constant 0 : index
    %46 = vector.load %arg5[%c1_45, %c0_46, %c0_47] : memref<2x224x112xf32, #tpu.memory_space<vmem>>, vector<1x224x112xf32>
    %47 = vector.shape_cast %46 : vector<1x224x112xf32> to vector<224x112xf32>
    %cst_48 = arith.constant dense<0.000000e+00> : vector<14x112xf32>
    %48 = tpu.matmul %42, %47, %cst_48 {dimension_numbers = #tpu.dot_dimension_numbers<[1], [0], [0], [1], [0, 0, 1, 1], [], []>} : vector<14x224xf32>, vector<224x112xf32>, vector<14x112xf32> -> vector<14x112xf32>
    %49 = arith.maximumf %45, %48 : vector<14x112xf32>
    %cst_49 = arith.constant 0.000000e+00 : f32
    %50 = vector.broadcast %cst_49 : f32 to vector<10x160xf32>
    %51 = vector.extract_strided_slice %49 {offsets = [0, 0], sizes = [10, 112], strides = [1, 1]} : vector<14x112xf32> to vector<10x112xf32>
    %c0_50 = arith.constant 0 : index
    %c0_51 = arith.constant 0 : index
    %c0_52 = arith.constant 0 : index
    %52 = vector.load %arg6[%c0_50, %c0_51, %c0_52] : memref<5x112x160xf32, #tpu.memory_space<vmem>>, vector<1x112x160xf32>
    %53 = vector.shape_cast %52 : vector<1x112x160xf32> to vector<112x160xf32>
    %cst_53 = arith.constant dense<0.000000e+00> : vector<10x160xf32>
    %54 = tpu.matmul %51, %53, %cst_53 {dimension_numbers = #tpu.dot_dimension_numbers<[1], [0], [0], [1], [0, 0, 1, 1], [], []>} : vector<10x112xf32>, vector<112x160xf32>, vector<10x160xf32> -> vector<10x160xf32>
    %55 = arith.addf %50, %54 : vector<10x160xf32>
    %56 = vector.extract_strided_slice %49 {offsets = [1, 0], sizes = [10, 112], strides = [1, 1]} : vector<14x112xf32> to vector<10x112xf32>
    %c1_54 = arith.constant 1 : index
    %c0_55 = arith.constant 0 : index
    %c0_56 = arith.constant 0 : index
    %57 = vector.load %arg6[%c1_54, %c0_55, %c0_56] : memref<5x112x160xf32, #tpu.memory_space<vmem>>, vector<1x112x160xf32>
    %58 = vector.shape_cast %57 : vector<1x112x160xf32> to vector<112x160xf32>
    %cst_57 = arith.constant dense<0.000000e+00> : vector<10x160xf32>
    %59 = tpu.matmul %56, %58, %cst_57 {dimension_numbers = #tpu.dot_dimension_numbers<[1], [0], [0], [1], [0, 0, 1, 1], [], []>} : vector<10x112xf32>, vector<112x160xf32>, vector<10x160xf32> -> vector<10x160xf32>
    %60 = arith.addf %55, %59 : vector<10x160xf32>
    %61 = vector.extract_strided_slice %49 {offsets = [2, 0], sizes = [10, 112], strides = [1, 1]} : vector<14x112xf32> to vector<10x112xf32>
    %c2_58 = arith.constant 2 : index
    %c0_59 = arith.constant 0 : index
    %c0_60 = arith.constant 0 : index
    %62 = vector.load %arg6[%c2_58, %c0_59, %c0_60] : memref<5x112x160xf32, #tpu.memory_space<vmem>>, vector<1x112x160xf32>
    %63 = vector.shape_cast %62 : vector<1x112x160xf32> to vector<112x160xf32>
    %cst_61 = arith.constant dense<0.000000e+00> : vector<10x160xf32>
    %64 = tpu.matmul %61, %63, %cst_61 {dimension_numbers = #tpu.dot_dimension_numbers<[1], [0], [0], [1], [0, 0, 1, 1], [], []>} : vector<10x112xf32>, vector<112x160xf32>, vector<10x160xf32> -> vector<10x160xf32>
    %65 = arith.addf %60, %64 : vector<10x160xf32>
    %66 = vector.extract_strided_slice %49 {offsets = [3, 0], sizes = [10, 112], strides = [1, 1]} : vector<14x112xf32> to vector<10x112xf32>
    %c3_62 = arith.constant 3 : index
    %c0_63 = arith.constant 0 : index
    %c0_64 = arith.constant 0 : index
    %67 = vector.load %arg6[%c3_62, %c0_63, %c0_64] : memref<5x112x160xf32, #tpu.memory_space<vmem>>, vector<1x112x160xf32>
    %68 = vector.shape_cast %67 : vector<1x112x160xf32> to vector<112x160xf32>
    %cst_65 = arith.constant dense<0.000000e+00> : vector<10x160xf32>
    %69 = tpu.matmul %66, %68, %cst_65 {dimension_numbers = #tpu.dot_dimension_numbers<[1], [0], [0], [1], [0, 0, 1, 1], [], []>} : vector<10x112xf32>, vector<112x160xf32>, vector<10x160xf32> -> vector<10x160xf32>
    %70 = arith.addf %65, %69 : vector<10x160xf32>
    %71 = vector.extract_strided_slice %49 {offsets = [4, 0], sizes = [10, 112], strides = [1, 1]} : vector<14x112xf32> to vector<10x112xf32>
    %c4_66 = arith.constant 4 : index
    %c0_67 = arith.constant 0 : index
    %c0_68 = arith.constant 0 : index
    %72 = vector.load %arg6[%c4_66, %c0_67, %c0_68] : memref<5x112x160xf32, #tpu.memory_space<vmem>>, vector<1x112x160xf32>
    %73 = vector.shape_cast %72 : vector<1x112x160xf32> to vector<112x160xf32>
    %cst_69 = arith.constant dense<0.000000e+00> : vector<10x160xf32>
    %74 = tpu.matmul %71, %73, %cst_69 {dimension_numbers = #tpu.dot_dimension_numbers<[1], [0], [0], [1], [0, 0, 1, 1], [], []>} : vector<10x112xf32>, vector<112x160xf32>, vector<10x160xf32> -> vector<10x160xf32>
    %75 = arith.addf %70, %74 : vector<10x160xf32>
    %c0_70 = arith.constant 0 : index
    %c0_71 = arith.constant 0 : index
    %76 = vector.load %arg7[%c0_70, %c0_71] : memref<1x160xf32, #tpu.memory_space<vmem>>, vector<1x160xf32>
    %77 = vector.broadcast %76 : vector<1x160xf32> to vector<10x160xf32>
    %78 = arith.addf %75, %77 : vector<10x160xf32>
    %cst_72 = arith.constant 0.000000e+00 : f32
    %79 = vector.broadcast %cst_72 : f32 to vector<10x160xf32>
    %80 = arith.maximumf %78, %79 : vector<10x160xf32>
    %c0_73 = arith.constant 0 : index
    %c0_74 = arith.constant 0 : index
    %c0_75 = arith.constant 0 : index
    %81 = vector.load %arg8[%c0_73, %c0_74, %c0_75] : memref<2x5x10xf32, #tpu.memory_space<vmem>>, vector<1x5x10xf32>
    %82 = vector.shape_cast %81 : vector<1x5x10xf32> to vector<5x10xf32>
    %cst_76 = arith.constant dense<0.000000e+00> : vector<5x160xf32>
    %83 = tpu.matmul %82, %80, %cst_76 {dimension_numbers = #tpu.dot_dimension_numbers<[1], [0], [0], [1], [0, 0, 1, 1], [], []>} : vector<5x10xf32>, vector<10x160xf32>, vector<5x160xf32> -> vector<5x160xf32>
    %c1_77 = arith.constant 1 : index
    %c0_78 = arith.constant 0 : index
    %c0_79 = arith.constant 0 : index
    %84 = vector.load %arg8[%c1_77, %c0_78, %c0_79] : memref<2x5x10xf32, #tpu.memory_space<vmem>>, vector<1x5x10xf32>
    %85 = vector.shape_cast %84 : vector<1x5x10xf32> to vector<5x10xf32>
    %cst_80 = arith.constant dense<0.000000e+00> : vector<5x160xf32>
    %86 = tpu.matmul %85, %80, %cst_80 {dimension_numbers = #tpu.dot_dimension_numbers<[1], [0], [0], [1], [0, 0, 1, 1], [], []>} : vector<5x10xf32>, vector<10x160xf32>, vector<5x160xf32> -> vector<5x160xf32>
    %87 = arith.maximumf %83, %86 : vector<5x160xf32>
    %c0_81 = arith.constant 0 : index
    %c0_82 = arith.constant 0 : index
    %c0_83 = arith.constant 0 : index
    %88 = vector.load %arg9[%c0_81, %c0_82, %c0_83] : memref<2x160x80xf32, #tpu.memory_space<vmem>>, vector<1x160x80xf32>
    %89 = vector.shape_cast %88 : vector<1x160x80xf32> to vector<160x80xf32>
    %cst_84 = arith.constant dense<0.000000e+00> : vector<5x80xf32>
    %90 = tpu.matmul %87, %89, %cst_84 {dimension_numbers = #tpu.dot_dimension_numbers<[1], [0], [0], [1], [0, 0, 1, 1], [], []>} : vector<5x160xf32>, vector<160x80xf32>, vector<5x80xf32> -> vector<5x80xf32>
    %c1_85 = arith.constant 1 : index
    %c0_86 = arith.constant 0 : index
    %c0_87 = arith.constant 0 : index
    %91 = vector.load %arg9[%c1_85, %c0_86, %c0_87] : memref<2x160x80xf32, #tpu.memory_space<vmem>>, vector<1x160x80xf32>
    %92 = vector.shape_cast %91 : vector<1x160x80xf32> to vector<160x80xf32>
    %cst_88 = arith.constant dense<0.000000e+00> : vector<5x80xf32>
    %93 = tpu.matmul %87, %92, %cst_88 {dimension_numbers = #tpu.dot_dimension_numbers<[1], [0], [0], [1], [0, 0, 1, 1], [], []>} : vector<5x160xf32>, vector<160x80xf32>, vector<5x80xf32> -> vector<5x80xf32>
    %94 = arith.maximumf %90, %93 : vector<5x80xf32>
    %c0_89 = arith.constant 0 : index
    %c0_90 = arith.constant 0 : index
    %95 = vector.load %arg11[%c0_89, %c0_90] : memref<1x120xf32, #tpu.memory_space<vmem>>, vector<1x120xf32>
    %96 = vector.extract_strided_slice %94 {offsets = [0, 0], sizes = [1, 80], strides = [1, 1]} : vector<5x80xf32> to vector<1x80xf32>
    %c0_91 = arith.constant 0 : index
    %c0_92 = arith.constant 0 : index
    %c0_93 = arith.constant 0 : index
    %97 = vector.load %arg10[%c0_91, %c0_92, %c0_93] : memref<5x80x120xf32, #tpu.memory_space<vmem>>, vector<1x80x120xf32>
    %98 = vector.shape_cast %97 : vector<1x80x120xf32> to vector<80x120xf32>
    %cst_94 = arith.constant dense<0.000000e+00> : vector<1x120xf32>
    %99 = tpu.matmul %96, %98, %cst_94 {dimension_numbers = #tpu.dot_dimension_numbers<[1], [0], [0], [1], [0, 0, 1, 1], [], []>} : vector<1x80xf32>, vector<80x120xf32>, vector<1x120xf32> -> vector<1x120xf32>
    %100 = arith.addf %95, %99 : vector<1x120xf32>
    %101 = vector.extract_strided_slice %94 {offsets = [1, 0], sizes = [1, 80], strides = [1, 1]} : vector<5x80xf32> to vector<1x80xf32>
    %c1_95 = arith.constant 1 : index
    %c0_96 = arith.constant 0 : index
    %c0_97 = arith.constant 0 : index
    %102 = vector.load %arg10[%c1_95, %c0_96, %c0_97] : memref<5x80x120xf32, #tpu.memory_space<vmem>>, vector<1x80x120xf32>
    %103 = vector.shape_cast %102 : vector<1x80x120xf32> to vector<80x120xf32>
    %cst_98 = arith.constant dense<0.000000e+00> : vector<1x120xf32>
    %104 = tpu.matmul %101, %103, %cst_98 {dimension_numbers = #tpu.dot_dimension_numbers<[1], [0], [0], [1], [0, 0, 1, 1], [], []>} : vector<1x80xf32>, vector<80x120xf32>, vector<1x120xf32> -> vector<1x120xf32>
    %105 = arith.addf %100, %104 : vector<1x120xf32>
    %106 = vector.extract_strided_slice %94 {offsets = [2, 0], sizes = [1, 80], strides = [1, 1]} : vector<5x80xf32> to vector<1x80xf32>
    %c2_99 = arith.constant 2 : index
    %c0_100 = arith.constant 0 : index
    %c0_101 = arith.constant 0 : index
    %107 = vector.load %arg10[%c2_99, %c0_100, %c0_101] : memref<5x80x120xf32, #tpu.memory_space<vmem>>, vector<1x80x120xf32>
    %108 = vector.shape_cast %107 : vector<1x80x120xf32> to vector<80x120xf32>
    %cst_102 = arith.constant dense<0.000000e+00> : vector<1x120xf32>
    %109 = tpu.matmul %106, %108, %cst_102 {dimension_numbers = #tpu.dot_dimension_numbers<[1], [0], [0], [1], [0, 0, 1, 1], [], []>} : vector<1x80xf32>, vector<80x120xf32>, vector<1x120xf32> -> vector<1x120xf32>
    %110 = arith.addf %105, %109 : vector<1x120xf32>
    %111 = vector.extract_strided_slice %94 {offsets = [3, 0], sizes = [1, 80], strides = [1, 1]} : vector<5x80xf32> to vector<1x80xf32>
    %c3_103 = arith.constant 3 : index
    %c0_104 = arith.constant 0 : index
    %c0_105 = arith.constant 0 : index
    %112 = vector.load %arg10[%c3_103, %c0_104, %c0_105] : memref<5x80x120xf32, #tpu.memory_space<vmem>>, vector<1x80x120xf32>
    %113 = vector.shape_cast %112 : vector<1x80x120xf32> to vector<80x120xf32>
    %cst_106 = arith.constant dense<0.000000e+00> : vector<1x120xf32>
    %114 = tpu.matmul %111, %113, %cst_106 {dimension_numbers = #tpu.dot_dimension_numbers<[1], [0], [0], [1], [0, 0, 1, 1], [], []>} : vector<1x80xf32>, vector<80x120xf32>, vector<1x120xf32> -> vector<1x120xf32>
    %115 = arith.addf %110, %114 : vector<1x120xf32>
    %116 = vector.extract_strided_slice %94 {offsets = [4, 0], sizes = [1, 80], strides = [1, 1]} : vector<5x80xf32> to vector<1x80xf32>
    %c4_107 = arith.constant 4 : index
    %c0_108 = arith.constant 0 : index
    %c0_109 = arith.constant 0 : index
    %117 = vector.load %arg10[%c4_107, %c0_108, %c0_109] : memref<5x80x120xf32, #tpu.memory_space<vmem>>, vector<1x80x120xf32>
    %118 = vector.shape_cast %117 : vector<1x80x120xf32> to vector<80x120xf32>
    %cst_110 = arith.constant dense<0.000000e+00> : vector<1x120xf32>
    %119 = tpu.matmul %116, %118, %cst_110 {dimension_numbers = #tpu.dot_dimension_numbers<[1], [0], [0], [1], [0, 0, 1, 1], [], []>} : vector<1x80xf32>, vector<80x120xf32>, vector<1x120xf32> -> vector<1x120xf32>
    %120 = arith.addf %115, %119 : vector<1x120xf32>
    %cst_111 = arith.constant 0.000000e+00 : f32
    %121 = vector.broadcast %cst_111 : f32 to vector<1x120xf32>
    %122 = arith.maximumf %120, %121 : vector<1x120xf32>
    %c0_112 = arith.constant 0 : index
    %c0_113 = arith.constant 0 : index
    %123 = vector.load %arg12[%c0_112, %c0_113] : memref<120x60xf32, #tpu.memory_space<vmem>>, vector<120x60xf32>
    %cst_114 = arith.constant dense<0.000000e+00> : vector<1x60xf32>
    %124 = tpu.matmul %122, %123, %cst_114 {dimension_numbers = #tpu.dot_dimension_numbers<[1], [0], [0], [1], [0, 0, 1, 1], [], []>} : vector<1x120xf32>, vector<120x60xf32>, vector<1x60xf32> -> vector<1x60xf32>
    %c0_115 = arith.constant 0 : index
    %c0_116 = arith.constant 0 : index
    %125 = vector.load %arg13[%c0_115, %c0_116] : memref<1x60xf32, #tpu.memory_space<vmem>>, vector<1x60xf32>
    %126 = arith.addf %124, %125 : vector<1x60xf32>
    %cst_117 = arith.constant 0.000000e+00 : f32
    %127 = vector.broadcast %cst_117 : f32 to vector<1x60xf32>
    %128 = arith.maximumf %126, %127 : vector<1x60xf32>
    %c0_118 = arith.constant 0 : index
    %c0_119 = arith.constant 0 : index
    %129 = vector.load %arg14[%c0_118, %c0_119] : memref<60x10xf32, #tpu.memory_space<vmem>>, vector<60x10xf32>
    %cst_120 = arith.constant dense<0.000000e+00> : vector<1x10xf32>
    %130 = tpu.matmul %128, %129, %cst_120 {dimension_numbers = #tpu.dot_dimension_numbers<[1], [0], [0], [1], [0, 0, 1, 1], [], []>} : vector<1x60xf32>, vector<60x10xf32>, vector<1x10xf32> -> vector<1x10xf32>
    %c0_121 = arith.constant 0 : index
    %c0_122 = arith.constant 0 : index
    %131 = vector.load %arg15[%c0_121, %c0_122] : memref<1x10xf32, #tpu.memory_space<vmem>>, vector<1x10xf32>
    %132 = arith.addf %130, %131 : vector<1x10xf32>
    %cst_123 = arith.constant 0.000000e+00 : f32
    %133 = vector.broadcast %cst_123 : f32 to vector<1x10xf32>
    %134 = arith.maximumf %132, %133 : vector<1x10xf32>
    %c0_124 = arith.constant 0 : index
    %c0_125 = arith.constant 0 : index
    %c0_126 = arith.constant 0 : index
    %135 = vector.load %arg16[%c0_124, %c0_125, %c0_126] : memref<1x1x10xf32, #tpu.memory_space<vmem>>, vector<1x1x10xf32>
    %136 = vector.shape_cast %135 : vector<1x1x10xf32> to vector<1x10xf32>
    %137 = vector.shape_cast %134 : vector<1x10xf32> to vector<1x1x10xf32>
    tpu.vector_store %arg16[%c0_124, %c0_125, %c0_126], %137 {strides = array<i32>} : memref<1x1x10xf32, #tpu.memory_space<vmem>>, vector<1x1x10xf32>,
    return
  }
  func.func @transform_0(%arg0: i32) -> (i32, i32, i32) {
    %c0_i32 = arith.constant 0 : i32
    %c0_i32_0 = arith.constant 0 : i32
    %c0_i32_1 = arith.constant 0 : i32
    return %arg0, %c0_i32, %c0_i32_0 : i32, i32, i32
  }
  func.func @transform_1(%arg0: i32) -> (i32, i32, i32) {
    %c0_i32 = arith.constant 0 : i32
    %c0_i32_0 = arith.constant 0 : i32
    %c0_i32_1 = arith.constant 0 : i32
    %c0_i32_2 = arith.constant 0 : i32
    return %c0_i32, %c0_i32_0, %c0_i32_1 : i32, i32, i32
  }
  func.func @transform_2(%arg0: i32) -> (i32, i32) {
    %c0_i32 = arith.constant 0 : i32
    %c0_i32_0 = arith.constant 0 : i32
    %c0_i32_1 = arith.constant 0 : i32
    return %c0_i32, %c0_i32_0 : i32, i32
  }
  func.func @transform_3(%arg0: i32) -> (i32, i32, i32) {
    %c0_i32 = arith.constant 0 : i32
    %c0_i32_0 = arith.constant 0 : i32
    %c0_i32_1 = arith.constant 0 : i32
    %c0_i32_2 = arith.constant 0 : i32
    return %c0_i32, %c0_i32_0, %c0_i32_1 : i32, i32, i32
  }
  func.func @transform_4(%arg0: i32) -> (i32, i32, i32) {
    %c0_i32 = arith.constant 0 : i32
    %c0_i32_0 = arith.constant 0 : i32
    %c0_i32_1 = arith.constant 0 : i32
    %c0_i32_2 = arith.constant 0 : i32
    return %c0_i32, %c0_i32_0, %c0_i32_1 : i32, i32, i32
  }
  func.func @transform_5(%arg0: i32) -> (i32, i32, i32) {
    %c0_i32 = arith.constant 0 : i32
    %c0_i32_0 = arith.constant 0 : i32
    %c0_i32_1 = arith.constant 0 : i32
    %c0_i32_2 = arith.constant 0 : i32
    return %c0_i32, %c0_i32_0, %c0_i32_1 : i32, i32, i32
  }
  func.func @transform_6(%arg0: i32) -> (i32, i32) {
    %c0_i32 = arith.constant 0 : i32
    %c0_i32_0 = arith.constant 0 : i32
    %c0_i32_1 = arith.constant 0 : i32
    return %c0_i32, %c0_i32_0 : i32, i32
  }
  func.func @transform_7(%arg0: i32) -> (i32, i32, i32) {
    %c0_i32 = arith.constant 0 : i32
    %c0_i32_0 = arith.constant 0 : i32
    %c0_i32_1 = arith.constant 0 : i32
    %c0_i32_2 = arith.constant 0 : i32
    return %c0_i32, %c0_i32_0, %c0_i32_1 : i32, i32, i32
  }
  func.func @transform_8(%arg0: i32) -> (i32, i32, i32) {
    %c0_i32 = arith.constant 0 : i32
    %c0_i32_0 = arith.constant 0 : i32
    %c0_i32_1 = arith.constant 0 : i32
    %c0_i32_2 = arith.constant 0 : i32
    return %c0_i32, %c0_i32_0, %c0_i32_1 : i32, i32, i32
  }
  func.func @transform_9(%arg0: i32) -> (i32, i32, i32) {
    %c0_i32 = arith.constant 0 : i32
    %c0_i32_0 = arith.constant 0 : i32
    %c0_i32_1 = arith.constant 0 : i32
    %c0_i32_2 = arith.constant 0 : i32
    return %c0_i32, %c0_i32_0, %c0_i32_1 : i32, i32, i32
  }
  func.func @transform_10(%arg0: i32) -> (i32, i32) {
    %c0_i32 = arith.constant 0 : i32
    %c0_i32_0 = arith.constant 0 : i32
    %c0_i32_1 = arith.constant 0 : i32
    return %c0_i32, %c0_i32_0 : i32, i32
  }
  func.func @transform_11(%arg0: i32) -> (i32, i32) {
    %c0_i32 = arith.constant 0 : i32
    %c0_i32_0 = arith.constant 0 : i32
    %c0_i32_1 = arith.constant 0 : i32
    return %c0_i32, %c0_i32_0 : i32, i32
  }
  func.func @transform_12(%arg0: i32) -> (i32, i32) {
    %c0_i32 = arith.constant 0 : i32
    %c0_i32_0 = arith.constant 0 : i32
    %c0_i32_1 = arith.constant 0 : i32
    return %c0_i32, %c0_i32_0 : i32, i32
  }
  func.func @transform_13(%arg0: i32) -> (i32, i32) {
    %c0_i32 = arith.constant 0 : i32
    %c0_i32_0 = arith.constant 0 : i32
    %c0_i32_1 = arith.constant 0 : i32
    return %c0_i32, %c0_i32_0 : i32, i32
  }
  func.func @transform_14(%arg0: i32) -> (i32, i32) {
    %c0_i32 = arith.constant 0 : i32
    %c0_i32_0 = arith.constant 0 : i32
    %c0_i32_1 = arith.constant 0 : i32
    return %c0_i32, %c0_i32_0 : i32, i32
  }
  func.func @transform_15(%arg0: i32) -> (i32, i32, i32) {
    %c0_i32 = arith.constant 0 : i32
    %c0_i32_0 = arith.constant 0 : i32
    %c0_i32_1 = arith.constant 0 : i32
    return %arg0, %c0_i32, %c0_i32_0 : i32, i32, i32
  }
}

</mosaic_0001>

<llo_original>
// kernel: net_forward.1
$region0: #{net_forward.1}
  #allocation0 [shape = 'u32[]', space=smem, size = 0x4, offset = 0x4, fixed_abs, tag = 'smem constant byte address 0x4 - core index']
  #allocation1 [shape = 'u32[144,128]{1,0:T(1,128)}', space=vmem, size = 0x12000, scoped, tag = 'internal scratch']
  %s0 = inlined_call_operand.vmem [shape: f32[2,32,32], index: 0, kind: input, shape index: {}]
  %s1 = inlined_call_operand.vmem [shape: f32[5,32,224], index: 1, kind: input, shape index: {}]
  %s2 = inlined_call_operand.vmem [shape: f32[1,224], index: 2, kind: input, shape index: {}]
  %s3 = inlined_call_operand.vmem [shape: f32[2,14,28], index: 3, kind: input, shape index: {}]
  %s4 = inlined_call_operand.vmem [shape: f32[2,224,112], index: 4, kind: input, shape index: {}]
  %s5 = inlined_call_operand.vmem [shape: f32[5,112,160], index: 5, kind: input, shape index: {}]
  %s6 = inlined_call_operand.vmem [shape: f32[1,160], index: 6, kind: input, shape index: {}]
  %s7 = inlined_call_operand.vmem [shape: f32[2,5,10], index: 7, kind: input, shape index: {}]
  %s8 = inlined_call_operand.vmem [shape: f32[2,160,80], index: 8, kind: input, shape index: {}]
  %s9 = inlined_call_operand.vmem [shape: f32[5,80,120], index: 9, kind: input, shape index: {}]
  %s10 = inlined_call_operand.vmem [shape: f32[1,120], index: 10, kind: input, shape index: {}]
  %s11 = inlined_call_operand.vmem [shape: f32[120,60], index: 11, kind: input, shape index: {}]
  %s12 = inlined_call_operand.vmem [shape: f32[1,60], index: 12, kind: input, shape index: {}]
  %s13 = inlined_call_operand.vmem [shape: f32[60,10], index: 13, kind: input, shape index: {}]
  %s14 = inlined_call_operand.vmem [shape: f32[1,10], index: 14, kind: input, shape index: {}]
  %s15 = inlined_call_operand.hbm [shape: f32[2,1,10], index: 15, kind: output, shape index: {}]
  %s16 = sld [smem:[#allocation0]]
  $region93: #{net_forward.1} parent=0
    _
  %s18 = ssub.s32 1, %s16
  %s19 = scalar_select 0, %s18, %s16
  $region1: #{net_forward.1} parent=0
    #allocation2 [shape = 'u8[1024]{0}', space=vmem, size = 0x400, scoped, tag = 'output window, operand 0']
    #allocation3 [shape = 's32[2]{0}', space=sflag, size = 0x8, scoped, tag = 'scoped memory for net_forward.1']
    %20 = vsyncpa [#allocation3], 0
    %s21 = scalar_lea.sflag [#allocation3], 1
    %22 = vsyncpa %s21, 0
    loop: start=0, step=1, limit=4
    $region2: #{net_forward.1} parent=1 // loop_pre_header
      _
    $region3: #{net_forward.1} parent=1 // loop_header
      %s24 = sphi 0, %s28
      %p25 = scmp.ge.s32.totalorder %s24, 4
      %s34 = sphi 0, %s36
      %s37 = sphi 0, %s34
      %s38 = sphi 0, %s37
      %s54 = sphi 0, %s38
      %s58 = sphi 0, %s58
      %s60 = sphi 0, %s58
      %s61 = sphi 0, %s60
      %s75 = sphi 0, %s61
      %s79 = sphi 0, %s79
      %s81 = sphi 0, %s79
      %s82 = sphi 0, %s81
      %s96 = sphi 0, %s82
      %s100 = sphi 0, %s100
      %s102 = sphi 0, %s100
      %s103 = sphi 0, %s102
      %s117 = sphi 0, %s103
      %s121 = sphi 0, %s121
      %s123 = sphi 0, %s121
      %s124 = sphi 0, %s123
      %s138 = sphi 0, %s124
      %s142 = sphi 0, %s142
      %s144 = sphi 0, %s142
      %s145 = sphi 0, %s144
      %s159 = sphi 0, %s145
      %s163 = sphi 0, %s163
      %s165 = sphi 0, %s163
      %s166 = sphi 0, %s165
      %s180 = sphi 0, %s166
      %s184 = sphi 0, %s184
      %s186 = sphi 0, %s184
      %s187 = sphi 0, %s186
      %s201 = sphi 0, %s187
      %s205 = sphi 0, %s205
      %s207 = sphi 0, %s205
      %s208 = sphi 0, %s207
      %s222 = sphi 0, %s208
      %s226 = sphi 0, %s226
      %s228 = sphi 0, %s226
      %s229 = sphi 0, %s228
      %s243 = sphi 0, %s229
      %s247 = sphi 0, %s247
      %s249 = sphi 0, %s247
      %s250 = sphi 0, %s249
      %s264 = sphi 0, %s250
      %s268 = sphi 0, %s268
      %s270 = sphi 0, %s268
      %s271 = sphi 0, %s270
      %s285 = sphi 0, %s271
      %s289 = sphi 0, %s289
      %s291 = sphi 0, %s289
      %s292 = sphi 0, %s291
      %s306 = sphi 0, %s292
      %s310 = sphi 0, %s310
      %s312 = sphi 0, %s310
      %s313 = sphi 0, %s312
      %s327 = sphi 0, %s313
      %s331 = sphi 0, %s331
      %s333 = sphi 0, %s331
      %s334 = sphi 0, %s333
      %s348 = sphi 0, %s334
      %s354 = sphi 0, %s356
      %s357 = sphi 0, %s354
      %s358 = sphi 0, %s357
      %s374 = sphi 0, %s358
    $region4: #{net_forward.1} parent=1 // loop_header_branch
      %27 = sbr.rel (%p25) target = $region8
    $region5: #{net_forward.1} parent=1 // loop_body
      %s29 = ssub.s32 %s24, 1
      %s30 = ssub.s32 %s24, 2
      %s31 = sadd.s32 %s24, 1
      %s32 = ssub.s32 %s24, %s31
      %p33 = scmp.eq.s32.totalorder %s32, 0
      %s35 = sadd.s32 %s34, 1
      %s36 = scalar_select %p33, %s34, %s35
      %p39 = pneg %p33
      %p40 = scmp.eq.s32.totalorder %s24, 1
      %p41 = por %p39, %p40
      %p42 = scmp.ne.s32.totalorder %s34, %s37
      %p43 = scmp.eq.s32.totalorder %s24, 0
      %p44 = por %p42, %p43
      %p45 = scmp.ne.s32.totalorder %s34, %s37
      %p46 = scmp.eq.s32.totalorder %s29, 1
      %p47 = por %p45, %p46
      %p48 = scmp.ne.s32.totalorder %s37, %s38
      %p49 = scmp.eq.s32.totalorder %s29, 0
      %p50 = por %p48, %p49
      %p51 = scmp.ne.s32.totalorder %s37, %s38
      %p52 = scmp.eq.s32.totalorder %s30, 1
      %p53 = por %p51, %p52
      %p55 = scmp.ne.s32.totalorder %s38, %s54
      %p56 = scmp.eq.s32.totalorder %s30, 0
      %p57 = por %p55, %p56
      %s59 = sadd.s32 %s58, 1
      %p62 = scmp.eq.s32.totalorder %s24, 1
      %p63 = scmp.ne.s32.totalorder %s58, %s60
      %p64 = scmp.eq.s32.totalorder %s24, 0
      %p65 = por %p63, %p64
      %p66 = scmp.ne.s32.totalorder %s58, %s60
      %p67 = scmp.eq.s32.totalorder %s29, 1
      %p68 = por %p66, %p67
      %p69 = scmp.ne.s32.totalorder %s60, %s61
      %p70 = scmp.eq.s32.totalorder %s29, 0
      %p71 = por %p69, %p70
      %p72 = scmp.ne.s32.totalorder %s60, %s61
      %p73 = scmp.eq.s32.totalorder %s30, 1
      %p74 = por %p72, %p73
      %p76 = scmp.ne.s32.totalorder %s61, %s75
      %p77 = scmp.eq.s32.totalorder %s30, 0
      %p78 = por %p76, %p77
      %s80 = sadd.s32 %s79, 1
      %p83 = scmp.eq.s32.totalorder %s24, 1
      %p84 = scmp.ne.s32.totalorder %s79, %s81
      %p85 = scmp.eq.s32.totalorder %s24, 0
      %p86 = por %p84, %p85
      %p87 = scmp.ne.s32.totalorder %s79, %s81
      %p88 = scmp.eq.s32.totalorder %s29, 1
      %p89 = por %p87, %p88
      %p90 = scmp.ne.s32.totalorder %s81, %s82
      %p91 = scmp.eq.s32.totalorder %s29, 0
      %p92 = por %p90, %p91
      %p93 = scmp.ne.s32.totalorder %s81, %s82
      %p94 = scmp.eq.s32.totalorder %s30, 1
      %p95 = por %p93, %p94
      %p97 = scmp.ne.s32.totalorder %s82, %s96
      %p98 = scmp.eq.s32.totalorder %s30, 0
      %p99 = por %p97, %p98
      %s101 = sadd.s32 %s100, 1
      %p104 = scmp.eq.s32.totalorder %s24, 1
      %p105 = scmp.ne.s32.totalorder %s100, %s102
      %p106 = scmp.eq.s32.totalorder %s24, 0
      %p107 = por %p105, %p106
      %p108 = scmp.ne.s32.totalorder %s100, %s102
      %p109 = scmp.eq.s32.totalorder %s29, 1
      %p110 = por %p108, %p109
      %p111 = scmp.ne.s32.totalorder %s102, %s103
      %p112 = scmp.eq.s32.totalorder %s29, 0
      %p113 = por %p111, %p112
      %p114 = scmp.ne.s32.totalorder %s102, %s103
      %p115 = scmp.eq.s32.totalorder %s30, 1
      %p116 = por %p114, %p115
      %p118 = scmp.ne.s32.totalorder %s103, %s117
      %p119 = scmp.eq.s32.totalorder %s30, 0
      %p120 = por %p118, %p119
      %s122 = sadd.s32 %s121, 1
      %p125 = scmp.eq.s32.totalorder %s24, 1
      %p126 = scmp.ne.s32.totalorder %s121, %s123
      %p127 = scmp.eq.s32.totalorder %s24, 0
      %p128 = por %p126, %p127
      %p129 = scmp.ne.s32.totalorder %s121, %s123
      %p130 = scmp.eq.s32.totalorder %s29, 1
      %p131 = por %p129, %p130
      %p132 = scmp.ne.s32.totalorder %s123, %s124
      %p133 = scmp.eq.s32.totalorder %s29, 0
      %p134 = por %p132, %p133
      %p135 = scmp.ne.s32.totalorder %s123, %s124
      %p136 = scmp.eq.s32.totalorder %s30, 1
      %p137 = por %p135, %p136
      %p139 = scmp.ne.s32.totalorder %s124, %s138
      %p140 = scmp.eq.s32.totalorder %s30, 0
      %p141 = por %p139, %p140
      %s143 = sadd.s32 %s142, 1
      %p146 = scmp.eq.s32.totalorder %s24, 1
      %p147 = scmp.ne.s32.totalorder %s142, %s144
      %p148 = scmp.eq.s32.totalorder %s24, 0
      %p149 = por %p147, %p148
      %p150 = scmp.ne.s32.totalorder %s142, %s144
      %p151 = scmp.eq.s32.totalorder %s29, 1
      %p152 = por %p150, %p151
      %p153 = scmp.ne.s32.totalorder %s144, %s145
      %p154 = scmp.eq.s32.totalorder %s29, 0
      %p155 = por %p153, %p154
      %p156 = scmp.ne.s32.totalorder %s144, %s145
      %p157 = scmp.eq.s32.totalorder %s30, 1
      %p158 = por %p156, %p157
      %p160 = scmp.ne.s32.totalorder %s145, %s159
      %p161 = scmp.eq.s32.totalorder %s30, 0
      %p162 = por %p160, %p161
      %s164 = sadd.s32 %s163, 1
      %p167 = scmp.eq.s32.totalorder %s24, 1
      %p168 = scmp.ne.s32.totalorder %s163, %s165
      %p169 = scmp.eq.s32.totalorder %s24, 0
      %p170 = por %p168, %p169
      %p171 = scmp.ne.s32.totalorder %s163, %s165
      %p172 = scmp.eq.s32.totalorder %s29, 1
      %p173 = por %p171, %p172
      %p174 = scmp.ne.s32.totalorder %s165, %s166
      %p175 = scmp.eq.s32.totalorder %s29, 0
      %p176 = por %p174, %p175
      %p177 = scmp.ne.s32.totalorder %s165, %s166
      %p178 = scmp.eq.s32.totalorder %s30, 1
      %p179 = por %p177, %p178
      %p181 = scmp.ne.s32.totalorder %s166, %s180
      %p182 = scmp.eq.s32.totalorder %s30, 0
      %p183 = por %p181, %p182
      %s185 = sadd.s32 %s184, 1
      %p188 = scmp.eq.s32.totalorder %s24, 1
      %p189 = scmp.ne.s32.totalorder %s184, %s186
      %p190 = scmp.eq.s32.totalorder %s24, 0
      %p191 = por %p189, %p190
      %p192 = scmp.ne.s32.totalorder %s184, %s186
      %p193 = scmp.eq.s32.totalorder %s29, 1
      %p194 = por %p192, %p193
      %p195 = scmp.ne.s32.totalorder %s186, %s187
      %p196 = scmp.eq.s32.totalorder %s29, 0
      %p197 = por %p195, %p196
      %p198 = scmp.ne.s32.totalorder %s186, %s187
      %p199 = scmp.eq.s32.totalorder %s30, 1
      %p200 = por %p198, %p199
      %p202 = scmp.ne.s32.totalorder %s187, %s201
      %p203 = scmp.eq.s32.totalorder %s30, 0
      %p204 = por %p202, %p203
      %s206 = sadd.s32 %s205, 1
      %p209 = scmp.eq.s32.totalorder %s24, 1
      %p210 = scmp.ne.s32.totalorder %s205, %s207
      %p211 = scmp.eq.s32.totalorder %s24, 0
      %p212 = por %p210, %p211
      %p213 = scmp.ne.s32.totalorder %s205, %s207
      %p214 = scmp.eq.s32.totalorder %s29, 1
      %p215 = por %p213, %p214
      %p216 = scmp.ne.s32.totalorder %s207, %s208
      %p217 = scmp.eq.s32.totalorder %s29, 0
      %p218 = por %p216, %p217
      %p219 = scmp.ne.s32.totalorder %s207, %s208
      %p220 = scmp.eq.s32.totalorder %s30, 1
      %p221 = por %p219, %p220
      %p223 = scmp.ne.s32.totalorder %s208, %s222
      %p224 = scmp.eq.s32.totalorder %s30, 0
      %p225 = por %p223, %p224
      %s227 = sadd.s32 %s226, 1
      %p230 = scmp.eq.s32.totalorder %s24, 1
      %p231 = scmp.ne.s32.totalorder %s226, %s228
      %p232 = scmp.eq.s32.totalorder %s24, 0
      %p233 = por %p231, %p232
      %p234 = scmp.ne.s32.totalorder %s226, %s228
      %p235 = scmp.eq.s32.totalorder %s29, 1
      %p236 = por %p234, %p235
      %p237 = scmp.ne.s32.totalorder %s228, %s229
      %p238 = scmp.eq.s32.totalorder %s29, 0
      %p239 = por %p237, %p238
      %p240 = scmp.ne.s32.totalorder %s228, %s229
      %p241 = scmp.eq.s32.totalorder %s30, 1
      %p242 = por %p240, %p241
      %p244 = scmp.ne.s32.totalorder %s229, %s243
      %p245 = scmp.eq.s32.totalorder %s30, 0
      %p246 = por %p244, %p245
      %s248 = sadd.s32 %s247, 1
      %p251 = scmp.eq.s32.totalorder %s24, 1
      %p252 = scmp.ne.s32.totalorder %s247, %s249
      %p253 = scmp.eq.s32.totalorder %s24, 0
      %p254 = por %p252, %p253
      %p255 = scmp.ne.s32.totalorder %s247, %s249
      %p256 = scmp.eq.s32.totalorder %s29, 1
      %p257 = por %p255, %p256
      %p258 = scmp.ne.s32.totalorder %s249, %s250
      %p259 = scmp.eq.s32.totalorder %s29, 0
      %p260 = por %p258, %p259
      %p261 = scmp.ne.s32.totalorder %s249, %s250
      %p262 = scmp.eq.s32.totalorder %s30, 1
      %p263 = por %p261, %p262
      %p265 = scmp.ne.s32.totalorder %s250, %s264
      %p266 = scmp.eq.s32.totalorder %s30, 0
      %p267 = por %p265, %p266
      %s269 = sadd.s32 %s268, 1
      %p272 = scmp.eq.s32.totalorder %s24, 1
      %p273 = scmp.ne.s32.totalorder %s268, %s270
      %p274 = scmp.eq.s32.totalorder %s24, 0
      %p275 = por %p273, %p274
      %p276 = scmp.ne.s32.totalorder %s268, %s270
      %p277 = scmp.eq.s32.totalorder %s29, 1
      %p278 = por %p276, %p277
      %p279 = scmp.ne.s32.totalorder %s270, %s271
      %p280 = scmp.eq.s32.totalorder %s29, 0
      %p281 = por %p279, %p280
      %p282 = scmp.ne.s32.totalorder %s270, %s271
      %p283 = scmp.eq.s32.totalorder %s30, 1
      %p284 = por %p282, %p283
      %p286 = scmp.ne.s32.totalorder %s271, %s285
      %p287 = scmp.eq.s32.totalorder %s30, 0
      %p288 = por %p286, %p287
      %s290 = sadd.s32 %s289, 1
      %p293 = scmp.eq.s32.totalorder %s24, 1
      %p294 = scmp.ne.s32.totalorder %s289, %s291
      %p295 = scmp.eq.s32.totalorder %s24, 0
      %p296 = por %p294, %p295
      %p297 = scmp.ne.s32.totalorder %s289, %s291
      %p298 = scmp.eq.s32.totalorder %s29, 1
      %p299 = por %p297, %p298
      %p300 = scmp.ne.s32.totalorder %s291, %s292
      %p301 = scmp.eq.s32.totalorder %s29, 0
      %p302 = por %p300, %p301
      %p303 = scmp.ne.s32.totalorder %s291, %s292
      %p304 = scmp.eq.s32.totalorder %s30, 1
      %p305 = por %p303, %p304
      %p307 = scmp.ne.s32.totalorder %s292, %s306
      %p308 = scmp.eq.s32.totalorder %s30, 0
      %p309 = por %p307, %p308
      %s311 = sadd.s32 %s310, 1
      %p314 = scmp.eq.s32.totalorder %s24, 1
      %p315 = scmp.ne.s32.totalorder %s310, %s312
      %p316 = scmp.eq.s32.totalorder %s24, 0
      %p317 = por %p315, %p316
      %p318 = scmp.ne.s32.totalorder %s310, %s312
      %p319 = scmp.eq.s32.totalorder %s29, 1
      %p320 = por %p318, %p319
      %p321 = scmp.ne.s32.totalorder %s312, %s313
      %p322 = scmp.eq.s32.totalorder %s29, 0
      %p323 = por %p321, %p322
      %p324 = scmp.ne.s32.totalorder %s312, %s313
      %p325 = scmp.eq.s32.totalorder %s30, 1
      %p326 = por %p324, %p325
      %p328 = scmp.ne.s32.totalorder %s313, %s327
      %p329 = scmp.eq.s32.totalorder %s30, 0
      %p330 = por %p328, %p329
      %s332 = sadd.s32 %s331, 1
      %p335 = scmp.eq.s32.totalorder %s24, 1
      %p336 = scmp.ne.s32.totalorder %s331, %s333
      %p337 = scmp.eq.s32.totalorder %s24, 0
      %p338 = por %p336, %p337
      %p339 = scmp.ne.s32.totalorder %s331, %s333
      %p340 = scmp.eq.s32.totalorder %s29, 1
      %p341 = por %p339, %p340
      %p342 = scmp.ne.s32.totalorder %s333, %s334
      %p343 = scmp.eq.s32.totalorder %s29, 0
      %p344 = por %p342, %p343
      %p345 = scmp.ne.s32.totalorder %s333, %s334
      %p346 = scmp.eq.s32.totalorder %s30, 1
      %p347 = por %p345, %p346
      %p349 = scmp.ne.s32.totalorder %s334, %s348
      %p350 = scmp.eq.s32.totalorder %s30, 0
      %p351 = por %p349, %p350
      %s352 = ssub.s32 %s24, %s31
      %p353 = scmp.eq.s32.totalorder %s352, 0
      %s355 = sadd.s32 %s354, 1
      %s356 = scalar_select %p353, %s354, %s355
      %p359 = pneg %p353
      %p360 = scmp.eq.s32.totalorder %s24, 1
      %p361 = por %p359, %p360
      %p362 = scmp.ne.s32.totalorder %s354, %s357
      %p363 = scmp.eq.s32.totalorder %s24, 0
      %p364 = por %p362, %p363
      %p365 = scmp.ne.s32.totalorder %s354, %s357
      %p366 = scmp.eq.s32.totalorder %s29, 1
      %p367 = por %p365, %p366
      %p368 = scmp.ne.s32.totalorder %s357, %s358
      %p369 = scmp.eq.s32.totalorder %s29, 0
      %p370 = por %p368, %p369
      %p371 = scmp.ne.s32.totalorder %s357, %s358
      %p372 = scmp.eq.s32.totalorder %s30, 1
      %p373 = por %p371, %p372
      %p375 = scmp.ne.s32.totalorder %s358, %s374
      %p376 = scmp.eq.s32.totalorder %s30, 0
      %p377 = por %p375, %p376
      %p378 = scmp.le.s32.totalorder 1, %s24
      %p379 = scmp.lt.s32.totalorder %s24, 3
      %p380 = pnand %p378, %p379
      %p381 = pneg %p380
      // Predicated region
      $region9: #{net_forward.1} parent=5 // pred_check
        _
      $region10: #{net_forward.1} parent=5 // pred_check_branch
        %383 = sbr.rel (%p380) target = $region12
      $region11: #{net_forward.1} parent=5 // pred_region
        %s384 = ssub.s32 %s24, 1
        // Predicated region
        $region13: #{net_forward.1} parent=11 // pred_check
          %p385 = pneg %p71
        $region14: #{net_forward.1} parent=11 // pred_check_branch
          %387 = sbr.rel (%p385) target = $region16
        $region15: #{net_forward.1} parent=11 // pred_region
          _
        $region16: #{net_forward.1} parent=11 // pred_fallthru
          _
        // Predicated region
        $region17: #{net_forward.1} parent=11 // pred_check
          %p388 = pneg %p92
        $region18: #{net_forward.1} parent=11 // pred_check_branch
          %390 = sbr.rel (%p388) target = $region20
        $region19: #{net_forward.1} parent=11 // pred_region
          _
        $region20: #{net_forward.1} parent=11 // pred_fallthru
          _
        // Predicated region
        $region21: #{net_forward.1} parent=11 // pred_check
          %p391 = pneg %p113
        $region22: #{net_forward.1} parent=11 // pred_check_branch
          %393 = sbr.rel (%p391) target = $region24
        $region23: #{net_forward.1} parent=11 // pred_region
          _
        $region24: #{net_forward.1} parent=11 // pred_fallthru
          _
        // Predicated region
        $region25: #{net_forward.1} parent=11 // pred_check
          %p394 = pneg %p134
        $region26: #{net_forward.1} parent=11 // pred_check_branch
          %396 = sbr.rel (%p394) target = $region28
        $region27: #{net_forward.1} parent=11 // pred_region
          _
        $region28: #{net_forward.1} parent=11 // pred_fallthru
          _
        // Predicated region
        $region29: #{net_forward.1} parent=11 // pred_check
          %p397 = pneg %p155
        $region30: #{net_forward.1} parent=11 // pred_check_branch
          %399 = sbr.rel (%p397) target = $region32
        $region31: #{net_forward.1} parent=11 // pred_region
          _
        $region32: #{net_forward.1} parent=11 // pred_fallthru
          _
        // Predicated region
        $region33: #{net_forward.1} parent=11 // pred_check
          %p400 = pneg %p176
        $region34: #{net_forward.1} parent=11 // pred_check_branch
          %402 = sbr.rel (%p400) target = $region36
        $region35: #{net_forward.1} parent=11 // pred_region
          _
        $region36: #{net_forward.1} parent=11 // pred_fallthru
          _
        // Predicated region
        $region37: #{net_forward.1} parent=11 // pred_check
          %p403 = pneg %p197
        $region38: #{net_forward.1} parent=11 // pred_check_branch
          %405 = sbr.rel (%p403) target = $region40
        $region39: #{net_forward.1} parent=11 // pred_region
          _
        $region40: #{net_forward.1} parent=11 // pred_fallthru
          _
        // Predicated region
        $region41: #{net_forward.1} parent=11 // pred_check
          %p406 = pneg %p218
        $region42: #{net_forward.1} parent=11 // pred_check_branch
          %408 = sbr.rel (%p406) target = $region44
        $region43: #{net_forward.1} parent=11 // pred_region
          _
        $region44: #{net_forward.1} parent=11 // pred_fallthru
          _
        // Predicated region
        $region45: #{net_forward.1} parent=11 // pred_check
          %p409 = pneg %p239
        $region46: #{net_forward.1} parent=11 // pred_check_branch
          %411 = sbr.rel (%p409) target = $region48
        $region47: #{net_forward.1} parent=11 // pred_region
          _
        $region48: #{net_forward.1} parent=11 // pred_fallthru
          _
        // Predicated region
        $region49: #{net_forward.1} parent=11 // pred_check
          %p412 = pneg %p260
        $region50: #{net_forward.1} parent=11 // pred_check_branch
          %414 = sbr.rel (%p412) target = $region52
        $region51: #{net_forward.1} parent=11 // pred_region
          _
        $region52: #{net_forward.1} parent=11 // pred_fallthru
          _
        // Predicated region
        $region53: #{net_forward.1} parent=11 // pred_check
          %p415 = pneg %p281
        $region54: #{net_forward.1} parent=11 // pred_check_branch
          %417 = sbr.rel (%p415) target = $region56
        $region55: #{net_forward.1} parent=11 // pred_region
          _
        $region56: #{net_forward.1} parent=11 // pred_fallthru
          _
        // Predicated region
        $region57: #{net_forward.1} parent=11 // pred_check
          %p418 = pneg %p302
        $region58: #{net_forward.1} parent=11 // pred_check_branch
          %420 = sbr.rel (%p418) target = $region60
        $region59: #{net_forward.1} parent=11 // pred_region
          _
        $region60: #{net_forward.1} parent=11 // pred_fallthru
          _
        // Predicated region
        $region61: #{net_forward.1} parent=11 // pred_check
          %p421 = pneg %p323
        $region62: #{net_forward.1} parent=11 // pred_check_branch
          %423 = sbr.rel (%p421) target = $region64
        $region63: #{net_forward.1} parent=11 // pred_region
          _
        $region64: #{net_forward.1} parent=11 // pred_fallthru
          _
        // Predicated region
        $region65: #{net_forward.1} parent=11 // pred_check
          %p424 = pneg %p344
        $region66: #{net_forward.1} parent=11 // pred_check_branch
          %426 = sbr.rel (%p424) target = $region68
        $region67: #{net_forward.1} parent=11 // pred_region
          _
        $region68: #{net_forward.1} parent=11 // pred_fallthru
          _
      $region12: #{net_forward.1} parent=5 // pred_fallthru
        _
      %p427 = scmp.lt.s32.totalorder %s24, 2
      // Predicated region
      $region69: #{net_forward.1} parent=5 // pred_check
        %p428 = pneg %p427
      $region70: #{net_forward.1} parent=5 // pred_check_branch
        %430 = sbr.rel (%p428) target = $region72
      $region71: #{net_forward.1} parent=5 // pred_region
        // Predicated region
        $region73: #{net_forward.1} parent=71 // pred_check
          %p431 = pneg %p44
        $region74: #{net_forward.1} parent=71 // pred_check_branch
          %433 = sbr.rel (%p431) target = $region76
        $region75: #{net_forward.1} parent=71 // pred_region
          %p434 = scmp.lt.s32.totalorder %s24, 1
          %s435 = scalar_select %p434, %s24, 1
          %s436 = smul.addr %s435, 4
          %s437 = smul.addr %s436, 8
          %s438 = scalar_lea.vmem %s0, %s437
        $region76: #{net_forward.1} parent=71 // pred_fallthru
          _
      $region72: #{net_forward.1} parent=5 // pred_fallthru
        _
      %p439 = scmp.le.s32.totalorder 1, %s24
      %p440 = scmp.lt.s32.totalorder %s24, 3
      %p441 = pnand %p439, %p440
      %p442 = pneg %p441
      // Predicated region
      $region77: #{net_forward.1} parent=5 // pred_check
        _
      $region78: #{net_forward.1} parent=5 // pred_check_branch
        %444 = sbr.rel (%p441) target = $region80
      $region79: #{net_forward.1} parent=5 // pred_region
        %s445 = ssub.s32 %s24, 1
        %p446 = scmp.lt.s32.totalorder %s29, 1
        %s447 = scalar_select %p446, %s29, 1
        %s448 = smul.addr %s447, 4
        %s449 = smul.addr %s448, 8
        %s450 = scalar_lea.vmem %s0, %s449
        %p451 = pneg %p50
        %p452 = pneg %p47
        %p453 = pneg %p71
        %p454 = pneg %p68
        %p455 = pneg %p92
        %p456 = pneg %p89
        %p457 = pneg %p113
        %p458 = pneg %p110
        %p459 = pneg %p134
        %p460 = pneg %p131
        %p461 = pneg %p155
        %p462 = pneg %p152
        %p463 = pneg %p176
        %p464 = pneg %p173
        %p465 = pneg %p197
        %p466 = pneg %p194
        %p467 = pneg %p218
        %p468 = pneg %p215
        %p469 = pneg %p239
        %p470 = pneg %p236
        %p471 = pneg %p260
        %p472 = pneg %p257
        %p473 = pneg %p281
        %p474 = pneg %p278
        %p475 = pneg %p302
        %p476 = pneg %p299
        %p477 = pneg %p323
        %p478 = pneg %p320
        %p479 = pneg %p344
        %p480 = pneg %p341
        %p481 = pneg %p370
        %p482 = pneg %p367
        %s483 = sand.u32 %s357, 1
        %s484 = scalar_lea.sflag [#allocation3], %s483
        %s485 = sand.u32 %s357, 1
        %s486 = scalar_lea.vmem [#allocation2], %s485
        %p487 = scmp.lt.s32.totalorder %s29, 1
        %s488 = scalar_select %p487, %s29, 1
        %s489 = smul.addr %s488, 4
        %s490 = smul.addr %s489, 8
        %s491 = scalar_lea.vmem %s0, %s490
        %v492 = vld [vmem:[%s491] sm:$0xff]
        %v493 = vld [vmem:[%s491 + $0x8] sm:$0xff]
        %v494 = vld [vmem:[%s491 + $0x10] sm:$0xff]
        %v495 = vld [vmem:[%s491 + $0x18] sm:$0xf]
        %v496 = vld [vmem:[%s1] sm:$0xff]
        %v497 = vld [vmem:[%s1 + $0x8] sm:$0xff]
        %v498 = vld [vmem:[%s1 + $0x10] sm:$0xff]
        %v499 = vld [vmem:[%s1 + $0x18] sm:$0xff]
        %v500 = vld [vmem:[%s1 + $0x20] sm:$0xff]
        %v501 = vld [vmem:[%s1 + $0x28] sm:$0xff]
        %v502 = vld [vmem:[%s1 + $0x30] sm:$0xff]
        %v503 = vld [vmem:[%s1 + $0x38] sm:$0xff]
        %v504 = vld [vmem:[%s491 + $0x1] sm:$0xff]
        %v505 = vld [vmem:[%s491 + $0x9] sm:$0xff]
        %v506 = vld [vmem:[%s491 + $0x11] sm:$0xff]
        %v507 = vld [vmem:[%s491 + $0x19] sm:$0xf]
        %s508 = scalar_lea.vmem %s1, 64
        %v509 = vld [vmem:[%s508] sm:$0xff]
        %v510 = vld [vmem:[%s508 + $0x8] sm:$0xff]
        %v511 = vld [vmem:[%s508 + $0x10] sm:$0xff]
        %v512 = vld [vmem:[%s508 + $0x18] sm:$0xff]
        %v513 = vld [vmem:[%s508 + $0x20] sm:$0xff]
        %v514 = vld [vmem:[%s508 + $0x28] sm:$0xff]
        %v515 = vld [vmem:[%s508 + $0x30] sm:$0xff]
        %v516 = vld [vmem:[%s508 + $0x38] sm:$0xff]
        %vm517 = vcmask 261120
        %v519 = vsel %vm517, %v504, 0
        %v522 = vsel %vm517, %v505, 0
        %v525 = vsel %vm517, %v506, 0
        %v528 = vsel %vm517, %v507, 0
        %530 = vmatprep.subr.mxu0 %v510
        %531 = vmatpush1.msra.mxu0 %v509
        %532 = vmatprep.subr.mxu0 %v512
        %533 = vmatpush1.msra.mxu0 %v511
        %534 = vmatprep.subr.mxu0 %v514
        %535 = vmatpush1.msra.mxu0 %v513
        %536 = vmatprep.subr.mxu0 %v516
        %537 = vmatpush1.msra.mxu0 %v515
        %538 = vmatprep.subr.mxu0 0.0
        %539 = vmatpush1.msra.mxu0 0.0
        %540 = vmatprep.subr.mxu0 0.0
        %541 = vmatpush1.msra.mxu0 0.0
        %542 = vmatprep.subr.mxu0 0.0
        %543 = vmatpush1.msra.mxu0 0.0
        %544 = vmatprep.subr.mxu0 0.0
        %545 = vmatpush1.msra.mxu0 0.0
        %546 = vmatprep.subr.mxu0 0.0
        %547 = vmatpush1.msra.mxu0 0.0
        %548 = vmatprep.subr.mxu0 0.0
        %549 = vmatpush1.msra.mxu0 0.0
        %550 = vmatprep.subr.mxu0 0.0
        %551 = vmatpush1.msra.mxu0 0.0
        %552 = vmatprep.subr.mxu0 0.0
        %553 = vmatpush1.msra.mxu0 0.0
        %554 = vmatprep.subr.mxu0 0.0
        %555 = vmatpush1.msra.mxu0 0.0
        %556 = vmatprep.subr.mxu0 0.0
        %557 = vmatpush1.msra.mxu0 0.0
        %558 = vmatprep.subr.mxu0 0.0
        %559 = vmatpush1.msra.mxu0 0.0
        %560 = vmatprep.subr.mxu0 0.0
        %561 = vmatpush1.msra.mxu0 0.0
        %562 = vmatprep.subr.mxu0 0.0
        %563 = vmatpush1.msra.mxu0 0.0
        %564 = vmatprep.subr.mxu0 0.0
        %565 = vmatpush1.msra.mxu0 0.0
        %566 = vmatprep.subr.mxu0 0.0
        %567 = vmatpush1.msra.mxu0 0.0
        %568 = vmatprep.subr.mxu0 0.0
        %569 = vmatpush1.msra.mxu0 0.0
        %570 = vmatprep.subr.mxu0 0.0
        %571 = vmatpush1.msra.mxu0 0.0
        %572 = vmatprep.subr.mxu0 0.0
        %573 = vmatpush1.msra.mxu0 0.0
        %574 = vmatprep.subr.mxu0 0.0
        %575 = vmatpush1.msra.mxu0 0.0
        %576 = vmatprep.subr.mxu0 0.0
        %577 = vmatpush1.msra.mxu0 0.0
        %578 = vmatprep.subr.mxu0 0.0
        %579 = vmatpush1.msra.mxu0 0.0
        %580 = vmatprep.subr.mxu0 0.0
        %581 = vmatpush1.msra.mxu0 0.0
        %582 = vmatprep.subr.mxu0 0.0
        %583 = vmatpush1.msra.mxu0 0.0
        %584 = vmatprep.subr.mxu0 0.0
        %585 = vmatpush1.msra.mxu0 0.0
        %586 = vmatprep.subr.mxu0 0.0
        %587 = vmatpush1.msra.mxu0 0.0
        %588 = vmatprep.subr.mxu0 0.0
        %589 = vmatpush1.msra.mxu0 0.0
        %590 = vmatprep.subr.mxu0 0.0
        %591 = vmatpush1.msra.mxu0 0.0
        %592 = vmatprep.subr.mxu0 0.0
        %593 = vmatpush1.msra.mxu0 0.0
        %594 = vmatprep.mubr.f32.mxu0 0.0
        %595 = vmatmul.mubr.f32.gmra.mrb[0].mxu0 %v519
        %v596 = vpop.f32.mrb[0].mxu0
        %v597 = vadd.f32 0.0, %v596
        %v598 = vpop.f32.mrb[0].mxu0
        %v599 = vadd.f32 0.0, %v598
        %600 = vmatprep.mubr.f32.mxu0 0.0
        %601 = vmatmul.mubr.f32.gmra.mrb[0].mxu0 %v522
        %v602 = vpop.f32.mrb[0].mxu0
        %v603 = vadd.f32 0.0, %v602
        %v604 = vpop.f32.mrb[0].mxu0
        %v605 = vadd.f32 0.0, %v604
        %606 = vmatprep.mubr.f32.mxu0 0.0
        %607 = vmatmul.mubr.f32.gmra.mrb[0].mxu0 %v525
        %v608 = vpop.f32.mrb[0].mxu0
        %v609 = vadd.f32 0.0, %v608
        %v610 = vpop.f32.mrb[0].mxu0
        %v611 = vadd.f32 0.0, %v610
        %612 = vmatprep.mubr.f32.mxu0 0.0
        %613 = vmatmul.mubr.f32.gmra.mrb[0].mxu0 %v528
        %v614 = vpop.f32.mrb[0].mxu0
        %v615 = vadd.f32 0.0, %v614
        %v616 = vpop.f32.mrb[0].mxu0
        %v617 = vadd.f32 0.0, %v616
        %618 = vdwg.mxu0
        %v620 = vsel %vm517, %v492, 0
        %v623 = vsel %vm517, %v493, 0
        %v626 = vsel %vm517, %v494, 0
        %v629 = vsel %vm517, %v495, 0
        %631 = vmatprep.subr.mxu0 %v497
        %632 = vmatpush1.msra.mxu0 %v496
        %633 = vmatprep.subr.mxu0 %v499
        %634 = vmatpush1.msra.mxu0 %v498
        %635 = vmatprep.subr.mxu0 %v501
        %636 = vmatpush1.msra.mxu0 %v500
        %637 = vmatprep.subr.mxu0 %v503
        %638 = vmatpush1.msra.mxu0 %v502
        %639 = vmatprep.subr.mxu0 0.0
        %640 = vmatpush1.msra.mxu0 0.0
        %641 = vmatprep.subr.mxu0 0.0
        %642 = vmatpush1.msra.mxu0 0.0
        %643 = vmatprep.subr.mxu0 0.0
        %644 = vmatpush1.msra.mxu0 0.0
        %645 = vmatprep.subr.mxu0 0.0
        %646 = vmatpush1.msra.mxu0 0.0
        %647 = vmatprep.subr.mxu0 0.0
        %648 = vmatpush1.msra.mxu0 0.0
        %649 = vmatprep.subr.mxu0 0.0
        %650 = vmatpush1.msra.mxu0 0.0
        %651 = vmatprep.subr.mxu0 0.0
        %652 = vmatpush1.msra.mxu0 0.0
        %653 = vmatprep.subr.mxu0 0.0
        %654 = vmatpush1.msra.mxu0 0.0
        %655 = vmatprep.subr.mxu0 0.0
        %656 = vmatpush1.msra.mxu0 0.0
        %657 = vmatprep.subr.mxu0 0.0
        %658 = vmatpush1.msra.mxu0 0.0
        %659 = vmatprep.subr.mxu0 0.0
        %660 = vmatpush1.msra.mxu0 0.0
        %661 = vmatprep.subr.mxu0 0.0
        %662 = vmatpush1.msra.mxu0 0.0
        %663 = vmatprep.subr.mxu0 0.0
        %664 = vmatpush1.msra.mxu0 0.0
        %665 = vmatprep.subr.mxu0 0.0
        %666 = vmatpush1.msra.mxu0 0.0
        %667 = vmatprep.subr.mxu0 0.0
        %668 = vmatpush1.msra.mxu0 0.0
        %669 = vmatprep.subr.mxu0 0.0
        %670 = vmatpush1.msra.mxu0 0.0
        %671 = vmatprep.subr.mxu0 0.0
        %672 = vmatpush1.msra.mxu0 0.0
        %673 = vmatprep.subr.mxu0 0.0
        %674 = vmatpush1.msra.mxu0 0.0
        %675 = vmatprep.subr.mxu0 0.0
        %676 = vmatpush1.msra.mxu0 0.0
        %677 = vmatprep.subr.mxu0 0.0
        %678 = vmatpush1.msra.mxu0 0.0
        %679 = vmatprep.subr.mxu0 0.0
        %680 = vmatpush1.msra.mxu0 0.0
        %681 = vmatprep.subr.mxu0 0.0
        %682 = vmatpush1.msra.mxu0 0.0
        %683 = vmatprep.subr.mxu0 0.0
        %684 = vmatpush1.msra.mxu0 0.0
        %685 = vmatprep.subr.mxu0 0.0
        %686 = vmatpush1.msra.mxu0 0.0
        %687 = vmatprep.subr.mxu0 0.0
        %688 = vmatpush1.msra.mxu0 0.0
        %689 = vmatprep.subr.mxu0 0.0
        %690 = vmatpush1.msra.mxu0 0.0
        %691 = vmatprep.subr.mxu0 0.0
        %692 = vmatpush1.msra.mxu0 0.0
        %693 = vmatprep.subr.mxu0 0.0
        %694 = vmatpush1.msra.mxu0 0.0
        %695 = vmatprep.mubr.f32.mxu0 0.0
        %696 = vmatmul.mubr.f32.gmra.mrb[0].mxu0 %v620
        %v697 = vpop.f32.mrb[0].mxu0
        %v698 = vadd.f32 %v597, %v697
        %v699 = vpop.f32.mrb[0].mxu0
        %v700 = vadd.f32 %v599, %v699
        %701 = vmatprep.mubr.f32.mxu0 0.0
        %702 = vmatmul.mubr.f32.gmra.mrb[0].mxu0 %v623
        %v703 = vpop.f32.mrb[0].mxu0
        %v704 = vadd.f32 %v603, %v703
        %v705 = vpop.f32.mrb[0].mxu0
        %v706 = vadd.f32 %v605, %v705
        %707 = vmatprep.mubr.f32.mxu0 0.0
        %708 = vmatmul.mubr.f32.gmra.mrb[0].mxu0 %v626
        %v709 = vpop.f32.mrb[0].mxu0
        %v710 = vadd.f32 %v609, %v709
        %v711 = vpop.f32.mrb[0].mxu0
        %v712 = vadd.f32 %v611, %v711
        %713 = vmatprep.mubr.f32.mxu0 0.0
        %714 = vmatmul.mubr.f32.gmra.mrb[0].mxu0 %v629
        %v715 = vpop.f32.mrb[0].mxu0
        %v716 = vadd.f32 %v615, %v715
        %v717 = vpop.f32.mrb[0].mxu0
        %v718 = vadd.f32 %v617, %v717
        %719 = vdwg.mxu0
        %v720 = vld [vmem:[%s491 + $0x2] sm:$0xff]
        %v721 = vld [vmem:[%s491 + $0xa] sm:$0xff]
        %v722 = vld [vmem:[%s491 + $0x12] sm:$0xff]
        %v723 = vld [vmem:[%s491 + $0x1a] sm:$0xf]
        %s724 = scalar_lea.vmem %s1, 128
        %v725 = vld [vmem:[%s724] sm:$0xff]
        %v726 = vld [vmem:[%s724 + $0x8] sm:$0xff]
        %v727 = vld [vmem:[%s724 + $0x10] sm:$0xff]
        %v728 = vld [vmem:[%s724 + $0x18] sm:$0xff]
        %v729 = vld [vmem:[%s724 + $0x20] sm:$0xff]
        %v730 = vld [vmem:[%s724 + $0x28] sm:$0xff]
        %v731 = vld [vmem:[%s724 + $0x30] sm:$0xff]
        %v732 = vld [vmem:[%s724 + $0x38] sm:$0xff]
        %v734 = vsel %vm517, %v720, 0
        %v737 = vsel %vm517, %v721, 0
        %v740 = vsel %vm517, %v722, 0
        %v743 = vsel %vm517, %v723, 0
        %745 = vmatprep.subr.mxu0 %v726
        %746 = vmatpush1.msra.mxu0 %v725
        %747 = vmatprep.subr.mxu0 %v728
        %748 = vmatpush1.msra.mxu0 %v727
        %749 = vmatprep.subr.mxu0 %v730
        %750 = vmatpush1.msra.mxu0 %v729
        %751 = vmatprep.subr.mxu0 %v732
        %752 = vmatpush1.msra.mxu0 %v731
        %753 = vmatprep.subr.mxu0 0.0
        %754 = vmatpush1.msra.mxu0 0.0
        %755 = vmatprep.subr.mxu0 0.0
        %756 = vmatpush1.msra.mxu0 0.0
        %757 = vmatprep.subr.mxu0 0.0
        %758 = vmatpush1.msra.mxu0 0.0
        %759 = vmatprep.subr.mxu0 0.0
        %760 = vmatpush1.msra.mxu0 0.0
        %761 = vmatprep.subr.mxu0 0.0
        %762 = vmatpush1.msra.mxu0 0.0
        %763 = vmatprep.subr.mxu0 0.0
        %764 = vmatpush1.msra.mxu0 0.0
        %765 = vmatprep.subr.mxu0 0.0
        %766 = vmatpush1.msra.mxu0 0.0
        %767 = vmatprep.subr.mxu0 0.0
        %768 = vmatpush1.msra.mxu0 0.0
        %769 = vmatprep.subr.mxu0 0.0
        %770 = vmatpush1.msra.mxu0 0.0
        %771 = vmatprep.subr.mxu0 0.0
        %772 = vmatpush1.msra.mxu0 0.0
        %773 = vmatprep.subr.mxu0 0.0
        %774 = vmatpush1.msra.mxu0 0.0
        %775 = vmatprep.subr.mxu0 0.0
        %776 = vmatpush1.msra.mxu0 0.0
        %777 = vmatprep.subr.mxu0 0.0
        %778 = vmatpush1.msra.mxu0 0.0
        %779 = vmatprep.subr.mxu0 0.0
        %780 = vmatpush1.msra.mxu0 0.0
        %781 = vmatprep.subr.mxu0 0.0
        %782 = vmatpush1.msra.mxu0 0.0
        %783 = vmatprep.subr.mxu0 0.0
        %784 = vmatpush1.msra.mxu0 0.0
        %785 = vmatprep.subr.mxu0 0.0
        %786 = vmatpush1.msra.mxu0 0.0
        %787 = vmatprep.subr.mxu0 0.0
        %788 = vmatpush1.msra.mxu0 0.0
        %789 = vmatprep.subr.mxu0 0.0
        %790 = vmatpush1.msra.mxu0 0.0
        %791 = vmatprep.subr.mxu0 0.0
        %792 = vmatpush1.msra.mxu0 0.0
        %793 = vmatprep.subr.mxu0 0.0
        %794 = vmatpush1.msra.mxu0 0.0
        %795 = vmatprep.subr.mxu0 0.0
        %796 = vmatpush1.msra.mxu0 0.0
        %797 = vmatprep.subr.mxu0 0.0
        %798 = vmatpush1.msra.mxu0 0.0
        %799 = vmatprep.subr.mxu0 0.0
        %800 = vmatpush1.msra.mxu0 0.0
        %801 = vmatprep.subr.mxu0 0.0
        %802 = vmatpush1.msra.mxu0 0.0
        %803 = vmatprep.subr.mxu0 0.0
        %804 = vmatpush1.msra.mxu0 0.0
        %805 = vmatprep.subr.mxu0 0.0
        %806 = vmatpush1.msra.mxu0 0.0
        %807 = vmatprep.subr.mxu0 0.0
        %808 = vmatpush1.msra.mxu0 0.0
        %809 = vmatprep.mubr.f32.mxu0 0.0
        %810 = vmatmul.mubr.f32.gmra.mrb[0].mxu0 %v734
        %v811 = vpop.f32.mrb[0].mxu0
        %v812 = vadd.f32 0.0, %v811
        %v813 = vpop.f32.mrb[0].mxu0
        %v814 = vadd.f32 0.0, %v813
        %815 = vmatprep.mubr.f32.mxu0 0.0
        %816 = vmatmul.mubr.f32.gmra.mrb[0].mxu0 %v737
        %v817 = vpop.f32.mrb[0].mxu0
        %v818 = vadd.f32 0.0, %v817
        %v819 = vpop.f32.mrb[0].mxu0
        %v820 = vadd.f32 0.0, %v819
        %821 = vmatprep.mubr.f32.mxu0 0.0
        %822 = vmatmul.mubr.f32.gmra.mrb[0].mxu0 %v740
        %v823 = vpop.f32.mrb[0].mxu0
        %v824 = vadd.f32 0.0, %v823
        %v825 = vpop.f32.mrb[0].mxu0
        %v826 = vadd.f32 0.0, %v825
        %827 = vmatprep.mubr.f32.mxu0 0.0
        %828 = vmatmul.mubr.f32.gmra.mrb[0].mxu0 %v743
        %v829 = vpop.f32.mrb[0].mxu0
        %v830 = vadd.f32 0.0, %v829
        %v831 = vpop.f32.mrb[0].mxu0
        %v832 = vadd.f32 0.0, %v831
        %833 = vdwg.mxu0
        %v834 = vadd.f32 %v698, %v812
        %v835 = vadd.f32 %v700, %v814
        %v836 = vadd.f32 %v704, %v818
        %v837 = vadd.f32 %v706, %v820
        %v838 = vadd.f32 %v710, %v824
        %v839 = vadd.f32 %v712, %v826
        %v840 = vadd.f32 %v716, %v830
        %v841 = vadd.f32 %v718, %v832
        %v842 = vld [vmem:[%s491 + $0x3] sm:$0xff]
        %v843 = vld [vmem:[%s491 + $0xb] sm:$0xff]
        %v844 = vld [vmem:[%s491 + $0x13] sm:$0xff]
        %v845 = vld [vmem:[%s491 + $0x1b] sm:$0xf]
        %s846 = scalar_lea.vmem %s1, 192
        %v847 = vld [vmem:[%s846] sm:$0xff]
        %v848 = vld [vmem:[%s846 + $0x8] sm:$0xff]
        %v849 = vld [vmem:[%s846 + $0x10] sm:$0xff]
        %v850 = vld [vmem:[%s846 + $0x18] sm:$0xff]
        %v851 = vld [vmem:[%s846 + $0x20] sm:$0xff]
        %v852 = vld [vmem:[%s846 + $0x28] sm:$0xff]
        %v853 = vld [vmem:[%s846 + $0x30] sm:$0xff]
        %v854 = vld [vmem:[%s846 + $0x38] sm:$0xff]
        %v856 = vsel %vm517, %v842, 0
        %v859 = vsel %vm517, %v843, 0
        %v862 = vsel %vm517, %v844, 0
        %v865 = vsel %vm517, %v845, 0
        %867 = vmatprep.subr.mxu0 %v848
        %868 = vmatpush1.msra.mxu0 %v847
        %869 = vmatprep.subr.mxu0 %v850
        %870 = vmatpush1.msra.mxu0 %v849
        %871 = vmatprep.subr.mxu0 %v852
        %872 = vmatpush1.msra.mxu0 %v851
        %873 = vmatprep.subr.mxu0 %v854
        %874 = vmatpush1.msra.mxu0 %v853
        %875 = vmatprep.subr.mxu0 0.0
        %876 = vmatpush1.msra.mxu0 0.0
        %877 = vmatprep.subr.mxu0 0.0
        %878 = vmatpush1.msra.mxu0 0.0
        %879 = vmatprep.subr.mxu0 0.0
        %880 = vmatpush1.msra.mxu0 0.0
        %881 = vmatprep.subr.mxu0 0.0
        %882 = vmatpush1.msra.mxu0 0.0
        %883 = vmatprep.subr.mxu0 0.0
        %884 = vmatpush1.msra.mxu0 0.0
        %885 = vmatprep.subr.mxu0 0.0
        %886 = vmatpush1.msra.mxu0 0.0
        %887 = vmatprep.subr.mxu0 0.0
        %888 = vmatpush1.msra.mxu0 0.0
        %889 = vmatprep.subr.mxu0 0.0
        %890 = vmatpush1.msra.mxu0 0.0
        %891 = vmatprep.subr.mxu0 0.0
        %892 = vmatpush1.msra.mxu0 0.0
        %893 = vmatprep.subr.mxu0 0.0
        %894 = vmatpush1.msra.mxu0 0.0
        %895 = vmatprep.subr.mxu0 0.0
        %896 = vmatpush1.msra.mxu0 0.0
        %897 = vmatprep.subr.mxu0 0.0
        %898 = vmatpush1.msra.mxu0 0.0
        %899 = vmatprep.subr.mxu0 0.0
        %900 = vmatpush1.msra.mxu0 0.0
        %901 = vmatprep.subr.mxu0 0.0
        %902 = vmatpush1.msra.mxu0 0.0
        %903 = vmatprep.subr.mxu0 0.0
        %904 = vmatpush1.msra.mxu0 0.0
        %905 = vmatprep.subr.mxu0 0.0
        %906 = vmatpush1.msra.mxu0 0.0
        %907 = vmatprep.subr.mxu0 0.0
        %908 = vmatpush1.msra.mxu0 0.0
        %909 = vmatprep.subr.mxu0 0.0
        %910 = vmatpush1.msra.mxu0 0.0
        %911 = vmatprep.subr.mxu0 0.0
        %912 = vmatpush1.msra.mxu0 0.0
        %913 = vmatprep.subr.mxu0 0.0
        %914 = vmatpush1.msra.mxu0 0.0
        %915 = vmatprep.subr.mxu0 0.0
        %916 = vmatpush1.msra.mxu0 0.0
        %917 = vmatprep.subr.mxu0 0.0
        %918 = vmatpush1.msra.mxu0 0.0
        %919 = vmatprep.subr.mxu0 0.0
        %920 = vmatpush1.msra.mxu0 0.0
        %921 = vmatprep.subr.mxu0 0.0
        %922 = vmatpush1.msra.mxu0 0.0
        %923 = vmatprep.subr.mxu0 0.0
        %924 = vmatpush1.msra.mxu0 0.0
        %925 = vmatprep.subr.mxu0 0.0
        %926 = vmatpush1.msra.mxu0 0.0
        %927 = vmatprep.subr.mxu0 0.0
        %928 = vmatpush1.msra.mxu0 0.0
        %929 = vmatprep.subr.mxu0 0.0
        %930 = vmatpush1.msra.mxu0 0.0
        %931 = vmatprep.mubr.f32.mxu0 0.0
        %932 = vmatmul.mubr.f32.gmra.mrb[0].mxu0 %v856
        %v933 = vpop.f32.mrb[0].mxu0
        %v934 = vadd.f32 0.0, %v933
        %v935 = vpop.f32.mrb[0].mxu0
        %v936 = vadd.f32 0.0, %v935
        %937 = vmatprep.mubr.f32.mxu0 0.0
        %938 = vmatmul.mubr.f32.gmra.mrb[0].mxu0 %v859
        %v939 = vpop.f32.mrb[0].mxu0
        %v940 = vadd.f32 0.0, %v939
        %v941 = vpop.f32.mrb[0].mxu0
        %v942 = vadd.f32 0.0, %v941
        %943 = vmatprep.mubr.f32.mxu0 0.0
        %944 = vmatmul.mubr.f32.gmra.mrb[0].mxu0 %v862
        %v945 = vpop.f32.mrb[0].mxu0
        %v946 = vadd.f32 0.0, %v945
        %v947 = vpop.f32.mrb[0].mxu0
        %v948 = vadd.f32 0.0, %v947
        %949 = vmatprep.mubr.f32.mxu0 0.0
        %950 = vmatmul.mubr.f32.gmra.mrb[0].mxu0 %v865
        %v951 = vpop.f32.mrb[0].mxu0
        %v952 = vadd.f32 0.0, %v951
        %v953 = vpop.f32.mrb[0].mxu0
        %v954 = vadd.f32 0.0, %v953
        %955 = vdwg.mxu0
        %v956 = vadd.f32 %v834, %v934
        %v957 = vadd.f32 %v835, %v936
        %v958 = vadd.f32 %v836, %v940
        %v959 = vadd.f32 %v837, %v942
        %v960 = vadd.f32 %v838, %v946
        %v961 = vadd.f32 %v839, %v948
        %v962 = vadd.f32 %v840, %v952
        %v963 = vadd.f32 %v841, %v954
        %v964 = vld [vmem:[%s491 + $0x4] sm:$0xff]
        %v965 = vld [vmem:[%s491 + $0xc] sm:$0xff]
        %v966 = vld [vmem:[%s491 + $0x14] sm:$0xff]
        %v967 = vld [vmem:[%s491 + $0x1c] sm:$0xf]
        %s968 = scalar_lea.vmem %s1, 256
        %v969 = vld [vmem:[%s968] sm:$0xff]
        %v970 = vld [vmem:[%s968 + $0x8] sm:$0xff]
        %v971 = vld [vmem:[%s968 + $0x10] sm:$0xff]
        %v972 = vld [vmem:[%s968 + $0x18] sm:$0xff]
        %v973 = vld [vmem:[%s968 + $0x20] sm:$0xff]
        %v974 = vld [vmem:[%s968 + $0x28] sm:$0xff]
        %v975 = vld [vmem:[%s968 + $0x30] sm:$0xff]
        %v976 = vld [vmem:[%s968 + $0x38] sm:$0xff]
        %v978 = vsel %vm517, %v964, 0
        %v981 = vsel %vm517, %v965, 0
        %v984 = vsel %vm517, %v966, 0
        %v987 = vsel %vm517, %v967, 0
        %989 = vmatprep.subr.mxu0 %v970
        %990 = vmatpush1.msra.mxu0 %v969
        %991 = vmatprep.subr.mxu0 %v972
        %992 = vmatpush1.msra.mxu0 %v971
        %993 = vmatprep.subr.mxu0 %v974
        %994 = vmatpush1.msra.mxu0 %v973
        %995 = vmatprep.subr.mxu0 %v976
        %996 = vmatpush1.msra.mxu0 %v975
        %997 = vmatprep.subr.mxu0 0.0
        %998 = vmatpush1.msra.mxu0 0.0
        %999 = vmatprep.subr.mxu0 0.0
        %1000 = vmatpush1.msra.mxu0 0.0
        %1001 = vmatprep.subr.mxu0 0.0
        %1002 = vmatpush1.msra.mxu0 0.0
        %1003 = vmatprep.subr.mxu0 0.0
        %1004 = vmatpush1.msra.mxu0 0.0
        %1005 = vmatprep.subr.mxu0 0.0
        %1006 = vmatpush1.msra.mxu0 0.0
        %1007 = vmatprep.subr.mxu0 0.0
        %1008 = vmatpush1.msra.mxu0 0.0
        %1009 = vmatprep.subr.mxu0 0.0
        %1010 = vmatpush1.msra.mxu0 0.0
        %1011 = vmatprep.subr.mxu0 0.0
        %1012 = vmatpush1.msra.mxu0 0.0
        %1013 = vmatprep.subr.mxu0 0.0
        %1014 = vmatpush1.msra.mxu0 0.0
        %1015 = vmatprep.subr.mxu0 0.0
        %1016 = vmatpush1.msra.mxu0 0.0
        %1017 = vmatprep.subr.mxu0 0.0
        %1018 = vmatpush1.msra.mxu0 0.0
        %1019 = vmatprep.subr.mxu0 0.0
        %1020 = vmatpush1.msra.mxu0 0.0
        %1021 = vmatprep.subr.mxu0 0.0
        %1022 = vmatpush1.msra.mxu0 0.0
        %1023 = vmatprep.subr.mxu0 0.0
        %1024 = vmatpush1.msra.mxu0 0.0
        %1025 = vmatprep.subr.mxu0 0.0
        %1026 = vmatpush1.msra.mxu0 0.0
        %1027 = vmatprep.subr.mxu0 0.0
        %1028 = vmatpush1.msra.mxu0 0.0
        %1029 = vmatprep.subr.mxu0 0.0
        %1030 = vmatpush1.msra.mxu0 0.0
        %1031 = vmatprep.subr.mxu0 0.0
        %1032 = vmatpush1.msra.mxu0 0.0
        %1033 = vmatprep.subr.mxu0 0.0
        %1034 = vmatpush1.msra.mxu0 0.0
        %1035 = vmatprep.subr.mxu0 0.0
        %1036 = vmatpush1.msra.mxu0 0.0
        %1037 = vmatprep.subr.mxu0 0.0
        %1038 = vmatpush1.msra.mxu0 0.0
        %1039 = vmatprep.subr.mxu0 0.0
        %1040 = vmatpush1.msra.mxu0 0.0
        %1041 = vmatprep.subr.mxu0 0.0
        %1042 = vmatpush1.msra.mxu0 0.0
        %1043 = vmatprep.subr.mxu0 0.0
        %1044 = vmatpush1.msra.mxu0 0.0
        %1045 = vmatprep.subr.mxu0 0.0
        %1046 = vmatpush1.msra.mxu0 0.0
        %1047 = vmatprep.subr.mxu0 0.0
        %1048 = vmatpush1.msra.mxu0 0.0
        %1049 = vmatprep.subr.mxu0 0.0
        %1050 = vmatpush1.msra.mxu0 0.0
        %1051 = vmatprep.subr.mxu0 0.0
        %1052 = vmatpush1.msra.mxu0 0.0
        %1053 = vmatprep.mubr.f32.mxu0 0.0
        %1054 = vmatmul.mubr.f32.gmra.mrb[0].mxu0 %v978
        %v1055 = vpop.f32.mrb[0].mxu0
        %v1056 = vadd.f32 0.0, %v1055
        %v1057 = vpop.f32.mrb[0].mxu0
        %v1058 = vadd.f32 0.0, %v1057
        %1059 = vmatprep.mubr.f32.mxu0 0.0
        %1060 = vmatmul.mubr.f32.gmra.mrb[0].mxu0 %v981
        %v1061 = vpop.f32.mrb[0].mxu0
        %v1062 = vadd.f32 0.0, %v1061
        %v1063 = vpop.f32.mrb[0].mxu0
        %v1064 = vadd.f32 0.0, %v1063
        %1065 = vmatprep.mubr.f32.mxu0 0.0
        %1066 = vmatmul.mubr.f32.gmra.mrb[0].mxu0 %v984
        %v1067 = vpop.f32.mrb[0].mxu0
        %v1068 = vadd.f32 0.0, %v1067
        %v1069 = vpop.f32.mrb[0].mxu0
        %v1070 = vadd.f32 0.0, %v1069
        %1071 = vmatprep.mubr.f32.mxu0 0.0
        %1072 = vmatmul.mubr.f32.gmra.mrb[0].mxu0 %v987
        %v1073 = vpop.f32.mrb[0].mxu0
        %v1074 = vadd.f32 0.0, %v1073
        %v1075 = vpop.f32.mrb[0].mxu0
        %v1076 = vadd.f32 0.0, %v1075
        %1077 = vdwg.mxu0
        %v1078 = vadd.f32 %v956, %v1056
        %v1079 = vadd.f32 %v957, %v1058
        %v1080 = vadd.f32 %v958, %v1062
        %v1081 = vadd.f32 %v959, %v1064
        %v1082 = vadd.f32 %v960, %v1068
        %v1083 = vadd.f32 %v961, %v1070
        %v1084 = vadd.f32 %v962, %v1074
        %v1085 = vadd.f32 %v963, %v1076
        %v1086 = vld [vmem:[%s2] sm:$0x3]
        %v1088 = vlaneseq
        %v1089 = vshrl.u32 %v1088, 7
        %v1090 = vsub.s32 0, %v1089
        %v1091 = vrot.slane %v1086, %v1090
        %v1092 = vlaneseq
        %v1093 = vshrl.u32 %v1092, 7
        %v1094 = vsub.s32 1, %v1093
        %v1095 = vrot.slane %v1086, %v1094
        %v1098 = vadd.f32 %v1078, %v1091
        %v1099 = vadd.f32 %v1079, %v1095
        %v1100 = vadd.f32 %v1080, %v1091
        %v1101 = vadd.f32 %v1081, %v1095
        %v1102 = vadd.f32 %v1082, %v1091
        %v1103 = vadd.f32 %v1083, %v1095
        %v1104 = vadd.f32 %v1084, %v1091
        %v1105 = vadd.f32 %v1085, %v1095
        %v1106 = vmax.f32 %v1098, 0.0
        %v1107 = vmax.f32 %v1099, 0.0
        %v1108 = vmax.f32 %v1100, 0.0
        %v1109 = vmax.f32 %v1101, 0.0
        %v1110 = vmax.f32 %v1102, 0.0
        %v1111 = vmax.f32 %v1103, 0.0
        %v1112 = vmax.f32 %v1104, 0.0
        %v1113 = vmax.f32 %v1105, 0.0
        %v1114 = vld [vmem:[%s3] sm:$0xff]
        %v1115 = vld [vmem:[%s3 + $0x8] sm:$0x3f]
        %vm1116 = vcmask 228352
        %v1118 = vsel %vm1116, %v1114, 0
        %v1121 = vsel %vm1116, %v1115, 0
        %vm1123 = vcmask 1043456
        %v1125 = vsel %vm1123, %v1112, 0
        %v1128 = vsel %vm1123, %v1113, 0
        %1130 = vmatprep.subr.mxu0 %v1107
        %1131 = vmatpush1.msra.mxu0 %v1106
        %1132 = vmatprep.subr.mxu0 %v1109
        %1133 = vmatpush1.msra.mxu0 %v1108
        %1134 = vmatprep.subr.mxu0 %v1111
        %1135 = vmatpush1.msra.mxu0 %v1110
        %1136 = vmatprep.subr.mxu0 %v1128
        %1137 = vmatpush1.msra.mxu0 %v1125
        %1138 = vmatprep.subr.mxu0 0.0
        %1139 = vmatpush1.msra.mxu0 0.0
        %1140 = vmatprep.subr.mxu0 0.0
        %1141 = vmatpush1.msra.mxu0 0.0
        %1142 = vmatprep.subr.mxu0 0.0
        %1143 = vmatpush1.msra.mxu0 0.0
        %1144 = vmatprep.subr.mxu0 0.0
        %1145 = vmatpush1.msra.mxu0 0.0
        %1146 = vmatprep.subr.mxu0 0.0
        %1147 = vmatpush1.msra.mxu0 0.0
        %1148 = vmatprep.subr.mxu0 0.0
        %1149 = vmatpush1.msra.mxu0 0.0
        %1150 = vmatprep.subr.mxu0 0.0
        %1151 = vmatpush1.msra.mxu0 0.0
        %1152 = vmatprep.subr.mxu0 0.0
        %1153 = vmatpush1.msra.mxu0 0.0
        %1154 = vmatprep.subr.mxu0 0.0
        %1155 = vmatpush1.msra.mxu0 0.0
        %1156 = vmatprep.subr.mxu0 0.0
        %1157 = vmatpush1.msra.mxu0 0.0
        %1158 = vmatprep.subr.mxu0 0.0
        %1159 = vmatpush1.msra.mxu0 0.0
        %1160 = vmatprep.subr.mxu0 0.0
        %1161 = vmatpush1.msra.mxu0 0.0
        %1162 = vmatprep.subr.mxu0 0.0
        %1163 = vmatpush1.msra.mxu0 0.0
        %1164 = vmatprep.subr.mxu0 0.0
        %1165 = vmatpush1.msra.mxu0 0.0
        %1166 = vmatprep.subr.mxu0 0.0
        %1167 = vmatpush1.msra.mxu0 0.0
        %1168 = vmatprep.subr.mxu0 0.0
        %1169 = vmatpush1.msra.mxu0 0.0
        %1170 = vmatprep.subr.mxu0 0.0
        %1171 = vmatpush1.msra.mxu0 0.0
        %1172 = vmatprep.subr.mxu0 0.0
        %1173 = vmatpush1.msra.mxu0 0.0
        %1174 = vmatprep.subr.mxu0 0.0
        %1175 = vmatpush1.msra.mxu0 0.0
        %1176 = vmatprep.subr.mxu0 0.0
        %1177 = vmatpush1.msra.mxu0 0.0
        %1178 = vmatprep.subr.mxu0 0.0
        %1179 = vmatpush1.msra.mxu0 0.0
        %1180 = vmatprep.subr.mxu0 0.0
        %1181 = vmatpush1.msra.mxu0 0.0
        %1182 = vmatprep.subr.mxu0 0.0
        %1183 = vmatpush1.msra.mxu0 0.0
        %1184 = vmatprep.subr.mxu0 0.0
        %1185 = vmatpush1.msra.mxu0 0.0
        %1186 = vmatprep.subr.mxu0 0.0
        %1187 = vmatpush1.msra.mxu0 0.0
        %1188 = vmatprep.subr.mxu0 0.0
        %1189 = vmatpush1.msra.mxu0 0.0
        %1190 = vmatprep.subr.mxu0 0.0
        %1191 = vmatpush1.msra.mxu0 0.0
        %1192 = vmatprep.subr.mxu0 0.0
        %1193 = vmatpush1.msra.mxu0 0.0
        %1194 = vmatprep.mubr.f32.mxu0 0.0
        %1195 = vmatmul.mubr.f32.gmra.mrb[0].mxu0 %v1118
        %v1196 = vpop.f32.mrb[0].mxu0
        %v1197 = vadd.f32 0.0, %v1196
        %v1198 = vpop.f32.mrb[0].mxu0
        %v1199 = vadd.f32 0.0, %v1198
        %1200 = vmatprep.mubr.f32.mxu0 0.0
        %1201 = vmatmul.mubr.f32.gmra.mrb[0].mxu0 %v1121
        %v1202 = vpop.f32.mrb[0].mxu0
        %v1203 = vadd.f32 0.0, %v1202
        %v1204 = vpop.f32.mrb[0].mxu0
        %v1205 = vadd.f32 0.0, %v1204
        %1206 = vdwg.mxu0
        %s1207 = scalar_lea.vmem %s3, 16
        %v1208 = vld [vmem:[%s1207] sm:$0xff]
        %v1209 = vld [vmem:[%s1207 + $0x8] sm:$0x3f]
        %v1211 = vsel %vm1116, %v1208, 0
        %v1214 = vsel %vm1116, %v1209, 0
        %1216 = vmatprep.subr.mxu0 %v1107
        %1217 = vmatpush1.msra.mxu0 %v1106
        %1218 = vmatprep.subr.mxu0 %v1109
        %1219 = vmatpush1.msra.mxu0 %v1108
        %1220 = vmatprep.subr.mxu0 %v1111
        %1221 = vmatpush1.msra.mxu0 %v1110
        %1222 = vmatprep.subr.mxu0 %v1128
        %1223 = vmatpush1.msra.mxu0 %v1125
        %1224 = vmatprep.subr.mxu0 0.0
        %1225 = vmatpush1.msra.mxu0 0.0
        %1226 = vmatprep.subr.mxu0 0.0
        %1227 = vmatpush1.msra.mxu0 0.0
        %1228 = vmatprep.subr.mxu0 0.0
        %1229 = vmatpush1.msra.mxu0 0.0
        %1230 = vmatprep.subr.mxu0 0.0
        %1231 = vmatpush1.msra.mxu0 0.0
        %1232 = vmatprep.subr.mxu0 0.0
        %1233 = vmatpush1.msra.mxu0 0.0
        %1234 = vmatprep.subr.mxu0 0.0
        %1235 = vmatpush1.msra.mxu0 0.0
        %1236 = vmatprep.subr.mxu0 0.0
        %1237 = vmatpush1.msra.mxu0 0.0
        %1238 = vmatprep.subr.mxu0 0.0
        %1239 = vmatpush1.msra.mxu0 0.0
        %1240 = vmatprep.subr.mxu0 0.0
        %1241 = vmatpush1.msra.mxu0 0.0
        %1242 = vmatprep.subr.mxu0 0.0
        %1243 = vmatpush1.msra.mxu0 0.0
        %1244 = vmatprep.subr.mxu0 0.0
        %1245 = vmatpush1.msra.mxu0 0.0
        %1246 = vmatprep.subr.mxu0 0.0
        %1247 = vmatpush1.msra.mxu0 0.0
        %1248 = vmatprep.subr.mxu0 0.0
        %1249 = vmatpush1.msra.mxu0 0.0
        %1250 = vmatprep.subr.mxu0 0.0
        %1251 = vmatpush1.msra.mxu0 0.0
        %1252 = vmatprep.subr.mxu0 0.0
        %1253 = vmatpush1.msra.mxu0 0.0
        %1254 = vmatprep.subr.mxu0 0.0
        %1255 = vmatpush1.msra.mxu0 0.0
        %1256 = vmatprep.subr.mxu0 0.0
        %1257 = vmatpush1.msra.mxu0 0.0
        %1258 = vmatprep.subr.mxu0 0.0
        %1259 = vmatpush1.msra.mxu0 0.0
        %1260 = vmatprep.subr.mxu0 0.0
        %1261 = vmatpush1.msra.mxu0 0.0
        %1262 = vmatprep.subr.mxu0 0.0
        %1263 = vmatpush1.msra.mxu0 0.0
        %1264 = vmatprep.subr.mxu0 0.0
        %1265 = vmatpush1.msra.mxu0 0.0
        %1266 = vmatprep.subr.mxu0 0.0
        %1267 = vmatpush1.msra.mxu0 0.0
        %1268 = vmatprep.subr.mxu0 0.0
        %1269 = vmatpush1.msra.mxu0 0.0
        %1270 = vmatprep.subr.mxu0 0.0
        %1271 = vmatpush1.msra.mxu0 0.0
        %1272 = vmatprep.subr.mxu0 0.0
        %1273 = vmatpush1.msra.mxu0 0.0
        %1274 = vmatprep.subr.mxu0 0.0
        %1275 = vmatpush1.msra.mxu0 0.0
        %1276 = vmatprep.subr.mxu0 0.0
        %1277 = vmatpush1.msra.mxu0 0.0
        %1278 = vmatprep.subr.mxu0 0.0
        %1279 = vmatpush1.msra.mxu0 0.0
        %1280 = vmatprep.mubr.f32.mxu0 0.0
        %1281 = vmatmul.mubr.f32.gmra.mrb[0].mxu0 %v1211
        %v1282 = vpop.f32.mrb[0].mxu0
        %v1283 = vadd.f32 0.0, %v1282
        %v1284 = vpop.f32.mrb[0].mxu0
        %v1285 = vadd.f32 0.0, %v1284
        %1286 = vmatprep.mubr.f32.mxu0 0.0
        %1287 = vmatmul.mubr.f32.gmra.mrb[0].mxu0 %v1214
        %v1288 = vpop.f32.mrb[0].mxu0
        %v1289 = vadd.f32 0.0, %v1288
        %v1290 = vpop.f32.mrb[0].mxu0
        %v1291 = vadd.f32 0.0, %v1290
        %1292 = vdwg.mxu0
        %v1293 = vmax.f32 %v1197, %v1283
        %v1294 = vmax.f32 %v1199, %v1285
        %v1295 = vmax.f32 %v1203, %v1289
        %v1296 = vmax.f32 %v1205, %v1291
        %v1297 = vld [vmem:[%s4] sm:$0xff]
        %v1298 = vld [vmem:[%s4 + $0x8] sm:$0xff]
        %v1299 = vld [vmem:[%s4 + $0x10] sm:$0xff]
        %v1300 = vld [vmem:[%s4 + $0x18] sm:$0xff]
        %v1301 = vld [vmem:[%s4 + $0x20] sm:$0xff]
        %v1302 = vld [vmem:[%s4 + $0x28] sm:$0xff]
        %v1303 = vld [vmem:[%s4 + $0x30] sm:$0xff]
        %v1304 = vld [vmem:[%s4 + $0x38] sm:$0xff]
        %v1305 = vld [vmem:[%s4 + $0x40] sm:$0xff]
        %v1306 = vld [vmem:[%s4 + $0x48] sm:$0xff]
        %v1307 = vld [vmem:[%s4 + $0x50] sm:$0xff]
        %v1308 = vld [vmem:[%s4 + $0x58] sm:$0xff]
        %v1309 = vld [vmem:[%s4 + $0x60] sm:$0xff]
        %v1310 = vld [vmem:[%s4 + $0x68] sm:$0xff]
        %v1311 = vld [vmem:[%s4 + $0x70] sm:$0xff]
        %v1312 = vld [vmem:[%s4 + $0x78] sm:$0xff]
        %v1313 = vld [vmem:[%s4 + $0x80] sm:$0xff]
        %v1314 = vld [vmem:[%s4 + $0x88] sm:$0xff]
        %v1315 = vld [vmem:[%s4 + $0x90] sm:$0xff]
        %v1316 = vld [vmem:[%s4 + $0x98] sm:$0xff]
        %v1317 = vld [vmem:[%s4 + $0xa0] sm:$0xff]
        %v1318 = vld [vmem:[%s4 + $0xa8] sm:$0xff]
        %v1319 = vld [vmem:[%s4 + $0xb0] sm:$0xff]
        %v1320 = vld [vmem:[%s4 + $0xb8] sm:$0xff]
        %v1321 = vld [vmem:[%s4 + $0xc0] sm:$0xff]
        %v1322 = vld [vmem:[%s4 + $0xc8] sm:$0xff]
        %v1323 = vld [vmem:[%s4 + $0xd0] sm:$0xff]
        %v1324 = vld [vmem:[%s4 + $0xd8] sm:$0xff]
        %vm1325 = vcmask 785408
        %v1327 = vsel %vm1325, %v1294, 0
        %v1330 = vsel %vm1325, %v1296, 0
        %1332 = vmatprep.subr.mxu0 0.0
        %1333 = vmatpush1.msra.mxu0 %v1297
        %1334 = vmatprep.subr.mxu0 0.0
        %1335 = vmatpush1.msra.mxu0 %v1298
        %1336 = vmatprep.subr.mxu0 0.0
        %1337 = vmatpush1.msra.mxu0 %v1299
        %1338 = vmatprep.subr.mxu0 0.0
        %1339 = vmatpush1.msra.mxu0 %v1300
        %1340 = vmatprep.subr.mxu0 0.0
        %1341 = vmatpush1.msra.mxu0 %v1301
        %1342 = vmatprep.subr.mxu0 0.0
        %1343 = vmatpush1.msra.mxu0 %v1302
        %1344 = vmatprep.subr.mxu0 0.0
        %1345 = vmatpush1.msra.mxu0 %v1303
        %1346 = vmatprep.subr.mxu0 0.0
        %1347 = vmatpush1.msra.mxu0 %v1304
        %1348 = vmatprep.subr.mxu0 0.0
        %1349 = vmatpush1.msra.mxu0 %v1305
        %1350 = vmatprep.subr.mxu0 0.0
        %1351 = vmatpush1.msra.mxu0 %v1306
        %1352 = vmatprep.subr.mxu0 0.0
        %1353 = vmatpush1.msra.mxu0 %v1307
        %1354 = vmatprep.subr.mxu0 0.0
        %1355 = vmatpush1.msra.mxu0 %v1308
        %1356 = vmatprep.subr.mxu0 0.0
        %1357 = vmatpush1.msra.mxu0 %v1309
        %1358 = vmatprep.subr.mxu0 0.0
        %1359 = vmatpush1.msra.mxu0 %v1310
        %1360 = vmatprep.subr.mxu0 0.0
        %1361 = vmatpush1.msra.mxu0 %v1311
        %1362 = vmatprep.subr.mxu0 0.0
        %1363 = vmatpush1.msra.mxu0 %v1312
        %1364 = vmatprep.subr.mxu0 0.0
        %1365 = vmatpush1.msra.mxu0 %v1313
        %1366 = vmatprep.subr.mxu0 0.0
        %1367 = vmatpush1.msra.mxu0 %v1314
        %1368 = vmatprep.subr.mxu0 0.0
        %1369 = vmatpush1.msra.mxu0 %v1315
        %1370 = vmatprep.subr.mxu0 0.0
        %1371 = vmatpush1.msra.mxu0 %v1316
        %1372 = vmatprep.subr.mxu0 0.0
        %1373 = vmatpush1.msra.mxu0 %v1317
        %1374 = vmatprep.subr.mxu0 0.0
        %1375 = vmatpush1.msra.mxu0 %v1318
        %1376 = vmatprep.subr.mxu0 0.0
        %1377 = vmatpush1.msra.mxu0 %v1319
        %1378 = vmatprep.subr.mxu0 0.0
        %1379 = vmatpush1.msra.mxu0 %v1320
        %1380 = vmatprep.subr.mxu0 0.0
        %1381 = vmatpush1.msra.mxu0 %v1321
        %1382 = vmatprep.subr.mxu0 0.0
        %1383 = vmatpush1.msra.mxu0 %v1322
        %1384 = vmatprep.subr.mxu0 0.0
        %1385 = vmatpush1.msra.mxu0 %v1323
        %1386 = vmatprep.subr.mxu0 0.0
        %1387 = vmatpush1.msra.mxu0 %v1324
        %1388 = vmatprep.subr.mxu0 0.0
        %1389 = vmatpush1.msra.mxu0 0.0
        %1390 = vmatprep.subr.mxu0 0.0
        %1391 = vmatpush1.msra.mxu0 0.0
        %1392 = vmatprep.subr.mxu0 0.0
        %1393 = vmatpush1.msra.mxu0 0.0
        %1394 = vmatprep.subr.mxu0 0.0
        %1395 = vmatpush1.msra.mxu0 0.0
        %1396 = vmatprep.mubr.f32.mxu0 %v1327
        %1397 = vmatmul.mubr.f32.gmra.mrb[0].mxu0 %v1293
        %v1398 = vpop.f32.mrb[0].mxu0
        %v1399 = vadd.f32 0.0, %v1398
        %v1400 = vpop.f32.mrb[0].mxu0
        %1401 = vmatprep.mubr.f32.mxu0 %v1330
        %1402 = vmatmul.mubr.f32.gmra.mrb[0].mxu0 %v1295
        %v1403 = vpop.f32.mrb[0].mxu0
        %v1404 = vadd.f32 0.0, %v1403
        %v1405 = vpop.f32.mrb[0].mxu0
        %1406 = vdwg.mxu0
        %s1407 = scalar_lea.vmem %s4, 224
        %v1408 = vld [vmem:[%s1407] sm:$0xff]
        %v1409 = vld [vmem:[%s1407 + $0x8] sm:$0xff]
        %v1410 = vld [vmem:[%s1407 + $0x10] sm:$0xff]
        %v1411 = vld [vmem:[%s1407 + $0x18] sm:$0xff]
        %v1412 = vld [vmem:[%s1407 + $0x20] sm:$0xff]
        %v1413 = vld [vmem:[%s1407 + $0x28] sm:$0xff]
        %v1414 = vld [vmem:[%s1407 + $0x30] sm:$0xff]
        %v1415 = vld [vmem:[%s1407 + $0x38] sm:$0xff]
        %v1416 = vld [vmem:[%s1407 + $0x40] sm:$0xff]
        %v1417 = vld [vmem:[%s1407 + $0x48] sm:$0xff]
        %v1418 = vld [vmem:[%s1407 + $0x50] sm:$0xff]
        %v1419 = vld [vmem:[%s1407 + $0x58] sm:$0xff]
        %v1420 = vld [vmem:[%s1407 + $0x60] sm:$0xff]
        %v1421 = vld [vmem:[%s1407 + $0x68] sm:$0xff]
        %v1422 = vld [vmem:[%s1407 + $0x70] sm:$0xff]
        %v1423 = vld [vmem:[%s1407 + $0x78] sm:$0xff]
        %v1424 = vld [vmem:[%s1407 + $0x80] sm:$0xff]
        %v1425 = vld [vmem:[%s1407 + $0x88] sm:$0xff]
        %v1426 = vld [vmem:[%s1407 + $0x90] sm:$0xff]
        %v1427 = vld [vmem:[%s1407 + $0x98] sm:$0xff]
        %v1428 = vld [vmem:[%s1407 + $0xa0] sm:$0xff]
        %v1429 = vld [vmem:[%s1407 + $0xa8] sm:$0xff]
        %v1430 = vld [vmem:[%s1407 + $0xb0] sm:$0xff]
        %v1431 = vld [vmem:[%s1407 + $0xb8] sm:$0xff]
        %v1432 = vld [vmem:[%s1407 + $0xc0] sm:$0xff]
        %v1433 = vld [vmem:[%s1407 + $0xc8] sm:$0xff]
        %v1434 = vld [vmem:[%s1407 + $0xd0] sm:$0xff]
        %v1435 = vld [vmem:[%s1407 + $0xd8] sm:$0xff]
        %1436 = vmatprep.subr.mxu0 0.0
        %1437 = vmatpush1.msra.mxu0 %v1408
        %1438 = vmatprep.subr.mxu0 0.0
        %1439 = vmatpush1.msra.mxu0 %v1409
        %1440 = vmatprep.subr.mxu0 0.0
        %1441 = vmatpush1.msra.mxu0 %v1410
        %1442 = vmatprep.subr.mxu0 0.0
        %1443 = vmatpush1.msra.mxu0 %v1411
        %1444 = vmatprep.subr.mxu0 0.0
        %1445 = vmatpush1.msra.mxu0 %v1412
        %1446 = vmatprep.subr.mxu0 0.0
        %1447 = vmatpush1.msra.mxu0 %v1413
        %1448 = vmatprep.subr.mxu0 0.0
        %1449 = vmatpush1.msra.mxu0 %v1414
        %1450 = vmatprep.subr.mxu0 0.0
        %1451 = vmatpush1.msra.mxu0 %v1415
        %1452 = vmatprep.subr.mxu0 0.0
        %1453 = vmatpush1.msra.mxu0 %v1416
        %1454 = vmatprep.subr.mxu0 0.0
        %1455 = vmatpush1.msra.mxu0 %v1417
        %1456 = vmatprep.subr.mxu0 0.0
        %1457 = vmatpush1.msra.mxu0 %v1418
        %1458 = vmatprep.subr.mxu0 0.0
        %1459 = vmatpush1.msra.mxu0 %v1419
        %1460 = vmatprep.subr.mxu0 0.0
        %1461 = vmatpush1.msra.mxu0 %v1420
        %1462 = vmatprep.subr.mxu0 0.0
        %1463 = vmatpush1.msra.mxu0 %v1421
        %1464 = vmatprep.subr.mxu0 0.0
        %1465 = vmatpush1.msra.mxu0 %v1422
        %1466 = vmatprep.subr.mxu0 0.0
        %1467 = vmatpush1.msra.mxu0 %v1423
        %1468 = vmatprep.subr.mxu0 0.0
        %1469 = vmatpush1.msra.mxu0 %v1424
        %1470 = vmatprep.subr.mxu0 0.0
        %1471 = vmatpush1.msra.mxu0 %v1425
        %1472 = vmatprep.subr.mxu0 0.0
        %1473 = vmatpush1.msra.mxu0 %v1426
        %1474 = vmatprep.subr.mxu0 0.0
        %1475 = vmatpush1.msra.mxu0 %v1427
        %1476 = vmatprep.subr.mxu0 0.0
        %1477 = vmatpush1.msra.mxu0 %v1428
        %1478 = vmatprep.subr.mxu0 0.0
        %1479 = vmatpush1.msra.mxu0 %v1429
        %1480 = vmatprep.subr.mxu0 0.0
        %1481 = vmatpush1.msra.mxu0 %v1430
        %1482 = vmatprep.subr.mxu0 0.0
        %1483 = vmatpush1.msra.mxu0 %v1431
        %1484 = vmatprep.subr.mxu0 0.0
        %1485 = vmatpush1.msra.mxu0 %v1432
        %1486 = vmatprep.subr.mxu0 0.0
        %1487 = vmatpush1.msra.mxu0 %v1433
        %1488 = vmatprep.subr.mxu0 0.0
        %1489 = vmatpush1.msra.mxu0 %v1434
        %1490 = vmatprep.subr.mxu0 0.0
        %1491 = vmatpush1.msra.mxu0 %v1435
        %1492 = vmatprep.subr.mxu0 0.0
        %1493 = vmatpush1.msra.mxu0 0.0
        %1494 = vmatprep.subr.mxu0 0.0
        %1495 = vmatpush1.msra.mxu0 0.0
        %1496 = vmatprep.subr.mxu0 0.0
        %1497 = vmatpush1.msra.mxu0 0.0
        %1498 = vmatprep.subr.mxu0 0.0
        %1499 = vmatpush1.msra.mxu0 0.0
        %1500 = vmatprep.mubr.f32.mxu0 %v1327
        %1501 = vmatmul.mubr.f32.gmra.mrb[0].mxu0 %v1293
        %v1502 = vpop.f32.mrb[0].mxu0
        %v1503 = vadd.f32 0.0, %v1502
        %v1504 = vpop.f32.mrb[0].mxu0
        %1505 = vmatprep.mubr.f32.mxu0 %v1330
        %1506 = vmatmul.mubr.f32.gmra.mrb[0].mxu0 %v1295
        %v1507 = vpop.f32.mrb[0].mxu0
        %v1508 = vadd.f32 0.0, %v1507
        %v1509 = vpop.f32.mrb[0].mxu0
        %1510 = vdwg.mxu0
        %v1511 = vmax.f32 %v1399, %v1503
        %v1512 = vmax.f32 %v1404, %v1508
        %v1513 = vld [vmem:[%s5] sm:$0xff]
        %v1514 = vld [vmem:[%s5 + $0x8] sm:$0xff]
        %v1515 = vld [vmem:[%s5 + $0x10] sm:$0xff]
        %v1516 = vld [vmem:[%s5 + $0x18] sm:$0xff]
        %v1517 = vld [vmem:[%s5 + $0x20] sm:$0xff]
        %v1518 = vld [vmem:[%s5 + $0x28] sm:$0xff]
        %v1519 = vld [vmem:[%s5 + $0x30] sm:$0xff]
        %v1520 = vld [vmem:[%s5 + $0x38] sm:$0xff]
        %v1521 = vld [vmem:[%s5 + $0x40] sm:$0xff]
        %v1522 = vld [vmem:[%s5 + $0x48] sm:$0xff]
        %v1523 = vld [vmem:[%s5 + $0x50] sm:$0xff]
        %v1524 = vld [vmem:[%s5 + $0x58] sm:$0xff]
        %v1525 = vld [vmem:[%s5 + $0x60] sm:$0xff]
        %v1526 = vld [vmem:[%s5 + $0x68] sm:$0xff]
        %v1527 = vld [vmem:[%s5 + $0x70] sm:$0xff]
        %v1528 = vld [vmem:[%s5 + $0x78] sm:$0xff]
        %v1529 = vld [vmem:[%s5 + $0x80] sm:$0xff]
        %v1530 = vld [vmem:[%s5 + $0x88] sm:$0xff]
        %v1531 = vld [vmem:[%s5 + $0x90] sm:$0xff]
        %v1532 = vld [vmem:[%s5 + $0x98] sm:$0xff]
        %v1533 = vld [vmem:[%s5 + $0xa0] sm:$0xff]
        %v1534 = vld [vmem:[%s5 + $0xa8] sm:$0xff]
        %v1535 = vld [vmem:[%s5 + $0xb0] sm:$0xff]
        %v1536 = vld [vmem:[%s5 + $0xb8] sm:$0xff]
        %v1537 = vld [vmem:[%s5 + $0xc0] sm:$0xff]
        %v1538 = vld [vmem:[%s5 + $0xc8] sm:$0xff]
        %v1539 = vld [vmem:[%s5 + $0xd0] sm:$0xff]
        %v1540 = vld [vmem:[%s5 + $0xd8] sm:$0xff]
        %s1541 = scalar_lea.vmem %s5, 224
        %v1542 = vld [vmem:[%s1541] sm:$0xff]
        %v1543 = vld [vmem:[%s1541 + $0x8] sm:$0xff]
        %v1544 = vld [vmem:[%s1541 + $0x10] sm:$0xff]
        %v1545 = vld [vmem:[%s1541 + $0x18] sm:$0xff]
        %v1546 = vld [vmem:[%s1541 + $0x20] sm:$0xff]
        %v1547 = vld [vmem:[%s1541 + $0x28] sm:$0xff]
        %v1548 = vld [vmem:[%s1541 + $0x30] sm:$0xff]
        %v1549 = vld [vmem:[%s1541 + $0x38] sm:$0xff]
        %v1550 = vld [vmem:[%s1541 + $0x40] sm:$0xff]
        %v1551 = vld [vmem:[%s1541 + $0x48] sm:$0xff]
        %v1552 = vld [vmem:[%s1541 + $0x50] sm:$0xff]
        %v1553 = vld [vmem:[%s1541 + $0x58] sm:$0xff]
        %v1554 = vld [vmem:[%s1541 + $0x60] sm:$0xff]
        %v1555 = vld [vmem:[%s1541 + $0x68] sm:$0xff]
        %v1556 = vld [vmem:[%s1541 + $0x70] sm:$0xff]
        %v1557 = vld [vmem:[%s1541 + $0x78] sm:$0xff]
        %v1558 = vld [vmem:[%s1541 + $0x80] sm:$0xff]
        %v1559 = vld [vmem:[%s1541 + $0x88] sm:$0xff]
        %v1560 = vld [vmem:[%s1541 + $0x90] sm:$0xff]
        %v1561 = vld [vmem:[%s1541 + $0x98] sm:$0xff]
        %v1562 = vld [vmem:[%s1541 + $0xa0] sm:$0xff]
        %v1563 = vld [vmem:[%s1541 + $0xa8] sm:$0xff]
        %v1564 = vld [vmem:[%s1541 + $0xb0] sm:$0xff]
        %v1565 = vld [vmem:[%s1541 + $0xb8] sm:$0xff]
        %v1566 = vld [vmem:[%s1541 + $0xc0] sm:$0xff]
        %v1567 = vld [vmem:[%s1541 + $0xc8] sm:$0xff]
        %v1568 = vld [vmem:[%s1541 + $0xd0] sm:$0xff]
        %v1569 = vld [vmem:[%s1541 + $0xd8] sm:$0xff]
        %vm1572 = vcmask 1046528
        %v1573 = vrot.slane %v1511, 1
        %v1574 = vrot.slane %v1512, 1
        %v1575 = vsel %vm1572, %v1573, %v1574
        %vm1576 = vcmask 916480
        %v1577 = vsel %vm1576, %v1575, 0
        %v1579 = vsel %vm1576, %v1574, 0
        %1581 = vmatprep.subr.mxu0 %v1543
        %1582 = vmatpush1.msra.mxu0 %v1542
        %1583 = vmatprep.subr.mxu0 %v1545
        %1584 = vmatpush1.msra.mxu0 %v1544
        %1585 = vmatprep.subr.mxu0 %v1547
        %1586 = vmatpush1.msra.mxu0 %v1546
        %1587 = vmatprep.subr.mxu0 %v1549
        %1588 = vmatpush1.msra.mxu0 %v1548
        %1589 = vmatprep.subr.mxu0 %v1551
        %1590 = vmatpush1.msra.mxu0 %v1550
        %1591 = vmatprep.subr.mxu0 %v1553
        %1592 = vmatpush1.msra.mxu0 %v1552
        %1593 = vmatprep.subr.mxu0 %v1555
        %1594 = vmatpush1.msra.mxu0 %v1554
        %1595 = vmatprep.subr.mxu0 %v1557
        %1596 = vmatpush1.msra.mxu0 %v1556
        %1597 = vmatprep.subr.mxu0 %v1559
        %1598 = vmatpush1.msra.mxu0 %v1558
        %1599 = vmatprep.subr.mxu0 %v1561
        %1600 = vmatpush1.msra.mxu0 %v1560
        %1601 = vmatprep.subr.mxu0 %v1563
        %1602 = vmatpush1.msra.mxu0 %v1562
        %1603 = vmatprep.subr.mxu0 %v1565
        %1604 = vmatpush1.msra.mxu0 %v1564
        %1605 = vmatprep.subr.mxu0 %v1567
        %1606 = vmatpush1.msra.mxu0 %v1566
        %1607 = vmatprep.subr.mxu0 %v1569
        %1608 = vmatpush1.msra.mxu0 %v1568
        %1609 = vmatprep.subr.mxu0 0.0
        %1610 = vmatpush1.msra.mxu0 0.0
        %1611 = vmatprep.subr.mxu0 0.0
        %1612 = vmatpush1.msra.mxu0 0.0
        %1613 = vmatprep.subr.mxu0 0.0
        %1614 = vmatpush1.msra.mxu0 0.0
        %1615 = vmatprep.subr.mxu0 0.0
        %1616 = vmatpush1.msra.mxu0 0.0
        %1617 = vmatprep.subr.mxu0 0.0
        %1618 = vmatpush1.msra.mxu0 0.0
        %1619 = vmatprep.subr.mxu0 0.0
        %1620 = vmatpush1.msra.mxu0 0.0
        %1621 = vmatprep.subr.mxu0 0.0
        %1622 = vmatpush1.msra.mxu0 0.0
        %1623 = vmatprep.subr.mxu0 0.0
        %1624 = vmatpush1.msra.mxu0 0.0
        %1625 = vmatprep.subr.mxu0 0.0
        %1626 = vmatpush1.msra.mxu0 0.0
        %1627 = vmatprep.subr.mxu0 0.0
        %1628 = vmatpush1.msra.mxu0 0.0
        %1629 = vmatprep.subr.mxu0 0.0
        %1630 = vmatpush1.msra.mxu0 0.0
        %1631 = vmatprep.subr.mxu0 0.0
        %1632 = vmatpush1.msra.mxu0 0.0
        %1633 = vmatprep.subr.mxu0 0.0
        %1634 = vmatpush1.msra.mxu0 0.0
        %1635 = vmatprep.subr.mxu0 0.0
        %1636 = vmatpush1.msra.mxu0 0.0
        %1637 = vmatprep.subr.mxu0 0.0
        %1638 = vmatpush1.msra.mxu0 0.0
        %1639 = vmatprep.subr.mxu0 0.0
        %1640 = vmatpush1.msra.mxu0 0.0
        %1641 = vmatprep.subr.mxu0 0.0
        %1642 = vmatpush1.msra.mxu0 0.0
        %1643 = vmatprep.subr.mxu0 0.0
        %1644 = vmatpush1.msra.mxu0 0.0
        %1645 = vmatprep.mubr.f32.mxu0 0.0
        %1646 = vmatmul.mubr.f32.gmra.mrb[0].mxu0 %v1577
        %v1647 = vpop.f32.mrb[0].mxu0
        %v1648 = vadd.f32 0.0, %v1647
        %v1649 = vpop.f32.mrb[0].mxu0
        %v1650 = vadd.f32 0.0, %v1649
        %1651 = vmatprep.mubr.f32.mxu0 0.0
        %1652 = vmatmul.mubr.f32.gmra.mrb[0].mxu0 %v1579
        %v1653 = vpop.f32.mrb[0].mxu0
        %v1654 = vadd.f32 0.0, %v1653
        %v1655 = vpop.f32.mrb[0].mxu0
        %v1656 = vadd.f32 0.0, %v1655
        %1657 = vdwg.mxu0
        %v1658 = vsel %vm1576, %v1511, 0
        %v1660 = vsel %vm1576, %v1512, 0
        %1662 = vmatprep.subr.mxu0 %v1514
        %1663 = vmatpush1.msra.mxu0 %v1513
        %1664 = vmatprep.subr.mxu0 %v1516
        %1665 = vmatpush1.msra.mxu0 %v1515
        %1666 = vmatprep.subr.mxu0 %v1518
        %1667 = vmatpush1.msra.mxu0 %v1517
        %1668 = vmatprep.subr.mxu0 %v1520
        %1669 = vmatpush1.msra.mxu0 %v1519
        %1670 = vmatprep.subr.mxu0 %v1522
        %1671 = vmatpush1.msra.mxu0 %v1521
        %1672 = vmatprep.subr.mxu0 %v1524
        %1673 = vmatpush1.msra.mxu0 %v1523
        %1674 = vmatprep.subr.mxu0 %v1526
        %1675 = vmatpush1.msra.mxu0 %v1525
        %1676 = vmatprep.subr.mxu0 %v1528
        %1677 = vmatpush1.msra.mxu0 %v1527
        %1678 = vmatprep.subr.mxu0 %v1530
        %1679 = vmatpush1.msra.mxu0 %v1529
        %1680 = vmatprep.subr.mxu0 %v1532
        %1681 = vmatpush1.msra.mxu0 %v1531
        %1682 = vmatprep.subr.mxu0 %v1534
        %1683 = vmatpush1.msra.mxu0 %v1533
        %1684 = vmatprep.subr.mxu0 %v1536
        %1685 = vmatpush1.msra.mxu0 %v1535
        %1686 = vmatprep.subr.mxu0 %v1538
        %1687 = vmatpush1.msra.mxu0 %v1537
        %1688 = vmatprep.subr.mxu0 %v1540
        %1689 = vmatpush1.msra.mxu0 %v1539
        %1690 = vmatprep.subr.mxu0 0.0
        %1691 = vmatpush1.msra.mxu0 0.0
        %1692 = vmatprep.subr.mxu0 0.0
        %1693 = vmatpush1.msra.mxu0 0.0
        %1694 = vmatprep.subr.mxu0 0.0
        %1695 = vmatpush1.msra.mxu0 0.0
        %1696 = vmatprep.subr.mxu0 0.0
        %1697 = vmatpush1.msra.mxu0 0.0
        %1698 = vmatprep.subr.mxu0 0.0
        %1699 = vmatpush1.msra.mxu0 0.0
        %1700 = vmatprep.subr.mxu0 0.0
        %1701 = vmatpush1.msra.mxu0 0.0
        %1702 = vmatprep.subr.mxu0 0.0
        %1703 = vmatpush1.msra.mxu0 0.0
        %1704 = vmatprep.subr.mxu0 0.0
        %1705 = vmatpush1.msra.mxu0 0.0
        %1706 = vmatprep.subr.mxu0 0.0
        %1707 = vmatpush1.msra.mxu0 0.0
        %1708 = vmatprep.subr.mxu0 0.0
        %1709 = vmatpush1.msra.mxu0 0.0
        %1710 = vmatprep.subr.mxu0 0.0
        %1711 = vmatpush1.msra.mxu0 0.0
        %1712 = vmatprep.subr.mxu0 0.0
        %1713 = vmatpush1.msra.mxu0 0.0
        %1714 = vmatprep.subr.mxu0 0.0
        %1715 = vmatpush1.msra.mxu0 0.0
        %1716 = vmatprep.subr.mxu0 0.0
        %1717 = vmatpush1.msra.mxu0 0.0
        %1718 = vmatprep.subr.mxu0 0.0
        %1719 = vmatpush1.msra.mxu0 0.0
        %1720 = vmatprep.subr.mxu0 0.0
        %1721 = vmatpush1.msra.mxu0 0.0
        %1722 = vmatprep.subr.mxu0 0.0
        %1723 = vmatpush1.msra.mxu0 0.0
        %1724 = vmatprep.subr.mxu0 0.0
        %1725 = vmatpush1.msra.mxu0 0.0
        %1726 = vmatprep.mubr.f32.mxu0 0.0
        %1727 = vmatmul.mubr.f32.gmra.mrb[0].mxu0 %v1658
        %v1728 = vpop.f32.mrb[0].mxu0
        %v1729 = vadd.f32 %v1648, %v1728
        %v1730 = vpop.f32.mrb[0].mxu0
        %v1731 = vadd.f32 %v1650, %v1730
        %1732 = vmatprep.mubr.f32.mxu0 0.0
        %1733 = vmatmul.mubr.f32.gmra.mrb[0].mxu0 %v1660
        %v1734 = vpop.f32.mrb[0].mxu0
        %v1735 = vadd.f32 %v1654, %v1734
        %v1736 = vpop.f32.mrb[0].mxu0
        %v1737 = vadd.f32 %v1656, %v1736
        %1738 = vdwg.mxu0
        %s1739 = scalar_lea.vmem %s5, 448
        %v1740 = vld [vmem:[%s1739] sm:$0xff]
        %v1741 = vld [vmem:[%s1739 + $0x8] sm:$0xff]
        %v1742 = vld [vmem:[%s1739 + $0x10] sm:$0xff]
        %v1743 = vld [vmem:[%s1739 + $0x18] sm:$0xff]
        %v1744 = vld [vmem:[%s1739 + $0x20] sm:$0xff]
        %v1745 = vld [vmem:[%s1739 + $0x28] sm:$0xff]
        %v1746 = vld [vmem:[%s1739 + $0x30] sm:$0xff]
        %v1747 = vld [vmem:[%s1739 + $0x38] sm:$0xff]
        %v1748 = vld [vmem:[%s1739 + $0x40] sm:$0xff]
        %v1749 = vld [vmem:[%s1739 + $0x48] sm:$0xff]
        %v1750 = vld [vmem:[%s1739 + $0x50] sm:$0xff]
        %v1751 = vld [vmem:[%s1739 + $0x58] sm:$0xff]
        %v1752 = vld [vmem:[%s1739 + $0x60] sm:$0xff]
        %v1753 = vld [vmem:[%s1739 + $0x68] sm:$0xff]
        %v1754 = vld [vmem:[%s1739 + $0x70] sm:$0xff]
        %v1755 = vld [vmem:[%s1739 + $0x78] sm:$0xff]
        %v1756 = vld [vmem:[%s1739 + $0x80] sm:$0xff]
        %v1757 = vld [vmem:[%s1739 + $0x88] sm:$0xff]
        %v1758 = vld [vmem:[%s1739 + $0x90] sm:$0xff]
        %v1759 = vld [vmem:[%s1739 + $0x98] sm:$0xff]
        %v1760 = vld [vmem:[%s1739 + $0xa0] sm:$0xff]
        %v1761 = vld [vmem:[%s1739 + $0xa8] sm:$0xff]
        %v1762 = vld [vmem:[%s1739 + $0xb0] sm:$0xff]
        %v1763 = vld [vmem:[%s1739 + $0xb8] sm:$0xff]
        %v1764 = vld [vmem:[%s1739 + $0xc0] sm:$0xff]
        %v1765 = vld [vmem:[%s1739 + $0xc8] sm:$0xff]
        %v1766 = vld [vmem:[%s1739 + $0xd0] sm:$0xff]
        %v1767 = vld [vmem:[%s1739 + $0xd8] sm:$0xff]
        %vm1768 = vcmask 1045504
        %v1769 = vrot.slane %v1511, 2
        %v1770 = vrot.slane %v1512, 2
        %v1771 = vsel %vm1768, %v1769, %v1770
        %v1772 = vsel %vm1576, %v1771, 0
        %v1774 = vsel %vm1576, %v1770, 0
        %1776 = vmatprep.subr.mxu0 %v1741
        %1777 = vmatpush1.msra.mxu0 %v1740
        %1778 = vmatprep.subr.mxu0 %v1743
        %1779 = vmatpush1.msra.mxu0 %v1742
        %1780 = vmatprep.subr.mxu0 %v1745
        %1781 = vmatpush1.msra.mxu0 %v1744
        %1782 = vmatprep.subr.mxu0 %v1747
        %1783 = vmatpush1.msra.mxu0 %v1746
        %1784 = vmatprep.subr.mxu0 %v1749
        %1785 = vmatpush1.msra.mxu0 %v1748
        %1786 = vmatprep.subr.mxu0 %v1751
        %1787 = vmatpush1.msra.mxu0 %v1750
        %1788 = vmatprep.subr.mxu0 %v1753
        %1789 = vmatpush1.msra.mxu0 %v1752
        %1790 = vmatprep.subr.mxu0 %v1755
        %1791 = vmatpush1.msra.mxu0 %v1754
        %1792 = vmatprep.subr.mxu0 %v1757
        %1793 = vmatpush1.msra.mxu0 %v1756
        %1794 = vmatprep.subr.mxu0 %v1759
        %1795 = vmatpush1.msra.mxu0 %v1758
        %1796 = vmatprep.subr.mxu0 %v1761
        %1797 = vmatpush1.msra.mxu0 %v1760
        %1798 = vmatprep.subr.mxu0 %v1763
        %1799 = vmatpush1.msra.mxu0 %v1762
        %1800 = vmatprep.subr.mxu0 %v1765
        %1801 = vmatpush1.msra.mxu0 %v1764
        %1802 = vmatprep.subr.mxu0 %v1767
        %1803 = vmatpush1.msra.mxu0 %v1766
        %1804 = vmatprep.subr.mxu0 0.0
        %1805 = vmatpush1.msra.mxu0 0.0
        %1806 = vmatprep.subr.mxu0 0.0
        %1807 = vmatpush1.msra.mxu0 0.0
        %1808 = vmatprep.subr.mxu0 0.0
        %1809 = vmatpush1.msra.mxu0 0.0
        %1810 = vmatprep.subr.mxu0 0.0
        %1811 = vmatpush1.msra.mxu0 0.0
        %1812 = vmatprep.subr.mxu0 0.0
        %1813 = vmatpush1.msra.mxu0 0.0
        %1814 = vmatprep.subr.mxu0 0.0
        %1815 = vmatpush1.msra.mxu0 0.0
        %1816 = vmatprep.subr.mxu0 0.0
        %1817 = vmatpush1.msra.mxu0 0.0
        %1818 = vmatprep.subr.mxu0 0.0
        %1819 = vmatpush1.msra.mxu0 0.0
        %1820 = vmatprep.subr.mxu0 0.0
        %1821 = vmatpush1.msra.mxu0 0.0
        %1822 = vmatprep.subr.mxu0 0.0
        %1823 = vmatpush1.msra.mxu0 0.0
        %1824 = vmatprep.subr.mxu0 0.0
        %1825 = vmatpush1.msra.mxu0 0.0
        %1826 = vmatprep.subr.mxu0 0.0
        %1827 = vmatpush1.msra.mxu0 0.0
        %1828 = vmatprep.subr.mxu0 0.0
        %1829 = vmatpush1.msra.mxu0 0.0
        %1830 = vmatprep.subr.mxu0 0.0
        %1831 = vmatpush1.msra.mxu0 0.0
        %1832 = vmatprep.subr.mxu0 0.0
        %1833 = vmatpush1.msra.mxu0 0.0
        %1834 = vmatprep.subr.mxu0 0.0
        %1835 = vmatpush1.msra.mxu0 0.0
        %1836 = vmatprep.subr.mxu0 0.0
        %1837 = vmatpush1.msra.mxu0 0.0
        %1838 = vmatprep.subr.mxu0 0.0
        %1839 = vmatpush1.msra.mxu0 0.0
        %1840 = vmatprep.mubr.f32.mxu0 0.0
        %1841 = vmatmul.mubr.f32.gmra.mrb[0].mxu0 %v1772
        %v1842 = vpop.f32.mrb[0].mxu0
        %v1843 = vadd.f32 0.0, %v1842
        %v1844 = vpop.f32.mrb[0].mxu0
        %v1845 = vadd.f32 0.0, %v1844
        %1846 = vmatprep.mubr.f32.mxu0 0.0
        %1847 = vmatmul.mubr.f32.gmra.mrb[0].mxu0 %v1774
        %v1848 = vpop.f32.mrb[0].mxu0
        %v1849 = vadd.f32 0.0, %v1848
        %v1850 = vpop.f32.mrb[0].mxu0
        %v1851 = vadd.f32 0.0, %v1850
        %1852 = vdwg.mxu0
        %v1853 = vadd.f32 %v1729, %v1843
        %v1854 = vadd.f32 %v1731, %v1845
        %v1855 = vadd.f32 %v1735, %v1849
        %v1856 = vadd.f32 %v1737, %v1851
        %s1857 = scalar_lea.vmem %s5, 672
        %v1858 = vld [vmem:[%s1857] sm:$0xff]
        %v1859 = vld [vmem:[%s1857 + $0x8] sm:$0xff]
        %v1860 = vld [vmem:[%s1857 + $0x10] sm:$0xff]
        %v1861 = vld [vmem:[%s1857 + $0x18] sm:$0xff]
        %v1862 = vld [vmem:[%s1857 + $0x20] sm:$0xff]
        %v1863 = vld [vmem:[%s1857 + $0x28] sm:$0xff]
        %v1864 = vld [vmem:[%s1857 + $0x30] sm:$0xff]
        %v1865 = vld [vmem:[%s1857 + $0x38] sm:$0xff]
        %v1866 = vld [vmem:[%s1857 + $0x40] sm:$0xff]
        %v1867 = vld [vmem:[%s1857 + $0x48] sm:$0xff]
        %v1868 = vld [vmem:[%s1857 + $0x50] sm:$0xff]
        %v1869 = vld [vmem:[%s1857 + $0x58] sm:$0xff]
        %v1870 = vld [vmem:[%s1857 + $0x60] sm:$0xff]
        %v1871 = vld [vmem:[%s1857 + $0x68] sm:$0xff]
        %v1872 = vld [vmem:[%s1857 + $0x70] sm:$0xff]
        %v1873 = vld [vmem:[%s1857 + $0x78] sm:$0xff]
        %v1874 = vld [vmem:[%s1857 + $0x80] sm:$0xff]
        %v1875 = vld [vmem:[%s1857 + $0x88] sm:$0xff]
        %v1876 = vld [vmem:[%s1857 + $0x90] sm:$0xff]
        %v1877 = vld [vmem:[%s1857 + $0x98] sm:$0xff]
        %v1878 = vld [vmem:[%s1857 + $0xa0] sm:$0xff]
        %v1879 = vld [vmem:[%s1857 + $0xa8] sm:$0xff]
        %v1880 = vld [vmem:[%s1857 + $0xb0] sm:$0xff]
        %v1881 = vld [vmem:[%s1857 + $0xb8] sm:$0xff]
        %v1882 = vld [vmem:[%s1857 + $0xc0] sm:$0xff]
        %v1883 = vld [vmem:[%s1857 + $0xc8] sm:$0xff]
        %v1884 = vld [vmem:[%s1857 + $0xd0] sm:$0xff]
        %v1885 = vld [vmem:[%s1857 + $0xd8] sm:$0xff]
        %vm1886 = vcmask 1044480
        %v1887 = vrot.slane %v1511, 3
        %v1888 = vrot.slane %v1512, 3
        %v1889 = vsel %vm1886, %v1887, %v1888
        %v1890 = vsel %vm1576, %v1889, 0
        %v1892 = vsel %vm1576, %v1888, 0
        %1894 = vmatprep.subr.mxu0 %v1859
        %1895 = vmatpush1.msra.mxu0 %v1858
        %1896 = vmatprep.subr.mxu0 %v1861
        %1897 = vmatpush1.msra.mxu0 %v1860
        %1898 = vmatprep.subr.mxu0 %v1863
        %1899 = vmatpush1.msra.mxu0 %v1862
        %1900 = vmatprep.subr.mxu0 %v1865
        %1901 = vmatpush1.msra.mxu0 %v1864
        %1902 = vmatprep.subr.mxu0 %v1867
        %1903 = vmatpush1.msra.mxu0 %v1866
        %1904 = vmatprep.subr.mxu0 %v1869
        %1905 = vmatpush1.msra.mxu0 %v1868
        %1906 = vmatprep.subr.mxu0 %v1871
        %1907 = vmatpush1.msra.mxu0 %v1870
        %1908 = vmatprep.subr.mxu0 %v1873
        %1909 = vmatpush1.msra.mxu0 %v1872
        %1910 = vmatprep.subr.mxu0 %v1875
        %1911 = vmatpush1.msra.mxu0 %v1874
        %1912 = vmatprep.subr.mxu0 %v1877
        %1913 = vmatpush1.msra.mxu0 %v1876
        %1914 = vmatprep.subr.mxu0 %v1879
        %1915 = vmatpush1.msra.mxu0 %v1878
        %1916 = vmatprep.subr.mxu0 %v1881
        %1917 = vmatpush1.msra.mxu0 %v1880
        %1918 = vmatprep.subr.mxu0 %v1883
        %1919 = vmatpush1.msra.mxu0 %v1882
        %1920 = vmatprep.subr.mxu0 %v1885
        %1921 = vmatpush1.msra.mxu0 %v1884
        %1922 = vmatprep.subr.mxu0 0.0
        %1923 = vmatpush1.msra.mxu0 0.0
        %1924 = vmatprep.subr.mxu0 0.0
        %1925 = vmatpush1.msra.mxu0 0.0
        %1926 = vmatprep.subr.mxu0 0.0
        %1927 = vmatpush1.msra.mxu0 0.0
        %1928 = vmatprep.subr.mxu0 0.0
        %1929 = vmatpush1.msra.mxu0 0.0
        %1930 = vmatprep.subr.mxu0 0.0
        %1931 = vmatpush1.msra.mxu0 0.0
        %1932 = vmatprep.subr.mxu0 0.0
        %1933 = vmatpush1.msra.mxu0 0.0
        %1934 = vmatprep.subr.mxu0 0.0
        %1935 = vmatpush1.msra.mxu0 0.0
        %1936 = vmatprep.subr.mxu0 0.0
        %1937 = vmatpush1.msra.mxu0 0.0
        %1938 = vmatprep.subr.mxu0 0.0
        %1939 = vmatpush1.msra.mxu0 0.0
        %1940 = vmatprep.subr.mxu0 0.0
        %1941 = vmatpush1.msra.mxu0 0.0
        %1942 = vmatprep.subr.mxu0 0.0
        %1943 = vmatpush1.msra.mxu0 0.0
        %1944 = vmatprep.subr.mxu0 0.0
        %1945 = vmatpush1.msra.mxu0 0.0
        %1946 = vmatprep.subr.mxu0 0.0
        %1947 = vmatpush1.msra.mxu0 0.0
        %1948 = vmatprep.subr.mxu0 0.0
        %1949 = vmatpush1.msra.mxu0 0.0
        %1950 = vmatprep.subr.mxu0 0.0
        %1951 = vmatpush1.msra.mxu0 0.0
        %1952 = vmatprep.subr.mxu0 0.0
        %1953 = vmatpush1.msra.mxu0 0.0
        %1954 = vmatprep.subr.mxu0 0.0
        %1955 = vmatpush1.msra.mxu0 0.0
        %1956 = vmatprep.subr.mxu0 0.0
        %1957 = vmatpush1.msra.mxu0 0.0
        %1958 = vmatprep.mubr.f32.mxu0 0.0
        %1959 = vmatmul.mubr.f32.gmra.mrb[0].mxu0 %v1890
        %v1960 = vpop.f32.mrb[0].mxu0
        %v1961 = vadd.f32 0.0, %v1960
        %v1962 = vpop.f32.mrb[0].mxu0
        %v1963 = vadd.f32 0.0, %v1962
        %1964 = vmatprep.mubr.f32.mxu0 0.0
        %1965 = vmatmul.mubr.f32.gmra.mrb[0].mxu0 %v1892
        %v1966 = vpop.f32.mrb[0].mxu0
        %v1967 = vadd.f32 0.0, %v1966
        %v1968 = vpop.f32.mrb[0].mxu0
        %v1969 = vadd.f32 0.0, %v1968
        %1970 = vdwg.mxu0
        %v1971 = vadd.f32 %v1853, %v1961
        %v1972 = vadd.f32 %v1854, %v1963
        %v1973 = vadd.f32 %v1855, %v1967
        %v1974 = vadd.f32 %v1856, %v1969
        %s1975 = scalar_lea.vmem %s5, 896
        %v1976 = vld [vmem:[%s1975] sm:$0xff]
        %v1977 = vld [vmem:[%s1975 + $0x8] sm:$0xff]
        %v1978 = vld [vmem:[%s1975 + $0x10] sm:$0xff]
        %v1979 = vld [vmem:[%s1975 + $0x18] sm:$0xff]
        %v1980 = vld [vmem:[%s1975 + $0x20] sm:$0xff]
        %v1981 = vld [vmem:[%s1975 + $0x28] sm:$0xff]
        %v1982 = vld [vmem:[%s1975 + $0x30] sm:$0xff]
        %v1983 = vld [vmem:[%s1975 + $0x38] sm:$0xff]
        %v1984 = vld [vmem:[%s1975 + $0x40] sm:$0xff]
        %v1985 = vld [vmem:[%s1975 + $0x48] sm:$0xff]
        %v1986 = vld [vmem:[%s1975 + $0x50] sm:$0xff]
        %v1987 = vld [vmem:[%s1975 + $0x58] sm:$0xff]
        %v1988 = vld [vmem:[%s1975 + $0x60] sm:$0xff]
        %v1989 = vld [vmem:[%s1975 + $0x68] sm:$0xff]
        %v1990 = vld [vmem:[%s1975 + $0x70] sm:$0xff]
        %v1991 = vld [vmem:[%s1975 + $0x78] sm:$0xff]
        %v1992 = vld [vmem:[%s1975 + $0x80] sm:$0xff]
        %v1993 = vld [vmem:[%s1975 + $0x88] sm:$0xff]
        %v1994 = vld [vmem:[%s1975 + $0x90] sm:$0xff]
        %v1995 = vld [vmem:[%s1975 + $0x98] sm:$0xff]
        %v1996 = vld [vmem:[%s1975 + $0xa0] sm:$0xff]
        %v1997 = vld [vmem:[%s1975 + $0xa8] sm:$0xff]
        %v1998 = vld [vmem:[%s1975 + $0xb0] sm:$0xff]
        %v1999 = vld [vmem:[%s1975 + $0xb8] sm:$0xff]
        %v2000 = vld [vmem:[%s1975 + $0xc0] sm:$0xff]
        %v2001 = vld [vmem:[%s1975 + $0xc8] sm:$0xff]
        %v2002 = vld [vmem:[%s1975 + $0xd0] sm:$0xff]
        %v2003 = vld [vmem:[%s1975 + $0xd8] sm:$0xff]
        %v2004 = vrot.slane %v1511, 4
        %v2005 = vrot.slane %v1512, 4
        %v2006 = vsel %vm1123, %v2004, %v2005
        %v2007 = vsel %vm1576, %v2006, 0
        %v2009 = vsel %vm1576, %v2005, 0
        %2011 = vmatprep.subr.mxu0 %v1977
        %2012 = vmatpush1.msra.mxu0 %v1976
        %2013 = vmatprep.subr.mxu0 %v1979
        %2014 = vmatpush1.msra.mxu0 %v1978
        %2015 = vmatprep.subr.mxu0 %v1981
        %2016 = vmatpush1.msra.mxu0 %v1980
        %2017 = vmatprep.subr.mxu0 %v1983
        %2018 = vmatpush1.msra.mxu0 %v1982
        %2019 = vmatprep.subr.mxu0 %v1985
        %2020 = vmatpush1.msra.mxu0 %v1984
        %2021 = vmatprep.subr.mxu0 %v1987
        %2022 = vmatpush1.msra.mxu0 %v1986
        %2023 = vmatprep.subr.mxu0 %v1989
        %2024 = vmatpush1.msra.mxu0 %v1988
        %2025 = vmatprep.subr.mxu0 %v1991
        %2026 = vmatpush1.msra.mxu0 %v1990
        %2027 = vmatprep.subr.mxu0 %v1993
        %2028 = vmatpush1.msra.mxu0 %v1992
        %2029 = vmatprep.subr.mxu0 %v1995
        %2030 = vmatpush1.msra.mxu0 %v1994
        %2031 = vmatprep.subr.mxu0 %v1997
        %2032 = vmatpush1.msra.mxu0 %v1996
        %2033 = vmatprep.subr.mxu0 %v1999
        %2034 = vmatpush1.msra.mxu0 %v1998
        %2035 = vmatprep.subr.mxu0 %v2001
        %2036 = vmatpush1.msra.mxu0 %v2000
        %2037 = vmatprep.subr.mxu0 %v2003
        %2038 = vmatpush1.msra.mxu0 %v2002
        %2039 = vmatprep.subr.mxu0 0.0
        %2040 = vmatpush1.msra.mxu0 0.0
        %2041 = vmatprep.subr.mxu0 0.0
        %2042 = vmatpush1.msra.mxu0 0.0
        %2043 = vmatprep.subr.mxu0 0.0
        %2044 = vmatpush1.msra.mxu0 0.0
        %2045 = vmatprep.subr.mxu0 0.0
        %2046 = vmatpush1.msra.mxu0 0.0
        %2047 = vmatprep.subr.mxu0 0.0
        %2048 = vmatpush1.msra.mxu0 0.0
        %2049 = vmatprep.subr.mxu0 0.0
        %2050 = vmatpush1.msra.mxu0 0.0
        %2051 = vmatprep.subr.mxu0 0.0
        %2052 = vmatpush1.msra.mxu0 0.0
        %2053 = vmatprep.subr.mxu0 0.0
        %2054 = vmatpush1.msra.mxu0 0.0
        %2055 = vmatprep.subr.mxu0 0.0
        %2056 = vmatpush1.msra.mxu0 0.0
        %2057 = vmatprep.subr.mxu0 0.0
        %2058 = vmatpush1.msra.mxu0 0.0
        %2059 = vmatprep.subr.mxu0 0.0
        %2060 = vmatpush1.msra.mxu0 0.0
        %2061 = vmatprep.subr.mxu0 0.0
        %2062 = vmatpush1.msra.mxu0 0.0
        %2063 = vmatprep.subr.mxu0 0.0
        %2064 = vmatpush1.msra.mxu0 0.0
        %2065 = vmatprep.subr.mxu0 0.0
        %2066 = vmatpush1.msra.mxu0 0.0
        %2067 = vmatprep.subr.mxu0 0.0
        %2068 = vmatpush1.msra.mxu0 0.0
        %2069 = vmatprep.subr.mxu0 0.0
        %2070 = vmatpush1.msra.mxu0 0.0
        %2071 = vmatprep.subr.mxu0 0.0
        %2072 = vmatpush1.msra.mxu0 0.0
        %2073 = vmatprep.subr.mxu0 0.0
        %2074 = vmatpush1.msra.mxu0 0.0
        %2075 = vmatprep.mubr.f32.mxu0 0.0
        %2076 = vmatmul.mubr.f32.gmra.mrb[0].mxu0 %v2007
        %v2077 = vpop.f32.mrb[0].mxu0
        %v2078 = vadd.f32 0.0, %v2077
        %v2079 = vpop.f32.mrb[0].mxu0
        %v2080 = vadd.f32 0.0, %v2079
        %2081 = vmatprep.mubr.f32.mxu0 0.0
        %2082 = vmatmul.mubr.f32.gmra.mrb[0].mxu0 %v2009
        %v2083 = vpop.f32.mrb[0].mxu0
        %v2084 = vadd.f32 0.0, %v2083
        %v2085 = vpop.f32.mrb[0].mxu0
        %v2086 = vadd.f32 0.0, %v2085
        %2087 = vdwg.mxu0
        %v2088 = vadd.f32 %v1971, %v2078
        %v2089 = vadd.f32 %v1972, %v2080
        %v2090 = vadd.f32 %v1973, %v2084
        %v2091 = vadd.f32 %v1974, %v2086
        %v2092 = vld [vmem:[%s6] sm:$0x3]
        %v2094 = vlaneseq
        %v2095 = vshrl.u32 %v2094, 7
        %v2096 = vsub.s32 0, %v2095
        %v2097 = vrot.slane %v2092, %v2096
        %v2098 = vlaneseq
        %v2099 = vshrl.u32 %v2098, 7
        %v2100 = vsub.s32 1, %v2099
        %v2101 = vrot.slane %v2092, %v2100
        %v2104 = vadd.f32 %v2088, %v2097
        %v2105 = vadd.f32 %v2089, %v2101
        %v2106 = vadd.f32 %v2090, %v2097
        %v2107 = vadd.f32 %v2091, %v2101
        %v2108 = vmax.f32 %v2104, 0.0
        %v2109 = vmax.f32 %v2105, 0.0
        %v2110 = vmax.f32 %v2106, 0.0
        %v2111 = vmax.f32 %v2107, 0.0
        %v2112 = vld [vmem:[%s7] sm:$0x1f]
        %vm2113 = vcmask 80896
        %v2115 = vsel %vm2113, %v2112, 0
        %vm2117 = vcmask 1041408
        %v2119 = vsel %vm2117, %v2110, 0
        %v2122 = vsel %vm2117, %v2111, 0
        %2124 = vmatprep.subr.mxu0 %v2109
        %2125 = vmatpush1.msra.mxu0 %v2108
        %2126 = vmatprep.subr.mxu0 %v2122
        %2127 = vmatpush1.msra.mxu0 %v2119
        %2128 = vmatprep.subr.mxu0 0.0
        %2129 = vmatpush1.msra.mxu0 0.0
        %2130 = vmatprep.subr.mxu0 0.0
        %2131 = vmatpush1.msra.mxu0 0.0
        %2132 = vmatprep.subr.mxu0 0.0
        %2133 = vmatpush1.msra.mxu0 0.0
        %2134 = vmatprep.subr.mxu0 0.0
        %2135 = vmatpush1.msra.mxu0 0.0
        %2136 = vmatprep.subr.mxu0 0.0
        %2137 = vmatpush1.msra.mxu0 0.0
        %2138 = vmatprep.subr.mxu0 0.0
        %2139 = vmatpush1.msra.mxu0 0.0
        %2140 = vmatprep.subr.mxu0 0.0
        %2141 = vmatpush1.msra.mxu0 0.0
        %2142 = vmatprep.subr.mxu0 0.0
        %2143 = vmatpush1.msra.mxu0 0.0
        %2144 = vmatprep.subr.mxu0 0.0
        %2145 = vmatpush1.msra.mxu0 0.0
        %2146 = vmatprep.subr.mxu0 0.0
        %2147 = vmatpush1.msra.mxu0 0.0
        %2148 = vmatprep.subr.mxu0 0.0
        %2149 = vmatpush1.msra.mxu0 0.0
        %2150 = vmatprep.subr.mxu0 0.0
        %2151 = vmatpush1.msra.mxu0 0.0
        %2152 = vmatprep.subr.mxu0 0.0
        %2153 = vmatpush1.msra.mxu0 0.0
        %2154 = vmatprep.subr.mxu0 0.0
        %2155 = vmatpush1.msra.mxu0 0.0
        %2156 = vmatprep.subr.mxu0 0.0
        %2157 = vmatpush1.msra.mxu0 0.0
        %2158 = vmatprep.subr.mxu0 0.0
        %2159 = vmatpush1.msra.mxu0 0.0
        %2160 = vmatprep.subr.mxu0 0.0
        %2161 = vmatpush1.msra.mxu0 0.0
        %2162 = vmatprep.subr.mxu0 0.0
        %2163 = vmatpush1.msra.mxu0 0.0
        %2164 = vmatprep.subr.mxu0 0.0
        %2165 = vmatpush1.msra.mxu0 0.0
        %2166 = vmatprep.subr.mxu0 0.0
        %2167 = vmatpush1.msra.mxu0 0.0
        %2168 = vmatprep.subr.mxu0 0.0
        %2169 = vmatpush1.msra.mxu0 0.0
        %2170 = vmatprep.subr.mxu0 0.0
        %2171 = vmatpush1.msra.mxu0 0.0
        %2172 = vmatprep.subr.mxu0 0.0
        %2173 = vmatpush1.msra.mxu0 0.0
        %2174 = vmatprep.subr.mxu0 0.0
        %2175 = vmatpush1.msra.mxu0 0.0
        %2176 = vmatprep.subr.mxu0 0.0
        %2177 = vmatpush1.msra.mxu0 0.0
        %2178 = vmatprep.subr.mxu0 0.0
        %2179 = vmatpush1.msra.mxu0 0.0
        %2180 = vmatprep.subr.mxu0 0.0
        %2181 = vmatpush1.msra.mxu0 0.0
        %2182 = vmatprep.subr.mxu0 0.0
        %2183 = vmatpush1.msra.mxu0 0.0
        %2184 = vmatprep.subr.mxu0 0.0
        %2185 = vmatpush1.msra.mxu0 0.0
        %2186 = vmatprep.subr.mxu0 0.0
        %2187 = vmatpush1.msra.mxu0 0.0
        %2188 = vmatprep.mubr.f32.mxu0 0.0
        %2189 = vmatmul.mubr.f32.gmra.mrb[0].mxu0 %v2115
        %v2190 = vpop.f32.mrb[0].mxu0
        %v2191 = vadd.f32 0.0, %v2190
        %v2192 = vpop.f32.mrb[0].mxu0
        %v2193 = vadd.f32 0.0, %v2192
        %2194 = vdwg.mxu0
        %s2195 = scalar_lea.vmem %s7, 8
        %v2196 = vld [vmem:[%s2195] sm:$0x1f]
        %v2198 = vsel %vm2113, %v2196, 0
        %2200 = vmatprep.subr.mxu0 %v2109
        %2201 = vmatpush1.msra.mxu0 %v2108
        %2202 = vmatprep.subr.mxu0 %v2122
        %2203 = vmatpush1.msra.mxu0 %v2119
        %2204 = vmatprep.subr.mxu0 0.0
        %2205 = vmatpush1.msra.mxu0 0.0
        %2206 = vmatprep.subr.mxu0 0.0
        %2207 = vmatpush1.msra.mxu0 0.0
        %2208 = vmatprep.subr.mxu0 0.0
        %2209 = vmatpush1.msra.mxu0 0.0
        %2210 = vmatprep.subr.mxu0 0.0
        %2211 = vmatpush1.msra.mxu0 0.0
        %2212 = vmatprep.subr.mxu0 0.0
        %2213 = vmatpush1.msra.mxu0 0.0
        %2214 = vmatprep.subr.mxu0 0.0
        %2215 = vmatpush1.msra.mxu0 0.0
        %2216 = vmatprep.subr.mxu0 0.0
        %2217 = vmatpush1.msra.mxu0 0.0
        %2218 = vmatprep.subr.mxu0 0.0
        %2219 = vmatpush1.msra.mxu0 0.0
        %2220 = vmatprep.subr.mxu0 0.0
        %2221 = vmatpush1.msra.mxu0 0.0
        %2222 = vmatprep.subr.mxu0 0.0
        %2223 = vmatpush1.msra.mxu0 0.0
        %2224 = vmatprep.subr.mxu0 0.0
        %2225 = vmatpush1.msra.mxu0 0.0
        %2226 = vmatprep.subr.mxu0 0.0
        %2227 = vmatpush1.msra.mxu0 0.0
        %2228 = vmatprep.subr.mxu0 0.0
        %2229 = vmatpush1.msra.mxu0 0.0
        %2230 = vmatprep.subr.mxu0 0.0
        %2231 = vmatpush1.msra.mxu0 0.0
        %2232 = vmatprep.subr.mxu0 0.0
        %2233 = vmatpush1.msra.mxu0 0.0
        %2234 = vmatprep.subr.mxu0 0.0
        %2235 = vmatpush1.msra.mxu0 0.0
        %2236 = vmatprep.subr.mxu0 0.0
        %2237 = vmatpush1.msra.mxu0 0.0
        %2238 = vmatprep.subr.mxu0 0.0
        %2239 = vmatpush1.msra.mxu0 0.0
        %2240 = vmatprep.subr.mxu0 0.0
        %2241 = vmatpush1.msra.mxu0 0.0
        %2242 = vmatprep.subr.mxu0 0.0
        %2243 = vmatpush1.msra.mxu0 0.0
        %2244 = vmatprep.subr.mxu0 0.0
        %2245 = vmatpush1.msra.mxu0 0.0
        %2246 = vmatprep.subr.mxu0 0.0
        %2247 = vmatpush1.msra.mxu0 0.0
        %2248 = vmatprep.subr.mxu0 0.0
        %2249 = vmatpush1.msra.mxu0 0.0
        %2250 = vmatprep.subr.mxu0 0.0
        %2251 = vmatpush1.msra.mxu0 0.0
        %2252 = vmatprep.subr.mxu0 0.0
        %2253 = vmatpush1.msra.mxu0 0.0
        %2254 = vmatprep.subr.mxu0 0.0
        %2255 = vmatpush1.msra.mxu0 0.0
        %2256 = vmatprep.subr.mxu0 0.0
        %2257 = vmatpush1.msra.mxu0 0.0
        %2258 = vmatprep.subr.mxu0 0.0
        %2259 = vmatpush1.msra.mxu0 0.0
        %2260 = vmatprep.subr.mxu0 0.0
        %2261 = vmatpush1.msra.mxu0 0.0
        %2262 = vmatprep.subr.mxu0 0.0
        %2263 = vmatpush1.msra.mxu0 0.0
        %2264 = vmatprep.mubr.f32.mxu0 0.0
        %2265 = vmatmul.mubr.f32.gmra.mrb[0].mxu0 %v2198
        %v2266 = vpop.f32.mrb[0].mxu0
        %v2267 = vadd.f32 0.0, %v2266
        %v2268 = vpop.f32.mrb[0].mxu0
        %v2269 = vadd.f32 0.0, %v2268
        %2270 = vdwg.mxu0
        %v2271 = vmax.f32 %v2191, %v2267
        %v2272 = vmax.f32 %v2193, %v2269
        %v2273 = vld [vmem:[%s8] sm:$0xff]
        %v2274 = vld [vmem:[%s8 + $0x8] sm:$0xff]
        %v2275 = vld [vmem:[%s8 + $0x10] sm:$0xff]
        %v2276 = vld [vmem:[%s8 + $0x18] sm:$0xff]
        %v2277 = vld [vmem:[%s8 + $0x20] sm:$0xff]
        %v2278 = vld [vmem:[%s8 + $0x28] sm:$0xff]
        %v2279 = vld [vmem:[%s8 + $0x30] sm:$0xff]
        %v2280 = vld [vmem:[%s8 + $0x38] sm:$0xff]
        %v2281 = vld [vmem:[%s8 + $0x40] sm:$0xff]
        %v2282 = vld [vmem:[%s8 + $0x48] sm:$0xff]
        %v2283 = vld [vmem:[%s8 + $0x50] sm:$0xff]
        %v2284 = vld [vmem:[%s8 + $0x58] sm:$0xff]
        %v2285 = vld [vmem:[%s8 + $0x60] sm:$0xff]
        %v2286 = vld [vmem:[%s8 + $0x68] sm:$0xff]
        %v2287 = vld [vmem:[%s8 + $0x70] sm:$0xff]
        %v2288 = vld [vmem:[%s8 + $0x78] sm:$0xff]
        %v2289 = vld [vmem:[%s8 + $0x80] sm:$0xff]
        %v2290 = vld [vmem:[%s8 + $0x88] sm:$0xff]
        %v2291 = vld [vmem:[%s8 + $0x90] sm:$0xff]
        %v2292 = vld [vmem:[%s8 + $0x98] sm:$0xff]
        %v2294 = vsel %vm517, %v2272, 0
        %2296 = vmatprep.subr.mxu0 0.0
        %2297 = vmatpush1.msra.mxu0 %v2273
        %2298 = vmatprep.subr.mxu0 0.0
        %2299 = vmatpush1.msra.mxu0 %v2274
        %2300 = vmatprep.subr.mxu0 0.0
        %2301 = vmatpush1.msra.mxu0 %v2275
        %2302 = vmatprep.subr.mxu0 0.0
        %2303 = vmatpush1.msra.mxu0 %v2276
        %2304 = vmatprep.subr.mxu0 0.0
        %2305 = vmatpush1.msra.mxu0 %v2277
        %2306 = vmatprep.subr.mxu0 0.0
        %2307 = vmatpush1.msra.mxu0 %v2278
        %2308 = vmatprep.subr.mxu0 0.0
        %2309 = vmatpush1.msra.mxu0 %v2279
        %2310 = vmatprep.subr.mxu0 0.0
        %2311 = vmatpush1.msra.mxu0 %v2280
        %2312 = vmatprep.subr.mxu0 0.0
        %2313 = vmatpush1.msra.mxu0 %v2281
        %2314 = vmatprep.subr.mxu0 0.0
        %2315 = vmatpush1.msra.mxu0 %v2282
        %2316 = vmatprep.subr.mxu0 0.0
        %2317 = vmatpush1.msra.mxu0 %v2283
        %2318 = vmatprep.subr.mxu0 0.0
        %2319 = vmatpush1.msra.mxu0 %v2284
        %2320 = vmatprep.subr.mxu0 0.0
        %2321 = vmatpush1.msra.mxu0 %v2285
        %2322 = vmatprep.subr.mxu0 0.0
        %2323 = vmatpush1.msra.mxu0 %v2286
        %2324 = vmatprep.subr.mxu0 0.0
        %2325 = vmatpush1.msra.mxu0 %v2287
        %2326 = vmatprep.subr.mxu0 0.0
        %2327 = vmatpush1.msra.mxu0 %v2288
        %2328 = vmatprep.subr.mxu0 0.0
        %2329 = vmatpush1.msra.mxu0 %v2289
        %2330 = vmatprep.subr.mxu0 0.0
        %2331 = vmatpush1.msra.mxu0 %v2290
        %2332 = vmatprep.subr.mxu0 0.0
        %2333 = vmatpush1.msra.mxu0 %v2291
        %2334 = vmatprep.subr.mxu0 0.0
        %2335 = vmatpush1.msra.mxu0 %v2292
        %2336 = vmatprep.subr.mxu0 0.0
        %2337 = vmatpush1.msra.mxu0 0.0
        %2338 = vmatprep.subr.mxu0 0.0
        %2339 = vmatpush1.msra.mxu0 0.0
        %2340 = vmatprep.subr.mxu0 0.0
        %2341 = vmatpush1.msra.mxu0 0.0
        %2342 = vmatprep.subr.mxu0 0.0
        %2343 = vmatpush1.msra.mxu0 0.0
        %2344 = vmatprep.subr.mxu0 0.0
        %2345 = vmatpush1.msra.mxu0 0.0
        %2346 = vmatprep.subr.mxu0 0.0
        %2347 = vmatpush1.msra.mxu0 0.0
        %2348 = vmatprep.subr.mxu0 0.0
        %2349 = vmatpush1.msra.mxu0 0.0
        %2350 = vmatprep.subr.mxu0 0.0
        %2351 = vmatpush1.msra.mxu0 0.0
        %2352 = vmatprep.subr.mxu0 0.0
        %2353 = vmatpush1.msra.mxu0 0.0
        %2354 = vmatprep.subr.mxu0 0.0
        %2355 = vmatpush1.msra.mxu0 0.0
        %2356 = vmatprep.subr.mxu0 0.0
        %2357 = vmatpush1.msra.mxu0 0.0
        %2358 = vmatprep.subr.mxu0 0.0
        %2359 = vmatpush1.msra.mxu0 0.0
        %2360 = vmatprep.mubr.f32.mxu0 %v2294
        %2361 = vmatmul.mubr.f32.gmra.mrb[0].mxu0 %v2271
        %v2362 = vpop.f32.mrb[0].mxu0
        %v2363 = vadd.f32 0.0, %v2362
        %v2364 = vpop.f32.mrb[0].mxu0
        %2365 = vdwg.mxu0
        %s2366 = scalar_lea.vmem %s8, 160
        %v2367 = vld [vmem:[%s2366] sm:$0xff]
        %v2368 = vld [vmem:[%s2366 + $0x8] sm:$0xff]
        %v2369 = vld [vmem:[%s2366 + $0x10] sm:$0xff]
        %v2370 = vld [vmem:[%s2366 + $0x18] sm:$0xff]
        %v2371 = vld [vmem:[%s2366 + $0x20] sm:$0xff]
        %v2372 = vld [vmem:[%s2366 + $0x28] sm:$0xff]
        %v2373 = vld [vmem:[%s2366 + $0x30] sm:$0xff]
        %v2374 = vld [vmem:[%s2366 + $0x38] sm:$0xff]
        %v2375 = vld [vmem:[%s2366 + $0x40] sm:$0xff]
        %v2376 = vld [vmem:[%s2366 + $0x48] sm:$0xff]
        %v2377 = vld [vmem:[%s2366 + $0x50] sm:$0xff]
        %v2378 = vld [vmem:[%s2366 + $0x58] sm:$0xff]
        %v2379 = vld [vmem:[%s2366 + $0x60] sm:$0xff]
        %v2380 = vld [vmem:[%s2366 + $0x68] sm:$0xff]
        %v2381 = vld [vmem:[%s2366 + $0x70] sm:$0xff]
        %v2382 = vld [vmem:[%s2366 + $0x78] sm:$0xff]
        %v2383 = vld [vmem:[%s2366 + $0x80] sm:$0xff]
        %v2384 = vld [vmem:[%s2366 + $0x88] sm:$0xff]
        %v2385 = vld [vmem:[%s2366 + $0x90] sm:$0xff]
        %v2386 = vld [vmem:[%s2366 + $0x98] sm:$0xff]
        %2387 = vmatprep.subr.mxu0 0.0
        %2388 = vmatpush1.msra.mxu0 %v2367
        %2389 = vmatprep.subr.mxu0 0.0
        %2390 = vmatpush1.msra.mxu0 %v2368
        %2391 = vmatprep.subr.mxu0 0.0
        %2392 = vmatpush1.msra.mxu0 %v2369
        %2393 = vmatprep.subr.mxu0 0.0
        %2394 = vmatpush1.msra.mxu0 %v2370
        %2395 = vmatprep.subr.mxu0 0.0
        %2396 = vmatpush1.msra.mxu0 %v2371
        %2397 = vmatprep.subr.mxu0 0.0
        %2398 = vmatpush1.msra.mxu0 %v2372
        %2399 = vmatprep.subr.mxu0 0.0
        %2400 = vmatpush1.msra.mxu0 %v2373
        %2401 = vmatprep.subr.mxu0 0.0
        %2402 = vmatpush1.msra.mxu0 %v2374
        %2403 = vmatprep.subr.mxu0 0.0
        %2404 = vmatpush1.msra.mxu0 %v2375
        %2405 = vmatprep.subr.mxu0 0.0
        %2406 = vmatpush1.msra.mxu0 %v2376
        %2407 = vmatprep.subr.mxu0 0.0
        %2408 = vmatpush1.msra.mxu0 %v2377
        %2409 = vmatprep.subr.mxu0 0.0
        %2410 = vmatpush1.msra.mxu0 %v2378
        %2411 = vmatprep.subr.mxu0 0.0
        %2412 = vmatpush1.msra.mxu0 %v2379
        %2413 = vmatprep.subr.mxu0 0.0
        %2414 = vmatpush1.msra.mxu0 %v2380
        %2415 = vmatprep.subr.mxu0 0.0
        %2416 = vmatpush1.msra.mxu0 %v2381
        %2417 = vmatprep.subr.mxu0 0.0
        %2418 = vmatpush1.msra.mxu0 %v2382
        %2419 = vmatprep.subr.mxu0 0.0
        %2420 = vmatpush1.msra.mxu0 %v2383
        %2421 = vmatprep.subr.mxu0 0.0
        %2422 = vmatpush1.msra.mxu0 %v2384
        %2423 = vmatprep.subr.mxu0 0.0
        %2424 = vmatpush1.msra.mxu0 %v2385
        %2425 = vmatprep.subr.mxu0 0.0
        %2426 = vmatpush1.msra.mxu0 %v2386
        %2427 = vmatprep.subr.mxu0 0.0
        %2428 = vmatpush1.msra.mxu0 0.0
        %2429 = vmatprep.subr.mxu0 0.0
        %2430 = vmatpush1.msra.mxu0 0.0
        %2431 = vmatprep.subr.mxu0 0.0
        %2432 = vmatpush1.msra.mxu0 0.0
        %2433 = vmatprep.subr.mxu0 0.0
        %2434 = vmatpush1.msra.mxu0 0.0
        %2435 = vmatprep.subr.mxu0 0.0
        %2436 = vmatpush1.msra.mxu0 0.0
        %2437 = vmatprep.subr.mxu0 0.0
        %2438 = vmatpush1.msra.mxu0 0.0
        %2439 = vmatprep.subr.mxu0 0.0
        %2440 = vmatpush1.msra.mxu0 0.0
        %2441 = vmatprep.subr.mxu0 0.0
        %2442 = vmatpush1.msra.mxu0 0.0
        %2443 = vmatprep.subr.mxu0 0.0
        %2444 = vmatpush1.msra.mxu0 0.0
        %2445 = vmatprep.subr.mxu0 0.0
        %2446 = vmatpush1.msra.mxu0 0.0
        %2447 = vmatprep.subr.mxu0 0.0
        %2448 = vmatpush1.msra.mxu0 0.0
        %2449 = vmatprep.subr.mxu0 0.0
        %2450 = vmatpush1.msra.mxu0 0.0
        %2451 = vmatprep.mubr.f32.mxu0 %v2294
        %2452 = vmatmul.mubr.f32.gmra.mrb[0].mxu0 %v2271
        %v2453 = vpop.f32.mrb[0].mxu0
        %v2454 = vadd.f32 0.0, %v2453
        %v2455 = vpop.f32.mrb[0].mxu0
        %2456 = vdwg.mxu0
        %v2457 = vmax.f32 %v2363, %v2454
        %v2458 = vld [vmem:[%s10] sm:$0x1]
        %v2459 = vld [vmem:[%s9] sm:$0xff]
        %v2460 = vld [vmem:[%s9 + $0x8] sm:$0xff]
        %v2461 = vld [vmem:[%s9 + $0x10] sm:$0xff]
        %v2462 = vld [vmem:[%s9 + $0x18] sm:$0xff]
        %v2463 = vld [vmem:[%s9 + $0x20] sm:$0xff]
        %v2464 = vld [vmem:[%s9 + $0x28] sm:$0xff]
        %v2465 = vld [vmem:[%s9 + $0x30] sm:$0xff]
        %v2466 = vld [vmem:[%s9 + $0x38] sm:$0xff]
        %v2467 = vld [vmem:[%s9 + $0x40] sm:$0xff]
        %v2468 = vld [vmem:[%s9 + $0x48] sm:$0xff]
        %vm2469 = vcmask 654336
        %v2471 = vsel %vm2469, %v2457, 0
        %2473 = vmatprep.subr.mxu0 0.0
        %2474 = vmatpush1.msra.mxu0 %v2459
        %2475 = vmatprep.subr.mxu0 0.0
        %2476 = vmatpush1.msra.mxu0 %v2460
        %2477 = vmatprep.subr.mxu0 0.0
        %2478 = vmatpush1.msra.mxu0 %v2461
        %2479 = vmatprep.subr.mxu0 0.0
        %2480 = vmatpush1.msra.mxu0 %v2462
        %2481 = vmatprep.subr.mxu0 0.0
        %2482 = vmatpush1.msra.mxu0 %v2463
        %2483 = vmatprep.subr.mxu0 0.0
        %2484 = vmatpush1.msra.mxu0 %v2464
        %2485 = vmatprep.subr.mxu0 0.0
        %2486 = vmatpush1.msra.mxu0 %v2465
        %2487 = vmatprep.subr.mxu0 0.0
        %2488 = vmatpush1.msra.mxu0 %v2466
        %2489 = vmatprep.subr.mxu0 0.0
        %2490 = vmatpush1.msra.mxu0 %v2467
        %2491 = vmatprep.subr.mxu0 0.0
        %2492 = vmatpush1.msra.mxu0 %v2468
        %2493 = vmatprep.subr.mxu0 0.0
        %2494 = vmatpush1.msra.mxu0 0.0
        %2495 = vmatprep.subr.mxu0 0.0
        %2496 = vmatpush1.msra.mxu0 0.0
        %2497 = vmatprep.subr.mxu0 0.0
        %2498 = vmatpush1.msra.mxu0 0.0
        %2499 = vmatprep.subr.mxu0 0.0
        %2500 = vmatpush1.msra.mxu0 0.0
        %2501 = vmatprep.subr.mxu0 0.0
        %2502 = vmatpush1.msra.mxu0 0.0
        %2503 = vmatprep.subr.mxu0 0.0
        %2504 = vmatpush1.msra.mxu0 0.0
        %2505 = vmatprep.subr.mxu0 0.0
        %2506 = vmatpush1.msra.mxu0 0.0
        %2507 = vmatprep.subr.mxu0 0.0
        %2508 = vmatpush1.msra.mxu0 0.0
        %2509 = vmatprep.subr.mxu0 0.0
        %2510 = vmatpush1.msra.mxu0 0.0
        %2511 = vmatprep.subr.mxu0 0.0
        %2512 = vmatpush1.msra.mxu0 0.0
        %2513 = vmatprep.subr.mxu0 0.0
        %2514 = vmatpush1.msra.mxu0 0.0
        %2515 = vmatprep.subr.mxu0 0.0
        %2516 = vmatpush1.msra.mxu0 0.0
        %2517 = vmatprep.subr.mxu0 0.0
        %2518 = vmatpush1.msra.mxu0 0.0
        %2519 = vmatprep.subr.mxu0 0.0
        %2520 = vmatpush1.msra.mxu0 0.0
        %2521 = vmatprep.subr.mxu0 0.0
        %2522 = vmatpush1.msra.mxu0 0.0
        %2523 = vmatprep.subr.mxu0 0.0
        %2524 = vmatpush1.msra.mxu0 0.0
        %2525 = vmatprep.subr.mxu0 0.0
        %2526 = vmatpush1.msra.mxu0 0.0
        %2527 = vmatprep.subr.mxu0 0.0
        %2528 = vmatpush1.msra.mxu0 0.0
        %2529 = vmatprep.subr.mxu0 0.0
        %2530 = vmatpush1.msra.mxu0 0.0
        %2531 = vmatprep.subr.mxu0 0.0
        %2532 = vmatpush1.msra.mxu0 0.0
        %2533 = vmatprep.subr.mxu0 0.0
        %2534 = vmatpush1.msra.mxu0 0.0
        %2535 = vmatprep.subr.mxu0 0.0
        %2536 = vmatpush1.msra.mxu0 0.0
        %2537 = vmatprep.mubr.f32.mxu0 0.0
        %2538 = vmatmul.mubr.f32.gmra.mrb[0].mxu0 %v2471
        %v2539 = vpop.f32.mrb[0].mxu0
        %v2540 = vadd.f32 0.0, %v2539
        %v2541 = vpop.f32.mrb[0].mxu0
        %2542 = vdwg.mxu0
        %v2543 = vadd.f32 %v2458, %v2540
        %s2544 = scalar_lea.vmem %s9, 80
        %v2545 = vld [vmem:[%s2544] sm:$0xff]
        %v2546 = vld [vmem:[%s2544 + $0x8] sm:$0xff]
        %v2547 = vld [vmem:[%s2544 + $0x10] sm:$0xff]
        %v2548 = vld [vmem:[%s2544 + $0x18] sm:$0xff]
        %v2549 = vld [vmem:[%s2544 + $0x20] sm:$0xff]
        %v2550 = vld [vmem:[%s2544 + $0x28] sm:$0xff]
        %v2551 = vld [vmem:[%s2544 + $0x30] sm:$0xff]
        %v2552 = vld [vmem:[%s2544 + $0x38] sm:$0xff]
        %v2553 = vld [vmem:[%s2544 + $0x40] sm:$0xff]
        %v2554 = vld [vmem:[%s2544 + $0x48] sm:$0xff]
        %v2555 = vrot.slane %v2457, 1
        %v2556 = vsel %vm2469, %v2555, 0
        %2558 = vmatprep.subr.mxu0 0.0
        %2559 = vmatpush1.msra.mxu0 %v2545
        %2560 = vmatprep.subr.mxu0 0.0
        %2561 = vmatpush1.msra.mxu0 %v2546
        %2562 = vmatprep.subr.mxu0 0.0
        %2563 = vmatpush1.msra.mxu0 %v2547
        %2564 = vmatprep.subr.mxu0 0.0
        %2565 = vmatpush1.msra.mxu0 %v2548
        %2566 = vmatprep.subr.mxu0 0.0
        %2567 = vmatpush1.msra.mxu0 %v2549
        %2568 = vmatprep.subr.mxu0 0.0
        %2569 = vmatpush1.msra.mxu0 %v2550
        %2570 = vmatprep.subr.mxu0 0.0
        %2571 = vmatpush1.msra.mxu0 %v2551
        %2572 = vmatprep.subr.mxu0 0.0
        %2573 = vmatpush1.msra.mxu0 %v2552
        %2574 = vmatprep.subr.mxu0 0.0
        %2575 = vmatpush1.msra.mxu0 %v2553
        %2576 = vmatprep.subr.mxu0 0.0
        %2577 = vmatpush1.msra.mxu0 %v2554
        %2578 = vmatprep.subr.mxu0 0.0
        %2579 = vmatpush1.msra.mxu0 0.0
        %2580 = vmatprep.subr.mxu0 0.0
        %2581 = vmatpush1.msra.mxu0 0.0
        %2582 = vmatprep.subr.mxu0 0.0
        %2583 = vmatpush1.msra.mxu0 0.0
        %2584 = vmatprep.subr.mxu0 0.0
        %2585 = vmatpush1.msra.mxu0 0.0
        %2586 = vmatprep.subr.mxu0 0.0
        %2587 = vmatpush1.msra.mxu0 0.0
        %2588 = vmatprep.subr.mxu0 0.0
        %2589 = vmatpush1.msra.mxu0 0.0
        %2590 = vmatprep.subr.mxu0 0.0
        %2591 = vmatpush1.msra.mxu0 0.0
        %2592 = vmatprep.subr.mxu0 0.0
        %2593 = vmatpush1.msra.mxu0 0.0
        %2594 = vmatprep.subr.mxu0 0.0
        %2595 = vmatpush1.msra.mxu0 0.0
        %2596 = vmatprep.subr.mxu0 0.0
        %2597 = vmatpush1.msra.mxu0 0.0
        %2598 = vmatprep.subr.mxu0 0.0
        %2599 = vmatpush1.msra.mxu0 0.0
        %2600 = vmatprep.subr.mxu0 0.0
        %2601 = vmatpush1.msra.mxu0 0.0
        %2602 = vmatprep.subr.mxu0 0.0
        %2603 = vmatpush1.msra.mxu0 0.0
        %2604 = vmatprep.subr.mxu0 0.0
        %2605 = vmatpush1.msra.mxu0 0.0
        %2606 = vmatprep.subr.mxu0 0.0
        %2607 = vmatpush1.msra.mxu0 0.0
        %2608 = vmatprep.subr.mxu0 0.0
        %2609 = vmatpush1.msra.mxu0 0.0
        %2610 = vmatprep.subr.mxu0 0.0
        %2611 = vmatpush1.msra.mxu0 0.0
        %2612 = vmatprep.subr.mxu0 0.0
        %2613 = vmatpush1.msra.mxu0 0.0
        %2614 = vmatprep.subr.mxu0 0.0
        %2615 = vmatpush1.msra.mxu0 0.0
        %2616 = vmatprep.subr.mxu0 0.0
        %2617 = vmatpush1.msra.mxu0 0.0
        %2618 = vmatprep.subr.mxu0 0.0
        %2619 = vmatpush1.msra.mxu0 0.0
        %2620 = vmatprep.subr.mxu0 0.0
        %2621 = vmatpush1.msra.mxu0 0.0
        %2622 = vmatprep.mubr.f32.mxu0 0.0
        %2623 = vmatmul.mubr.f32.gmra.mrb[0].mxu0 %v2556
        %v2624 = vpop.f32.mrb[0].mxu0
        %v2625 = vadd.f32 0.0, %v2624
        %v2626 = vpop.f32.mrb[0].mxu0
        %2627 = vdwg.mxu0
        %v2628 = vadd.f32 %v2543, %v2625
        %s2629 = scalar_lea.vmem %s9, 160
        %v2630 = vld [vmem:[%s2629] sm:$0xff]
        %v2631 = vld [vmem:[%s2629 + $0x8] sm:$0xff]
        %v2632 = vld [vmem:[%s2629 + $0x10] sm:$0xff]
        %v2633 = vld [vmem:[%s2629 + $0x18] sm:$0xff]
        %v2634 = vld [vmem:[%s2629 + $0x20] sm:$0xff]
        %v2635 = vld [vmem:[%s2629 + $0x28] sm:$0xff]
        %v2636 = vld [vmem:[%s2629 + $0x30] sm:$0xff]
        %v2637 = vld [vmem:[%s2629 + $0x38] sm:$0xff]
        %v2638 = vld [vmem:[%s2629 + $0x40] sm:$0xff]
        %v2639 = vld [vmem:[%s2629 + $0x48] sm:$0xff]
        %v2640 = vrot.slane %v2457, 2
        %v2641 = vsel %vm2469, %v2640, 0
        %2643 = vmatprep.subr.mxu0 0.0
        %2644 = vmatpush1.msra.mxu0 %v2630
        %2645 = vmatprep.subr.mxu0 0.0
        %2646 = vmatpush1.msra.mxu0 %v2631
        %2647 = vmatprep.subr.mxu0 0.0
        %2648 = vmatpush1.msra.mxu0 %v2632
        %2649 = vmatprep.subr.mxu0 0.0
        %2650 = vmatpush1.msra.mxu0 %v2633
        %2651 = vmatprep.subr.mxu0 0.0
        %2652 = vmatpush1.msra.mxu0 %v2634
        %2653 = vmatprep.subr.mxu0 0.0
        %2654 = vmatpush1.msra.mxu0 %v2635
        %2655 = vmatprep.subr.mxu0 0.0
        %2656 = vmatpush1.msra.mxu0 %v2636
        %2657 = vmatprep.subr.mxu0 0.0
        %2658 = vmatpush1.msra.mxu0 %v2637
        %2659 = vmatprep.subr.mxu0 0.0
        %2660 = vmatpush1.msra.mxu0 %v2638
        %2661 = vmatprep.subr.mxu0 0.0
        %2662 = vmatpush1.msra.mxu0 %v2639
        %2663 = vmatprep.subr.mxu0 0.0
        %2664 = vmatpush1.msra.mxu0 0.0
        %2665 = vmatprep.subr.mxu0 0.0
        %2666 = vmatpush1.msra.mxu0 0.0
        %2667 = vmatprep.subr.mxu0 0.0
        %2668 = vmatpush1.msra.mxu0 0.0
        %2669 = vmatprep.subr.mxu0 0.0
        %2670 = vmatpush1.msra.mxu0 0.0
        %2671 = vmatprep.subr.mxu0 0.0
        %2672 = vmatpush1.msra.mxu0 0.0
        %2673 = vmatprep.subr.mxu0 0.0
        %2674 = vmatpush1.msra.mxu0 0.0
        %2675 = vmatprep.subr.mxu0 0.0
        %2676 = vmatpush1.msra.mxu0 0.0
        %2677 = vmatprep.subr.mxu0 0.0
        %2678 = vmatpush1.msra.mxu0 0.0
        %2679 = vmatprep.subr.mxu0 0.0
        %2680 = vmatpush1.msra.mxu0 0.0
        %2681 = vmatprep.subr.mxu0 0.0
        %2682 = vmatpush1.msra.mxu0 0.0
        %2683 = vmatprep.subr.mxu0 0.0
        %2684 = vmatpush1.msra.mxu0 0.0
        %2685 = vmatprep.subr.mxu0 0.0
        %2686 = vmatpush1.msra.mxu0 0.0
        %2687 = vmatprep.subr.mxu0 0.0
        %2688 = vmatpush1.msra.mxu0 0.0
        %2689 = vmatprep.subr.mxu0 0.0
        %2690 = vmatpush1.msra.mxu0 0.0
        %2691 = vmatprep.subr.mxu0 0.0
        %2692 = vmatpush1.msra.mxu0 0.0
        %2693 = vmatprep.subr.mxu0 0.0
        %2694 = vmatpush1.msra.mxu0 0.0
        %2695 = vmatprep.subr.mxu0 0.0
        %2696 = vmatpush1.msra.mxu0 0.0
        %2697 = vmatprep.subr.mxu0 0.0
        %2698 = vmatpush1.msra.mxu0 0.0
        %2699 = vmatprep.subr.mxu0 0.0
        %2700 = vmatpush1.msra.mxu0 0.0
        %2701 = vmatprep.subr.mxu0 0.0
        %2702 = vmatpush1.msra.mxu0 0.0
        %2703 = vmatprep.subr.mxu0 0.0
        %2704 = vmatpush1.msra.mxu0 0.0
        %2705 = vmatprep.subr.mxu0 0.0
        %2706 = vmatpush1.msra.mxu0 0.0
        %2707 = vmatprep.mubr.f32.mxu0 0.0
        %2708 = vmatmul.mubr.f32.gmra.mrb[0].mxu0 %v2641
        %v2709 = vpop.f32.mrb[0].mxu0
        %v2710 = vadd.f32 0.0, %v2709
        %v2711 = vpop.f32.mrb[0].mxu0
        %2712 = vdwg.mxu0
        %v2713 = vadd.f32 %v2628, %v2710
        %s2714 = scalar_lea.vmem %s9, 240
        %v2715 = vld [vmem:[%s2714] sm:$0xff]
        %v2716 = vld [vmem:[%s2714 + $0x8] sm:$0xff]
        %v2717 = vld [vmem:[%s2714 + $0x10] sm:$0xff]
        %v2718 = vld [vmem:[%s2714 + $0x18] sm:$0xff]
        %v2719 = vld [vmem:[%s2714 + $0x20] sm:$0xff]
        %v2720 = vld [vmem:[%s2714 + $0x28] sm:$0xff]
        %v2721 = vld [vmem:[%s2714 + $0x30] sm:$0xff]
        %v2722 = vld [vmem:[%s2714 + $0x38] sm:$0xff]
        %v2723 = vld [vmem:[%s2714 + $0x40] sm:$0xff]
        %v2724 = vld [vmem:[%s2714 + $0x48] sm:$0xff]
        %v2725 = vrot.slane %v2457, 3
        %v2726 = vsel %vm2469, %v2725, 0
        %2728 = vmatprep.subr.mxu0 0.0
        %2729 = vmatpush1.msra.mxu0 %v2715
        %2730 = vmatprep.subr.mxu0 0.0
        %2731 = vmatpush1.msra.mxu0 %v2716
        %2732 = vmatprep.subr.mxu0 0.0
        %2733 = vmatpush1.msra.mxu0 %v2717
        %2734 = vmatprep.subr.mxu0 0.0
        %2735 = vmatpush1.msra.mxu0 %v2718
        %2736 = vmatprep.subr.mxu0 0.0
        %2737 = vmatpush1.msra.mxu0 %v2719
        %2738 = vmatprep.subr.mxu0 0.0
        %2739 = vmatpush1.msra.mxu0 %v2720
        %2740 = vmatprep.subr.mxu0 0.0
        %2741 = vmatpush1.msra.mxu0 %v2721
        %2742 = vmatprep.subr.mxu0 0.0
        %2743 = vmatpush1.msra.mxu0 %v2722
        %2744 = vmatprep.subr.mxu0 0.0
        %2745 = vmatpush1.msra.mxu0 %v2723
        %2746 = vmatprep.subr.mxu0 0.0
        %2747 = vmatpush1.msra.mxu0 %v2724
        %2748 = vmatprep.subr.mxu0 0.0
        %2749 = vmatpush1.msra.mxu0 0.0
        %2750 = vmatprep.subr.mxu0 0.0
        %2751 = vmatpush1.msra.mxu0 0.0
        %2752 = vmatprep.subr.mxu0 0.0
        %2753 = vmatpush1.msra.mxu0 0.0
        %2754 = vmatprep.subr.mxu0 0.0
        %2755 = vmatpush1.msra.mxu0 0.0
        %2756 = vmatprep.subr.mxu0 0.0
        %2757 = vmatpush1.msra.mxu0 0.0
        %2758 = vmatprep.subr.mxu0 0.0
        %2759 = vmatpush1.msra.mxu0 0.0
        %2760 = vmatprep.subr.mxu0 0.0
        %2761 = vmatpush1.msra.mxu0 0.0
        %2762 = vmatprep.subr.mxu0 0.0
        %2763 = vmatpush1.msra.mxu0 0.0
        %2764 = vmatprep.subr.mxu0 0.0
        %2765 = vmatpush1.msra.mxu0 0.0
        %2766 = vmatprep.subr.mxu0 0.0
        %2767 = vmatpush1.msra.mxu0 0.0
        %2768 = vmatprep.subr.mxu0 0.0
        %2769 = vmatpush1.msra.mxu0 0.0
        %2770 = vmatprep.subr.mxu0 0.0
        %2771 = vmatpush1.msra.mxu0 0.0
        %2772 = vmatprep.subr.mxu0 0.0
        %2773 = vmatpush1.msra.mxu0 0.0
        %2774 = vmatprep.subr.mxu0 0.0
        %2775 = vmatpush1.msra.mxu0 0.0
        %2776 = vmatprep.subr.mxu0 0.0
        %2777 = vmatpush1.msra.mxu0 0.0
        %2778 = vmatprep.subr.mxu0 0.0
        %2779 = vmatpush1.msra.mxu0 0.0
        %2780 = vmatprep.subr.mxu0 0.0
        %2781 = vmatpush1.msra.mxu0 0.0
        %2782 = vmatprep.subr.mxu0 0.0
        %2783 = vmatpush1.msra.mxu0 0.0
        %2784 = vmatprep.subr.mxu0 0.0
        %2785 = vmatpush1.msra.mxu0 0.0
        %2786 = vmatprep.subr.mxu0 0.0
        %2787 = vmatpush1.msra.mxu0 0.0
        %2788 = vmatprep.subr.mxu0 0.0
        %2789 = vmatpush1.msra.mxu0 0.0
        %2790 = vmatprep.subr.mxu0 0.0
        %2791 = vmatpush1.msra.mxu0 0.0
        %2792 = vmatprep.mubr.f32.mxu0 0.0
        %2793 = vmatmul.mubr.f32.gmra.mrb[0].mxu0 %v2726
        %v2794 = vpop.f32.mrb[0].mxu0
        %v2795 = vadd.f32 0.0, %v2794
        %v2796 = vpop.f32.mrb[0].mxu0
        %2797 = vdwg.mxu0
        %v2798 = vadd.f32 %v2713, %v2795
        %s2799 = scalar_lea.vmem %s9, 320
        %v2800 = vld [vmem:[%s2799] sm:$0xff]
        %v2801 = vld [vmem:[%s2799 + $0x8] sm:$0xff]
        %v2802 = vld [vmem:[%s2799 + $0x10] sm:$0xff]
        %v2803 = vld [vmem:[%s2799 + $0x18] sm:$0xff]
        %v2804 = vld [vmem:[%s2799 + $0x20] sm:$0xff]
        %v2805 = vld [vmem:[%s2799 + $0x28] sm:$0xff]
        %v2806 = vld [vmem:[%s2799 + $0x30] sm:$0xff]
        %v2807 = vld [vmem:[%s2799 + $0x38] sm:$0xff]
        %v2808 = vld [vmem:[%s2799 + $0x40] sm:$0xff]
        %v2809 = vld [vmem:[%s2799 + $0x48] sm:$0xff]
        %v2810 = vrot.slane %v2457, 4
        %v2811 = vsel %vm2469, %v2810, 0
        %2813 = vmatprep.subr.mxu0 0.0
        %2814 = vmatpush1.msra.mxu0 %v2800
        %2815 = vmatprep.subr.mxu0 0.0
        %2816 = vmatpush1.msra.mxu0 %v2801
        %2817 = vmatprep.subr.mxu0 0.0
        %2818 = vmatpush1.msra.mxu0 %v2802
        %2819 = vmatprep.subr.mxu0 0.0
        %2820 = vmatpush1.msra.mxu0 %v2803
        %2821 = vmatprep.subr.mxu0 0.0
        %2822 = vmatpush1.msra.mxu0 %v2804
        %2823 = vmatprep.subr.mxu0 0.0
        %2824 = vmatpush1.msra.mxu0 %v2805
        %2825 = vmatprep.subr.mxu0 0.0
        %2826 = vmatpush1.msra.mxu0 %v2806
        %2827 = vmatprep.subr.mxu0 0.0
        %2828 = vmatpush1.msra.mxu0 %v2807
        %2829 = vmatprep.subr.mxu0 0.0
        %2830 = vmatpush1.msra.mxu0 %v2808
        %2831 = vmatprep.subr.mxu0 0.0
        %2832 = vmatpush1.msra.mxu0 %v2809
        %2833 = vmatprep.subr.mxu0 0.0
        %2834 = vmatpush1.msra.mxu0 0.0
        %2835 = vmatprep.subr.mxu0 0.0
        %2836 = vmatpush1.msra.mxu0 0.0
        %2837 = vmatprep.subr.mxu0 0.0
        %2838 = vmatpush1.msra.mxu0 0.0
        %2839 = vmatprep.subr.mxu0 0.0
        %2840 = vmatpush1.msra.mxu0 0.0
        %2841 = vmatprep.subr.mxu0 0.0
        %2842 = vmatpush1.msra.mxu0 0.0
        %2843 = vmatprep.subr.mxu0 0.0
        %2844 = vmatpush1.msra.mxu0 0.0
        %2845 = vmatprep.subr.mxu0 0.0
        %2846 = vmatpush1.msra.mxu0 0.0
        %2847 = vmatprep.subr.mxu0 0.0
        %2848 = vmatpush1.msra.mxu0 0.0
        %2849 = vmatprep.subr.mxu0 0.0
        %2850 = vmatpush1.msra.mxu0 0.0
        %2851 = vmatprep.subr.mxu0 0.0
        %2852 = vmatpush1.msra.mxu0 0.0
        %2853 = vmatprep.subr.mxu0 0.0
        %2854 = vmatpush1.msra.mxu0 0.0
        %2855 = vmatprep.subr.mxu0 0.0
        %2856 = vmatpush1.msra.mxu0 0.0
        %2857 = vmatprep.subr.mxu0 0.0
        %2858 = vmatpush1.msra.mxu0 0.0
        %2859 = vmatprep.subr.mxu0 0.0
        %2860 = vmatpush1.msra.mxu0 0.0
        %2861 = vmatprep.subr.mxu0 0.0
        %2862 = vmatpush1.msra.mxu0 0.0
        %2863 = vmatprep.subr.mxu0 0.0
        %2864 = vmatpush1.msra.mxu0 0.0
        %2865 = vmatprep.subr.mxu0 0.0
        %2866 = vmatpush1.msra.mxu0 0.0
        %2867 = vmatprep.subr.mxu0 0.0
        %2868 = vmatpush1.msra.mxu0 0.0
        %2869 = vmatprep.subr.mxu0 0.0
        %2870 = vmatpush1.msra.mxu0 0.0
        %2871 = vmatprep.subr.mxu0 0.0
        %2872 = vmatpush1.msra.mxu0 0.0
        %2873 = vmatprep.subr.mxu0 0.0
        %2874 = vmatpush1.msra.mxu0 0.0
        %2875 = vmatprep.subr.mxu0 0.0
        %2876 = vmatpush1.msra.mxu0 0.0
        %2877 = vmatprep.mubr.f32.mxu0 0.0
        %2878 = vmatmul.mubr.f32.gmra.mrb[0].mxu0 %v2811
        %v2879 = vpop.f32.mrb[0].mxu0
        %v2880 = vadd.f32 0.0, %v2879
        %v2881 = vpop.f32.mrb[0].mxu0
        %2882 = vdwg.mxu0
        %v2883 = vadd.f32 %v2798, %v2880
        %v2884 = vmax.f32 %v2883, 0.0
        %v2885 = vld [vmem:[%s11] sm:$0xff]
        %v2886 = vld [vmem:[%s11 + $0x8] sm:$0xff]
        %v2887 = vld [vmem:[%s11 + $0x10] sm:$0xff]
        %v2888 = vld [vmem:[%s11 + $0x18] sm:$0xff]
        %v2889 = vld [vmem:[%s11 + $0x20] sm:$0xff]
        %v2890 = vld [vmem:[%s11 + $0x28] sm:$0xff]
        %v2891 = vld [vmem:[%s11 + $0x30] sm:$0xff]
        %v2892 = vld [vmem:[%s11 + $0x38] sm:$0xff]
        %v2893 = vld [vmem:[%s11 + $0x40] sm:$0xff]
        %v2894 = vld [vmem:[%s11 + $0x48] sm:$0xff]
        %v2895 = vld [vmem:[%s11 + $0x50] sm:$0xff]
        %v2896 = vld [vmem:[%s11 + $0x58] sm:$0xff]
        %v2897 = vld [vmem:[%s11 + $0x60] sm:$0xff]
        %v2898 = vld [vmem:[%s11 + $0x68] sm:$0xff]
        %v2899 = vld [vmem:[%s11 + $0x70] sm:$0xff]
        %v2900 = vld [vmem:[%s12] sm:$0x1]
        %vm2901 = vcmask 982016
        %v2903 = vsel %vm2901, %v2884, 0
        %2905 = vmatprep.subr.mxu0 0.0
        %2906 = vmatpush1.msra.mxu0 %v2885
        %2907 = vmatprep.subr.mxu0 0.0
        %2908 = vmatpush1.msra.mxu0 %v2886
        %2909 = vmatprep.subr.mxu0 0.0
        %2910 = vmatpush1.msra.mxu0 %v2887
        %2911 = vmatprep.subr.mxu0 0.0
        %2912 = vmatpush1.msra.mxu0 %v2888
        %2913 = vmatprep.subr.mxu0 0.0
        %2914 = vmatpush1.msra.mxu0 %v2889
        %2915 = vmatprep.subr.mxu0 0.0
        %2916 = vmatpush1.msra.mxu0 %v2890
        %2917 = vmatprep.subr.mxu0 0.0
        %2918 = vmatpush1.msra.mxu0 %v2891
        %2919 = vmatprep.subr.mxu0 0.0
        %2920 = vmatpush1.msra.mxu0 %v2892
        %2921 = vmatprep.subr.mxu0 0.0
        %2922 = vmatpush1.msra.mxu0 %v2893
        %2923 = vmatprep.subr.mxu0 0.0
        %2924 = vmatpush1.msra.mxu0 %v2894
        %2925 = vmatprep.subr.mxu0 0.0
        %2926 = vmatpush1.msra.mxu0 %v2895
        %2927 = vmatprep.subr.mxu0 0.0
        %2928 = vmatpush1.msra.mxu0 %v2896
        %2929 = vmatprep.subr.mxu0 0.0
        %2930 = vmatpush1.msra.mxu0 %v2897
        %2931 = vmatprep.subr.mxu0 0.0
        %2932 = vmatpush1.msra.mxu0 %v2898
        %2933 = vmatprep.subr.mxu0 0.0
        %2934 = vmatpush1.msra.mxu0 %v2899
        %2935 = vmatprep.subr.mxu0 0.0
        %2936 = vmatpush1.msra.mxu0 0.0
        %2937 = vmatprep.subr.mxu0 0.0
        %2938 = vmatpush1.msra.mxu0 0.0
        %2939 = vmatprep.subr.mxu0 0.0
        %2940 = vmatpush1.msra.mxu0 0.0
        %2941 = vmatprep.subr.mxu0 0.0
        %2942 = vmatpush1.msra.mxu0 0.0
        %2943 = vmatprep.subr.mxu0 0.0
        %2944 = vmatpush1.msra.mxu0 0.0
        %2945 = vmatprep.subr.mxu0 0.0
        %2946 = vmatpush1.msra.mxu0 0.0
        %2947 = vmatprep.subr.mxu0 0.0
        %2948 = vmatpush1.msra.mxu0 0.0
        %2949 = vmatprep.subr.mxu0 0.0
        %2950 = vmatpush1.msra.mxu0 0.0
        %2951 = vmatprep.subr.mxu0 0.0
        %2952 = vmatpush1.msra.mxu0 0.0
        %2953 = vmatprep.subr.mxu0 0.0
        %2954 = vmatpush1.msra.mxu0 0.0
        %2955 = vmatprep.subr.mxu0 0.0
        %2956 = vmatpush1.msra.mxu0 0.0
        %2957 = vmatprep.subr.mxu0 0.0
        %2958 = vmatpush1.msra.mxu0 0.0
        %2959 = vmatprep.subr.mxu0 0.0
        %2960 = vmatpush1.msra.mxu0 0.0
        %2961 = vmatprep.subr.mxu0 0.0
        %2962 = vmatpush1.msra.mxu0 0.0
        %2963 = vmatprep.subr.mxu0 0.0
        %2964 = vmatpush1.msra.mxu0 0.0
        %2965 = vmatprep.subr.mxu0 0.0
        %2966 = vmatpush1.msra.mxu0 0.0
        %2967 = vmatprep.subr.mxu0 0.0
        %2968 = vmatpush1.msra.mxu0 0.0
        %2969 = vmatprep.mubr.f32.mxu0 0.0
        %2970 = vmatmul.mubr.f32.gmra.mrb[0].mxu0 %v2903
        %v2971 = vpop.f32.mrb[0].mxu0
        %v2972 = vadd.f32 %v2900, %v2971
        %v2973 = vpop.f32.mrb[0].mxu0
        %2974 = vdwg.mxu0
        %v2975 = vmax.f32 %v2972, 0.0
        %v2976 = vld [vmem:[%s13] sm:$0xff]
        %v2977 = vld [vmem:[%s13 + $0x8] sm:$0xff]
        %v2978 = vld [vmem:[%s13 + $0x10] sm:$0xff]
        %v2979 = vld [vmem:[%s13 + $0x18] sm:$0xff]
        %v2980 = vld [vmem:[%s13 + $0x20] sm:$0xff]
        %v2981 = vld [vmem:[%s13 + $0x28] sm:$0xff]
        %v2982 = vld [vmem:[%s13 + $0x30] sm:$0xff]
        %v2983 = vld [vmem:[%s13 + $0x38] sm:$0xf]
        %v2984 = vld [vmem:[%s14] sm:$0x1]
        %vm2985 = vcmask 490496
        %v2987 = vsel %vm2985, %v2975, 0
        %v2990 = vsel %vm1123, %v2983, 0
        %2992 = vmatprep.subr.mxu0 0.0
        %2993 = vmatpush1.msra.mxu0 %v2976
        %2994 = vmatprep.subr.mxu0 0.0
        %2995 = vmatpush1.msra.mxu0 %v2977
        %2996 = vmatprep.subr.mxu0 0.0
        %2997 = vmatpush1.msra.mxu0 %v2978
        %2998 = vmatprep.subr.mxu0 0.0
        %2999 = vmatpush1.msra.mxu0 %v2979
        %3000 = vmatprep.subr.mxu0 0.0
        %3001 = vmatpush1.msra.mxu0 %v2980
        %3002 = vmatprep.subr.mxu0 0.0
        %3003 = vmatpush1.msra.mxu0 %v2981
        %3004 = vmatprep.subr.mxu0 0.0
        %3005 = vmatpush1.msra.mxu0 %v2982
        %3006 = vmatprep.subr.mxu0 0.0
        %3007 = vmatpush1.msra.mxu0 %v2990
        %3008 = vmatprep.subr.mxu0 0.0
        %3009 = vmatpush1.msra.mxu0 0.0
        %3010 = vmatprep.subr.mxu0 0.0
        %3011 = vmatpush1.msra.mxu0 0.0
        %3012 = vmatprep.subr.mxu0 0.0
        %3013 = vmatpush1.msra.mxu0 0.0
        %3014 = vmatprep.subr.mxu0 0.0
        %3015 = vmatpush1.msra.mxu0 0.0
        %3016 = vmatprep.subr.mxu0 0.0
        %3017 = vmatpush1.msra.mxu0 0.0
        %3018 = vmatprep.subr.mxu0 0.0
        %3019 = vmatpush1.msra.mxu0 0.0
        %3020 = vmatprep.subr.mxu0 0.0
        %3021 = vmatpush1.msra.mxu0 0.0
        %3022 = vmatprep.subr.mxu0 0.0
        %3023 = vmatpush1.msra.mxu0 0.0
        %3024 = vmatprep.subr.mxu0 0.0
        %3025 = vmatpush1.msra.mxu0 0.0
        %3026 = vmatprep.subr.mxu0 0.0
        %3027 = vmatpush1.msra.mxu0 0.0
        %3028 = vmatprep.subr.mxu0 0.0
        %3029 = vmatpush1.msra.mxu0 0.0
        %3030 = vmatprep.subr.mxu0 0.0
        %3031 = vmatpush1.msra.mxu0 0.0
        %3032 = vmatprep.subr.mxu0 0.0
        %3033 = vmatpush1.msra.mxu0 0.0
        %3034 = vmatprep.subr.mxu0 0.0
        %3035 = vmatpush1.msra.mxu0 0.0
        %3036 = vmatprep.subr.mxu0 0.0
        %3037 = vmatpush1.msra.mxu0 0.0
        %3038 = vmatprep.subr.mxu0 0.0
        %3039 = vmatpush1.msra.mxu0 0.0
        %3040 = vmatprep.subr.mxu0 0.0
        %3041 = vmatpush1.msra.mxu0 0.0
        %3042 = vmatprep.subr.mxu0 0.0
        %3043 = vmatpush1.msra.mxu0 0.0
        %3044 = vmatprep.subr.mxu0 0.0
        %3045 = vmatpush1.msra.mxu0 0.0
        %3046 = vmatprep.subr.mxu0 0.0
        %3047 = vmatpush1.msra.mxu0 0.0
        %3048 = vmatprep.subr.mxu0 0.0
        %3049 = vmatpush1.msra.mxu0 0.0
        %3050 = vmatprep.subr.mxu0 0.0
        %3051 = vmatpush1.msra.mxu0 0.0
        %3052 = vmatprep.subr.mxu0 0.0
        %3053 = vmatpush1.msra.mxu0 0.0
        %3054 = vmatprep.subr.mxu0 0.0
        %3055 = vmatpush1.msra.mxu0 0.0
        %3056 = vmatprep.mubr.f32.mxu0 0.0
        %3057 = vmatmul.mubr.f32.gmra.mrb[0].mxu0 %v2987
        %v3058 = vpop.f32.mrb[0].mxu0
        %v3059 = vadd.f32 %v2984, %v3058
        %v3060 = vpop.f32.mrb[0].mxu0
        %3061 = vdwg.mxu0
        %v3062 = vmax.f32 %v3059, 0.0
        %vm3063 = vcmask 73728
        %3064 = vst.msk [vmem:[%s486] sm:$0x1] %vm3063, %v3062
        %s3065 = sand.u32 %s357, 1
        %s3066 = scalar_lea.sflag [#allocation3], %s3065
        %s3067 = sand.u32 %s357, 1
        %s3068 = scalar_lea.vmem [#allocation2], %s3067
        // Predicated region
        $region81: #{net_forward.1} parent=79 // pred_check
          %p3069 = pneg %p367
        $region82: #{net_forward.1} parent=79 // pred_check_branch
          %3071 = sbr.rel (%p3069) target = $region84
        $region83: #{net_forward.1} parent=79 // pred_region
          %s3073 = ssub.s32 16, 16
          %3074 = vsyncadd %s3066, %s3073
          %s3075 = smul.addr %s29, 16
          %s3076 = scalar_lea.hbm %s15, %s3075
          %s3078 = sshll.u32 %s3068, 4
          %s3079 = int_to_ptr.vmem [resolvable:$true] %s3078
          %3081 = dma.vmem_to_hbm [thread:$0]  %s3079, 16, %s3076, %s3066
        $region84: #{net_forward.1} parent=79 // pred_fallthru
          _
      $region80: #{net_forward.1} parent=5 // pred_fallthru
        _
      %p3082 = scmp.le.s32.totalorder 2, %s24
      // Predicated region
      $region85: #{net_forward.1} parent=5 // pred_check
        %p3083 = pneg %p3082
      $region86: #{net_forward.1} parent=5 // pred_check_branch
        %3085 = sbr.rel (%p3083) target = $region88
      $region87: #{net_forward.1} parent=5 // pred_region
        %s3086 = ssub.s32 %s24, 2
        // Predicated region
        $region89: #{net_forward.1} parent=87 // pred_check
          %p3087 = pneg %p373
        $region90: #{net_forward.1} parent=87 // pred_check_branch
          %3089 = sbr.rel (%p3087) target = $region92
        $region91: #{net_forward.1} parent=87 // pred_region
          %s3090 = sand.u32 %s358, 1
          %s3091 = scalar_lea.sflag [#allocation3], %s3090
          %s3092 = sand.u32 %s358, 1
          %s3093 = scalar_lea.vmem [#allocation2], %s3092
          %3094 = dma.done %s3091, 16
        $region92: #{net_forward.1} parent=87 // pred_fallthru
          _
      $region88: #{net_forward.1} parent=5 // pred_fallthru
        _
    $region6: #{net_forward.1} parent=1 // loop_footer
      %s28 = sadd.s32 1, %s24
    $region7: #{net_forward.1} parent=1 // loop_footer_branch
      %23 = sbr.rel target = $region3
    $region8: #{net_forward.1} parent=1 // loop_exit
      _
    %3095 = vsyncpa [#allocation3], 1
    %s3096 = scalar_lea.sflag [#allocation3], 1
    %3097 = vsyncpa %s3096, 1

</llo_original>
